<compile_context>
chip_gen: v7x
topology: tpu7x:2x2x1
jax: 0.10.0
libtpu: 0.0.40
codegen_flags: <defaults>
</compile_context>

<pallas_src>
import math
import functools

import jax
import jax.numpy as jnp
import numpy as np
from jax import lax
from jax.experimental import pallas as pl
from jax.experimental.pallas import tpu as pltpu

# ----------------------------- configuration --------------------------------
CFG = dict(
    emb_dim=64,
    context_length=8,
    n_heads=4,
    drop_rate=0.0,     # dropout == identity (eval semantics)
    qkv_bias=True,
)
BATCH = 2
SEQ = 8                 # <= context_length
HEAD_DIM = CFG["emb_dim"] // CFG["n_heads"]
FF_DIM = 4 * CFG["emb_dim"]
EPS = 1e-5
FF_SPLITS = 2           # grid steps over the FF hidden dim (DMA/compute overlap)

# bf16 MXU operands (recommended on v6e/v7x; keep False on v5e whose VPU/EUP have
# no bf16).  Default False so the f32 parity check below stays tight; for real
# deployments pre-cast the weights in the wrapper to also halve the HBM DMA.
MATMUL_IN_BF16 = False

_SQRT_2_OVER_PI = math.sqrt(2.0 / math.pi)
_NEG_BIG = -1e30        # finite "−inf": exp() underflows to exactly 0, no inf−inf risk


def _mm_cast(a):
    return a.astype(jnp.bfloat16) if MATMUL_IN_BF16 else a


def _layernorm(v, scale, shift):
    # matches torch: mean / biased var over last dim, eps inside sqrt
    mean = jnp.mean(v, axis=-1, keepdims=True)
    c = v - mean
    var = jnp.mean(c * c, axis=-1, keepdims=True)
    return c * lax.rsqrt(var + EPS) * scale + shift


def _gelu_tanh(v):
    # "from-scratch" GELU: 0.5*x*(1+tanh(sqrt(2/pi)*(x+0.044715*x^3)))
    return 0.5 * v * (1.0 + jnp.tanh(_SQRT_2_OVER_PI * (v + 0.044715 * (v * v * v))))


# ------------------------------- kernel -------------------------------------
def transformer_block_kernel(
    x_ref,
    ln1_s_ref, ln1_b_ref,
    wq_ref, bq_ref, wk_ref, bk_ref, wv_ref, bv_ref,
    wo_ref, bo_ref,
    ln2_s_ref, ln2_b_ref,
    w1_ref, b1_ref, w2_ref, b2_ref,
    out_ref,
    x1_scr, h2_scr, ff_acc,
    qb_scr, kb_scr, vb_scr, ctx_scr,
    *, batch, seq, num_heads, head_dim,
):
    kstep = pl.program_id(0)

    # ---------------- step 0: LN1 + batched causal MHA + residual 1 ----------
    @pl.when(kstep == 0)
    def _attention_phase():
        x = x_ref[...]                                  # (B*T, D), f32
        bt, d = x.shape

        h = _layernorm(x, ln1_s_ref[...], ln1_b_ref[...])

        # Full-width projections on the batch-fused (B*T, D) LHS.
        q = jnp.dot(_mm_cast(h), _mm_cast(wq_ref[...]),
                    preferred_element_type=jnp.float32) + bq_ref[...]
        k = jnp.dot(_mm_cast(h), _mm_cast(wk_ref[...]),
                    preferred_element_type=jnp.float32) + bk_ref[...]
        v = jnp.dot(_mm_cast(h), _mm_cast(wv_ref[...]),
                    preferred_element_type=jnp.float32) + bv_ref[...]

        # (B*T, D) -> (B, T, D): split at the sublane tile boundary (layout no-op).
        q3 = q.reshape(batch, seq, d)
        k3 = k.reshape(batch, seq, d)
        v3 = v.reshape(batch, seq, d)

        # Relayout once into head-batched (H*B, T, hd) scratch via static slices,
        # so the softmax pipeline runs a single time over the fused N=H*B batch.
        for hh in range(num_heads):
            lsl = slice(hh * head_dim, (hh + 1) * head_dim)
            bsl = slice(hh * batch, (hh + 1) * batch)
            qb_scr[bsl, :, :] = q3[:, :, lsl]
            kb_scr[bsl, :, :] = k3[:, :, lsl]
            vb_scr[bsl, :, :] = v3[:, :, lsl]

        qb = qb_scr[...]                                # (H*B, T, hd)
        kb = kb_scr[...]
        vb = vb_scr[...]

        row = lax.broadcasted_iota(jnp.int32, (seq, seq), 0)
        col = lax.broadcasted_iota(jnp.int32, (seq, seq), 1)
        mask = (col > row)[None, :, :]                  # (1, T, T), True above diag

        inv_scale = 1.0 / math.sqrt(head_dim)
        s = jnp.einsum("nqd,nkd->nqk", qb, kb,
                       preferred_element_type=jnp.float32) * inv_scale
        s = jnp.where(mask, _NEG_BIG, s)                # diagonal never masked
        s = s - jnp.max(s, axis=-1, keepdims=True)
        p = jnp.exp(s)
        inv_l = pl.reciprocal(jnp.sum(p, axis=-1, keepdims=True), approx=True)
        p = p * inv_l
        # attention-weight dropout is identity (p=0.0)

        ctxb = jnp.einsum("nqk,nkd->nqd", p, vb,
                          preferred_element_type=jnp.float32)    # (H*B, T, hd)

        # Re-concatenate heads along lanes at static offsets, then ONE Wo matmul.
        for hh in range(num_heads):
            ctx_scr[:, :, hh * head_dim:(hh + 1) * head_dim] = \
                ctxb[hh * batch:(hh + 1) * batch]
        ctx = ctx_scr[...].reshape(bt, d)               # (B*T, D)

        attn_out = jnp.dot(_mm_cast(ctx), _mm_cast(wo_ref[...]),
                           preferred_element_type=jnp.float32) + bo_ref[...]

        # drop_shortcut is identity (p=0.0)
        x1 = x + attn_out                               # residual 1
        x1_scr[...] = x1
        h2_scr[...] = _layernorm(x1, ln2_s_ref[...], ln2_b_ref[...])
        ff_acc[...] = jnp.zeros_like(ff_acc)

    # ---------------- every step: one FF hidden-dim slice ---------------------
    # W1 column-block / W2 row-block for this step are auto-pipelined by the
    # BlockSpecs, so step 1's FF weights stream in under step 0's attention math.
    h2 = h2_scr[...]
    ffh = jnp.dot(_mm_cast(h2), _mm_cast(w1_ref[...]),
                  preferred_element_type=jnp.float32) + b1_ref[...]
    ffh = _gelu_tanh(ffh)
    ff_acc[...] += jnp.dot(_mm_cast(ffh), _mm_cast(w2_ref[...]),
                           preferred_element_type=jnp.float32)

    # ---------------- last step: residual 2 + single lane-dense store ---------
    @pl.when(kstep == pl.num_programs(0) - 1)
    def _finalize():
        out_ref[...] = (x1_scr[...] + ff_acc[...] + b2_ref[...]).astype(out_ref.dtype)


# ------------------------------- wrapper -------------------------------------
def transformer_block(x, params):
    B, T, D = x.shape
    H, hd, F = CFG["n_heads"], HEAD_DIM, FF_DIM
    (ln1s, ln1b, wq, bq, wk, bk, wv, bv, wo, bo,
     ln2s, ln2b, w1, b1, w2, b2) = params

    BT = B * T
    assert F % FF_SPLITS == 0
    Fh = F // FF_SPLITS              # 128 here: satisfies the (8,128) block rule

    # Fuse batch into matmul rows: all matmuls see a (B*T, D) LHS.
    xf = x.reshape(BT, D)

    def const_spec(shape):
        nd = len(shape)
        return pl.BlockSpec(shape, lambda k, nd=nd: (0,) * nd)

    in_specs = [
        const_spec((BT, D)),                         # x (flattened)
        const_spec((1, D)), const_spec((1, D)),      # ln1 scale/shift
        const_spec((D, D)), const_spec((1, D)),      # Wq, bq
        const_spec((D, D)), const_spec((1, D)),      # Wk, bk
        const_spec((D, D)), const_spec((1, D)),      # Wv, bv
        const_spec((D, D)), const_spec((1, D)),      # Wo, bo
        const_spec((1, D)), const_spec((1, D)),      # ln2 scale/shift
        pl.BlockSpec((D, Fh), lambda k: (0, k)),     # W1 column block
        pl.BlockSpec((1, Fh), lambda k: (0, k)),     # b1 block
        pl.BlockSpec((Fh, D), lambda k: (k, 0)),     # W2 row block
        const_spec((1, D)),                          # b2
    ]
    out_specs = pl.BlockSpec((BT, D), lambda k: (0, 0))

    scratch_shapes = [
        pltpu.VMEM((BT, D), jnp.float32),            # x1 (residual-1 carry)
        pltpu.VMEM((BT, D), jnp.float32),            # h2 = LN2(x1)
        pltpu.VMEM((BT, D), jnp.float32),            # FF accumulator
        pltpu.VMEM((H * B, T, hd), jnp.float32),     # q, head-batched
        pltpu.VMEM((H * B, T, hd), jnp.float32),     # k, head-batched
        pltpu.VMEM((H * B, T, hd), jnp.float32),     # v, head-batched
        pltpu.VMEM((B, T, D), jnp.float32),          # ctx, heads re-concatenated
    ]

    kernel = functools.partial(
        transformer_block_kernel,
        batch=B, seq=T, num_heads=H, head_dim=hd,
    )

    out = pl.pallas_call(
        kernel,
        out_shape=jax.ShapeDtypeStruct((BT, D), x.dtype),
        grid_spec=pltpu.PrefetchScalarGridSpec(
            num_scalar_prefetch=0,
            grid=(FF_SPLITS,),
            in_specs=in_specs,
            out_specs=out_specs,
            scratch_shapes=scratch_shapes,
        ),
        compiler_params=pltpu.CompilerParams(
            dimension_semantics=("arbitrary",)),      # carried FF accumulation
    )(xf, ln1s, ln1b, wq, bq, wk, bk, wv, bv, wo, bo, ln2s, ln2b, w1, b1, w2, b2)
    return out.reshape(B, T, D)


# ------------------------ deterministic parameter init -----------------------
def init_params(key, d, ff_dim):
    ks = jax.random.split(key, 6)
    w = lambda k, shape: (0.02 * jax.random.normal(k, shape)).astype(jnp.float32)
    zeros2 = lambda n: jnp.zeros((1, n), jnp.float32)
    ones2 = lambda n: jnp.ones((1, n), jnp.float32)
    params = [
        ones2(d), zeros2(d),            # ln1 scale/shift
        w(ks[0], (d, d)), zeros2(d),    # Wq, bq   (stored as (in,out))
        w(ks[1], (d, d)), zeros2(d),    # Wk, bk
        w(ks[2], (d, d)), zeros2(d),    # Wv, bv
        w(ks[3], (d, d)), zeros2(d),    # Wo, bo
        ones2(d), zeros2(d),            # ln2 scale/shift
        w(ks[4], (d, ff_dim)), zeros2(ff_dim),   # W1, b1
        w(ks[5], (ff_dim, d)), zeros2(d),        # W2, b2
    ]
    return params


# ------------------------------ pure-JAX reference ---------------------------
def reference(x, p):
    (ln1s, ln1b, wq, bq, wk, bk, wv, bv, wo, bo,
     ln2s, ln2b, w1, b1, w2, b2) = p
    B, T, D = x.shape
    H, Dh = CFG["n_heads"], HEAD_DIM

    def ln(v, s, b):
        m = v.mean(-1, keepdims=True)
        var = ((v - m) ** 2).mean(-1, keepdims=True)
        return (v - m) / jnp.sqrt(var + EPS) * s[0] + b[0]

    h = ln(x, ln1s, ln1b)
    q = (h @ wq + bq[0]).reshape(B, T, H, Dh).transpose(0, 2, 1, 3)
    k = (h @ wk + bk[0]).reshape(B, T, H, Dh).transpose(0, 2, 1, 3)
    v = (h @ wv + bv[0]).reshape(B, T, H, Dh).transpose(0, 2, 1, 3)
    s = jnp.einsum("bhqd,bhkd->bhqk", q, k) / math.sqrt(Dh)
    mask = jnp.triu(jnp.ones((T, T), bool), 1)
    s = jnp.where(mask, -jnp.inf, s)
    p_att = jax.nn.softmax(s, axis=-1)
    ctx = jnp.einsum("bhqk,bhkd->bhqd", p_att, v).transpose(0, 2, 1, 3).reshape(B, T, D)
    x1 = x + (ctx @ wo + bo[0])

    h2 = ln(x1, ln2s, ln2b)
    ff = h2 @ w1 + b1[0]
    ff = 0.5 * ff * (1 + jnp.tanh(jnp.sqrt(2 / jnp.pi) * (ff + 0.044715 * ff ** 3)))
    ff = ff @ w2 + b2[0]
    return x1 + ff


# ---------------------------------- main --------------------------------------
if __name__ == "__main__":
    key = jax.random.PRNGKey(0)
    kx, kp = jax.random.split(key)
    x = jax.random.uniform(kx, (BATCH, SEQ, CFG["emb_dim"]), dtype=jnp.float32)
    params = init_params(kp, CFG["emb_dim"], FF_DIM)

    out = jax.block_until_ready(transformer_block(x, params))
    ref = jax.block_until_ready(reference(x, params))

    assert out.shape == (BATCH, SEQ, CFG["emb_dim"])
    # Tolerance loosened slightly vs a pure-f32 check because the softmax
    # denominator uses the EUP approximate reciprocal (pl.reciprocal(approx=True)).
    np.testing.assert_allclose(np.asarray(out), np.asarray(ref), rtol=1e-3, atol=1e-3)

    print("KERNEL_OK")
</pallas_src>

<mosaic_0001>
module attributes {stable_mosaic.version = 11 : i64} {
  func.func @transformer_block_kernel(%arg0: i32, %arg1: memref<16x64xf32, #tpu.memory_space<vmem>>, %arg2: memref<1x64xf32, #tpu.memory_space<vmem>>, %arg3: memref<1x64xf32, #tpu.memory_space<vmem>>, %arg4: memref<64x64xf32, #tpu.memory_space<vmem>>, %arg5: memref<1x64xf32, #tpu.memory_space<vmem>>, %arg6: memref<64x64xf32, #tpu.memory_space<vmem>>, %arg7: memref<1x64xf32, #tpu.memory_space<vmem>>, %arg8: memref<64x64xf32, #tpu.memory_space<vmem>>, %arg9: memref<1x64xf32, #tpu.memory_space<vmem>>, %arg10: memref<64x64xf32, #tpu.memory_space<vmem>>, %arg11: memref<1x64xf32, #tpu.memory_space<vmem>>, %arg12: memref<1x64xf32, #tpu.memory_space<vmem>>, %arg13: memref<1x64xf32, #tpu.memory_space<vmem>>, %arg14: memref<64x128xf32, #tpu.memory_space<vmem>>, %arg15: memref<1x128xf32, #tpu.memory_space<vmem>>, %arg16: memref<128x64xf32, #tpu.memory_space<vmem>>, %arg17: memref<1x64xf32, #tpu.memory_space<vmem>>, %arg18: memref<16x64xf32, #tpu.memory_space<vmem>>, %arg19: memref<16x64xf32, #tpu.memory_space<vmem>>, %arg20: memref<16x64xf32, #tpu.memory_space<vmem>>, %arg21: memref<16x64xf32, #tpu.memory_space<vmem>>, %arg22: memref<8x8x16xf32, #tpu.memory_space<vmem>>, %arg23: memref<8x8x16xf32, #tpu.memory_space<vmem>>, %arg24: memref<8x8x16xf32, #tpu.memory_space<vmem>>, %arg25: memref<2x8x64xf32, #tpu.memory_space<vmem>>) attributes {dimension_semantics = [#tpu.dimension_semantics<arbitrary>], iteration_bounds = array<i64: 2>, scalar_prefetch = 0 : i64, scratch_operands = 7 : i64, tpu.core_type = #tpu.core_type<tc>, window_params = [{pipeline_mode = #tpu.pipeline_mode<synchronous>, transform_indices = @transform_0, window_bounds = array<i64: 16, 64>}, {pipeline_mode = #tpu.pipeline_mode<synchronous>, transform_indices = @transform_1, window_bounds = array<i64: 1, 64>}, {pipeline_mode = #tpu.pipeline_mode<synchronous>, transform_indices = @transform_2, window_bounds = array<i64: 1, 64>}, {pipeline_mode = #tpu.pipeline_mode<synchronous>, transform_indices = @transform_3, window_bounds = array<i64: 64, 64>}, {pipeline_mode = #tpu.pipeline_mode<synchronous>, transform_indices = @transform_4, window_bounds = array<i64: 1, 64>}, {pipeline_mode = #tpu.pipeline_mode<synchronous>, transform_indices = @transform_5, window_bounds = array<i64: 64, 64>}, {pipeline_mode = #tpu.pipeline_mode<synchronous>, transform_indices = @transform_6, window_bounds = array<i64: 1, 64>}, {pipeline_mode = #tpu.pipeline_mode<synchronous>, transform_indices = @transform_7, window_bounds = array<i64: 64, 64>}, {pipeline_mode = #tpu.pipeline_mode<synchronous>, transform_indices = @transform_8, window_bounds = array<i64: 1, 64>}, {pipeline_mode = #tpu.pipeline_mode<synchronous>, transform_indices = @transform_9, window_bounds = array<i64: 64, 64>}, {pipeline_mode = #tpu.pipeline_mode<synchronous>, transform_indices = @transform_10, window_bounds = array<i64: 1, 64>}, {pipeline_mode = #tpu.pipeline_mode<synchronous>, transform_indices = @transform_11, window_bounds = array<i64: 1, 64>}, {pipeline_mode = #tpu.pipeline_mode<synchronous>, transform_indices = @transform_12, window_bounds = array<i64: 1, 64>}, {transform_indices = @transform_13, window_bounds = array<i64: 64, 128>}, {transform_indices = @transform_14, window_bounds = array<i64: 1, 128>}, {transform_indices = @transform_15, window_bounds = array<i64: 128, 64>}, {pipeline_mode = #tpu.pipeline_mode<synchronous>, transform_indices = @transform_16, window_bounds = array<i64: 1, 64>}, {pipeline_mode = #tpu.pipeline_mode<synchronous>, transform_indices = @transform_17, window_bounds = array<i64: 16, 64>}]} {
    %c0_i32 = arith.constant 0 : i32
    %0 = arith.cmpi eq, %arg0, %c0_i32 : i32
    %1 = arith.extui %0 : i1 to i32
    %c0_i32_0 = arith.constant 0 : i32
    %2 = arith.cmpi ne, %1, %c0_i32_0 : i32
    scf.if %2 {
      %c0_18 = arith.constant 0 : index
      %c0_19 = arith.constant 0 : index
      %30 = vector.load %arg1[%c0_18, %c0_19] : memref<16x64xf32, #tpu.memory_space<vmem>>, vector<16x64xf32>
      %c0_20 = arith.constant 0 : index
      %c0_21 = arith.constant 0 : index
      %31 = vector.load %arg2[%c0_20, %c0_21] : memref<1x64xf32, #tpu.memory_space<vmem>>, vector<1x64xf32>
      %c0_22 = arith.constant 0 : index
      %c0_23 = arith.constant 0 : index
      %32 = vector.load %arg3[%c0_22, %c0_23] : memref<1x64xf32, #tpu.memory_space<vmem>>, vector<1x64xf32>
      %cst_24 = arith.constant dense<0.000000e+00> : vector<16xf32>
      %33 = vector.multi_reduction <add>, %30, %cst_24 [1] : vector<16x64xf32> to vector<16xf32>
      %34 = vector.shape_cast %33 : vector<16xf32> to vector<16x1xf32>
      %cst_25 = arith.constant 6.400000e+01 : f32
      %35 = vector.broadcast %cst_25 : f32 to vector<16x1xf32>
      %36 = arith.divf %34, %35 : vector<16x1xf32>
      %37 = vector.broadcast %36 : vector<16x1xf32> to vector<16x64xf32>
      %38 = arith.subf %30, %37 : vector<16x64xf32>
      %39 = arith.mulf %38, %38 : vector<16x64xf32>
      %cst_26 = arith.constant dense<0.000000e+00> : vector<16xf32>
      %40 = vector.multi_reduction <add>, %39, %cst_26 [1] : vector<16x64xf32> to vector<16xf32>
      %41 = vector.shape_cast %40 : vector<16xf32> to vector<16x1xf32>
      %cst_27 = arith.constant 6.400000e+01 : f32
      %42 = vector.broadcast %cst_27 : f32 to vector<16x1xf32>
      %43 = arith.divf %41, %42 : vector<16x1xf32>
      %cst_28 = arith.constant 9.99999974E-6 : f32
      %44 = vector.broadcast %cst_28 : f32 to vector<16x1xf32>
      %45 = arith.addf %43, %44 : vector<16x1xf32>
      %46 = math.rsqrt %45 : vector<16x1xf32>
      %47 = vector.broadcast %46 : vector<16x1xf32> to vector<16x64xf32>
      %48 = arith.mulf %38, %47 : vector<16x64xf32>
      %49 = vector.broadcast %31 : vector<1x64xf32> to vector<16x64xf32>
      %50 = arith.mulf %48, %49 : vector<16x64xf32>
      %51 = vector.broadcast %32 : vector<1x64xf32> to vector<16x64xf32>
      %52 = arith.addf %50, %51 : vector<16x64xf32>
      %c0_29 = arith.constant 0 : index
      %c0_30 = arith.constant 0 : index
      %53 = vector.load %arg4[%c0_29, %c0_30] : memref<64x64xf32, #tpu.memory_space<vmem>>, vector<64x64xf32>
      %cst_31 = arith.constant dense<0.000000e+00> : vector<16x64xf32>
      %54 = tpu.matmul %52, %53, %cst_31 {dimension_numbers = #tpu.dot_dimension_numbers<[1], [0], [0], [1], [0, 0, 1, 1], [], []>} : vector<16x64xf32>, vector<64x64xf32>, vector<16x64xf32> -> vector<16x64xf32>
      %c0_32 = arith.constant 0 : index
      %c0_33 = arith.constant 0 : index
      %55 = vector.load %arg5[%c0_32, %c0_33] : memref<1x64xf32, #tpu.memory_space<vmem>>, vector<1x64xf32>
      %56 = vector.broadcast %55 : vector<1x64xf32> to vector<16x64xf32>
      %57 = arith.addf %54, %56 : vector<16x64xf32>
      %c0_34 = arith.constant 0 : index
      %c0_35 = arith.constant 0 : index
      %58 = vector.load %arg6[%c0_34, %c0_35] : memref<64x64xf32, #tpu.memory_space<vmem>>, vector<64x64xf32>
      %cst_36 = arith.constant dense<0.000000e+00> : vector<16x64xf32>
      %59 = tpu.matmul %52, %58, %cst_36 {dimension_numbers = #tpu.dot_dimension_numbers<[1], [0], [0], [1], [0, 0, 1, 1], [], []>} : vector<16x64xf32>, vector<64x64xf32>, vector<16x64xf32> -> vector<16x64xf32>
      %c0_37 = arith.constant 0 : index
      %c0_38 = arith.constant 0 : index
      %60 = vector.load %arg7[%c0_37, %c0_38] : memref<1x64xf32, #tpu.memory_space<vmem>>, vector<1x64xf32>
      %61 = vector.broadcast %60 : vector<1x64xf32> to vector<16x64xf32>
      %62 = arith.addf %59, %61 : vector<16x64xf32>
      %c0_39 = arith.constant 0 : index
      %c0_40 = arith.constant 0 : index
      %63 = vector.load %arg8[%c0_39, %c0_40] : memref<64x64xf32, #tpu.memory_space<vmem>>, vector<64x64xf32>
      %cst_41 = arith.constant dense<0.000000e+00> : vector<16x64xf32>
      %64 = tpu.matmul %52, %63, %cst_41 {dimension_numbers = #tpu.dot_dimension_numbers<[1], [0], [0], [1], [0, 0, 1, 1], [], []>} : vector<16x64xf32>, vector<64x64xf32>, vector<16x64xf32> -> vector<16x64xf32>
      %c0_42 = arith.constant 0 : index
      %c0_43 = arith.constant 0 : index
      %65 = vector.load %arg9[%c0_42, %c0_43] : memref<1x64xf32, #tpu.memory_space<vmem>>, vector<1x64xf32>
      %66 = vector.broadcast %65 : vector<1x64xf32> to vector<16x64xf32>
      %67 = arith.addf %64, %66 : vector<16x64xf32>
      %68 = vector.shape_cast %57 : vector<16x64xf32> to vector<2x8x64xf32>
      %69 = vector.shape_cast %62 : vector<16x64xf32> to vector<2x8x64xf32>
      %70 = vector.shape_cast %67 : vector<16x64xf32> to vector<2x8x64xf32>
      %71 = vector.extract_strided_slice %68 {offsets = [0, 0, 0], sizes = [2, 8, 16], strides = [1, 1, 1]} : vector<2x8x64xf32> to vector<2x8x16xf32>
      %c0_44 = arith.constant 0 : index
      %c0_45 = arith.constant 0 : index
      %c0_46 = arith.constant 0 : index
      %72 = vector.load %arg22[%c0_44, %c0_45, %c0_46] : memref<8x8x16xf32, #tpu.memory_space<vmem>>, vector<2x8x16xf32>
      tpu.vector_store %arg22[%c0_44, %c0_45, %c0_46], %71 {strides = array<i32>} : memref<8x8x16xf32, #tpu.memory_space<vmem>>, vector<2x8x16xf32>,
      %73 = vector.extract_strided_slice %69 {offsets = [0, 0, 0], sizes = [2, 8, 16], strides = [1, 1, 1]} : vector<2x8x64xf32> to vector<2x8x16xf32>
      %c0_47 = arith.constant 0 : index
      %c0_48 = arith.constant 0 : index
      %c0_49 = arith.constant 0 : index
      %74 = vector.load %arg23[%c0_47, %c0_48, %c0_49] : memref<8x8x16xf32, #tpu.memory_space<vmem>>, vector<2x8x16xf32>
      tpu.vector_store %arg23[%c0_47, %c0_48, %c0_49], %73 {strides = array<i32>} : memref<8x8x16xf32, #tpu.memory_space<vmem>>, vector<2x8x16xf32>,
      %75 = vector.extract_strided_slice %70 {offsets = [0, 0, 0], sizes = [2, 8, 16], strides = [1, 1, 1]} : vector<2x8x64xf32> to vector<2x8x16xf32>
      %c0_50 = arith.constant 0 : index
      %c0_51 = arith.constant 0 : index
      %c0_52 = arith.constant 0 : index
      %76 = vector.load %arg24[%c0_50, %c0_51, %c0_52] : memref<8x8x16xf32, #tpu.memory_space<vmem>>, vector<2x8x16xf32>
      tpu.vector_store %arg24[%c0_50, %c0_51, %c0_52], %75 {strides = array<i32>} : memref<8x8x16xf32, #tpu.memory_space<vmem>>, vector<2x8x16xf32>,
      %77 = vector.extract_strided_slice %68 {offsets = [0, 0, 16], sizes = [2, 8, 16], strides = [1, 1, 1]} : vector<2x8x64xf32> to vector<2x8x16xf32>
      %c2 = arith.constant 2 : index
      %c0_53 = arith.constant 0 : index
      %c0_54 = arith.constant 0 : index
      %78 = vector.load %arg22[%c2, %c0_53, %c0_54] : memref<8x8x16xf32, #tpu.memory_space<vmem>>, vector<2x8x16xf32>
      tpu.vector_store %arg22[%c2, %c0_53, %c0_54], %77 {strides = array<i32>} : memref<8x8x16xf32, #tpu.memory_space<vmem>>, vector<2x8x16xf32>,
      %79 = vector.extract_strided_slice %69 {offsets = [0, 0, 16], sizes = [2, 8, 16], strides = [1, 1, 1]} : vector<2x8x64xf32> to vector<2x8x16xf32>
      %c2_55 = arith.constant 2 : index
      %c0_56 = arith.constant 0 : index
      %c0_57 = arith.constant 0 : index
      %80 = vector.load %arg23[%c2_55, %c0_56, %c0_57] : memref<8x8x16xf32, #tpu.memory_space<vmem>>, vector<2x8x16xf32>
      tpu.vector_store %arg23[%c2_55, %c0_56, %c0_57], %79 {strides = array<i32>} : memref<8x8x16xf32, #tpu.memory_space<vmem>>, vector<2x8x16xf32>,
      %81 = vector.extract_strided_slice %70 {offsets = [0, 0, 16], sizes = [2, 8, 16], strides = [1, 1, 1]} : vector<2x8x64xf32> to vector<2x8x16xf32>
      %c2_58 = arith.constant 2 : index
      %c0_59 = arith.constant 0 : index
      %c0_60 = arith.constant 0 : index
      %82 = vector.load %arg24[%c2_58, %c0_59, %c0_60] : memref<8x8x16xf32, #tpu.memory_space<vmem>>, vector<2x8x16xf32>
      tpu.vector_store %arg24[%c2_58, %c0_59, %c0_60], %81 {strides = array<i32>} : memref<8x8x16xf32, #tpu.memory_space<vmem>>, vector<2x8x16xf32>,
      %83 = vector.extract_strided_slice %68 {offsets = [0, 0, 32], sizes = [2, 8, 16], strides = [1, 1, 1]} : vector<2x8x64xf32> to vector<2x8x16xf32>
      %c4 = arith.constant 4 : index
      %c0_61 = arith.constant 0 : index
      %c0_62 = arith.constant 0 : index
      %84 = vector.load %arg22[%c4, %c0_61, %c0_62] : memref<8x8x16xf32, #tpu.memory_space<vmem>>, vector<2x8x16xf32>
      tpu.vector_store %arg22[%c4, %c0_61, %c0_62], %83 {strides = array<i32>} : memref<8x8x16xf32, #tpu.memory_space<vmem>>, vector<2x8x16xf32>,
      %85 = vector.extract_strided_slice %69 {offsets = [0, 0, 32], sizes = [2, 8, 16], strides = [1, 1, 1]} : vector<2x8x64xf32> to vector<2x8x16xf32>
      %c4_63 = arith.constant 4 : index
      %c0_64 = arith.constant 0 : index
      %c0_65 = arith.constant 0 : index
      %86 = vector.load %arg23[%c4_63, %c0_64, %c0_65] : memref<8x8x16xf32, #tpu.memory_space<vmem>>, vector<2x8x16xf32>
      tpu.vector_store %arg23[%c4_63, %c0_64, %c0_65], %85 {strides = array<i32>} : memref<8x8x16xf32, #tpu.memory_space<vmem>>, vector<2x8x16xf32>,
      %87 = vector.extract_strided_slice %70 {offsets = [0, 0, 32], sizes = [2, 8, 16], strides = [1, 1, 1]} : vector<2x8x64xf32> to vector<2x8x16xf32>
      %c4_66 = arith.constant 4 : index
      %c0_67 = arith.constant 0 : index
      %c0_68 = arith.constant 0 : index
      %88 = vector.load %arg24[%c4_66, %c0_67, %c0_68] : memref<8x8x16xf32, #tpu.memory_space<vmem>>, vector<2x8x16xf32>
      tpu.vector_store %arg24[%c4_66, %c0_67, %c0_68], %87 {strides = array<i32>} : memref<8x8x16xf32, #tpu.memory_space<vmem>>, vector<2x8x16xf32>,
      %89 = vector.extract_strided_slice %68 {offsets = [0, 0, 48], sizes = [2, 8, 16], strides = [1, 1, 1]} : vector<2x8x64xf32> to vector<2x8x16xf32>
      %c6 = arith.constant 6 : index
      %c0_69 = arith.constant 0 : index
      %c0_70 = arith.constant 0 : index
      %90 = vector.load %arg22[%c6, %c0_69, %c0_70] : memref<8x8x16xf32, #tpu.memory_space<vmem>>, vector<2x8x16xf32>
      tpu.vector_store %arg22[%c6, %c0_69, %c0_70], %89 {strides = array<i32>} : memref<8x8x16xf32, #tpu.memory_space<vmem>>, vector<2x8x16xf32>,
      %91 = vector.extract_strided_slice %69 {offsets = [0, 0, 48], sizes = [2, 8, 16], strides = [1, 1, 1]} : vector<2x8x64xf32> to vector<2x8x16xf32>
      %c6_71 = arith.constant 6 : index
      %c0_72 = arith.constant 0 : index
      %c0_73 = arith.constant 0 : index
      %92 = vector.load %arg23[%c6_71, %c0_72, %c0_73] : memref<8x8x16xf32, #tpu.memory_space<vmem>>, vector<2x8x16xf32>
      tpu.vector_store %arg23[%c6_71, %c0_72, %c0_73], %91 {strides = array<i32>} : memref<8x8x16xf32, #tpu.memory_space<vmem>>, vector<2x8x16xf32>,
      %93 = vector.extract_strided_slice %70 {offsets = [0, 0, 48], sizes = [2, 8, 16], strides = [1, 1, 1]} : vector<2x8x64xf32> to vector<2x8x16xf32>
      %c6_74 = arith.constant 6 : index
      %c0_75 = arith.constant 0 : index
      %c0_76 = arith.constant 0 : index
      %94 = vector.load %arg24[%c6_74, %c0_75, %c0_76] : memref<8x8x16xf32, #tpu.memory_space<vmem>>, vector<2x8x16xf32>
      tpu.vector_store %arg24[%c6_74, %c0_75, %c0_76], %93 {strides = array<i32>} : memref<8x8x16xf32, #tpu.memory_space<vmem>>, vector<2x8x16xf32>,
      %c0_77 = arith.constant 0 : index
      %c0_78 = arith.constant 0 : index
      %c0_79 = arith.constant 0 : index
      %95 = vector.load %arg22[%c0_77, %c0_78, %c0_79] : memref<8x8x16xf32, #tpu.memory_space<vmem>>, vector<8x8x16xf32>
      %c0_80 = arith.constant 0 : index
      %c0_81 = arith.constant 0 : index
      %c0_82 = arith.constant 0 : index
      %96 = vector.load %arg23[%c0_80, %c0_81, %c0_82] : memref<8x8x16xf32, #tpu.memory_space<vmem>>, vector<8x8x16xf32>
      %c0_83 = arith.constant 0 : index
      %c0_84 = arith.constant 0 : index
      %c0_85 = arith.constant 0 : index
      %97 = vector.load %arg24[%c0_83, %c0_84, %c0_85] : memref<8x8x16xf32, #tpu.memory_space<vmem>>, vector<8x8x16xf32>
      %98 = tpu.iota {dimensions = array<i32: 0>} : vector<8x8xi32>
      %99 = tpu.iota {dimensions = array<i32: 1>} : vector<8x8xi32>
      %100 = arith.cmpi sgt, %99, %98 : vector<8x8xi32>
      %101 = vector.shape_cast %100 : vector<8x8xi1> to vector<1x8x8xi1>
      "tpu.trace_start"() <{level = 10 : i32, message = "nqd,nkd->nqk"}> : () -> ()
      %cst_86 = arith.constant dense<0.000000e+00> : vector<8x8x8xf32>
      %102 = tpu.matmul %95, %96, %cst_86 {dimension_numbers = #tpu.dot_dimension_numbers<[2], [2], [1], [1], [0, 0, 0, 1, 1, 1], [0], [0]>} : vector<8x8x16xf32>, vector<8x8x16xf32>, vector<8x8x8xf32> -> vector<8x8x8xf32>
      "tpu.trace_stop"() : () -> ()
      %cst_87 = arith.constant 2.500000e-01 : f32
      %103 = vector.broadcast %cst_87 : f32 to vector<8x8x8xf32>
      %104 = arith.mulf %102, %103 : vector<8x8x8xf32>
      %cst_88 = arith.constant -1.000000e+30 : f32
      %105 = vector.shape_cast %101 : vector<1x8x8xi1> to vector<1x8x8xi1>
      %106 = vector.broadcast %105 : vector<1x8x8xi1> to vector<8x8x8xi1>
      %107 = vector.broadcast %cst_88 : f32 to vector<8x8x8xf32>
      %108 = arith.select %106, %107, %104 : vector<8x8x8xi1>, vector<8x8x8xf32>
      %cst_89 = arith.constant dense<0xFF800000> : vector<8x8xf32>
      %109 = vector.multi_reduction <maximumf>, %108, %cst_89 [2] : vector<8x8x8xf32> to vector<8x8xf32>
      %110 = vector.shape_cast %109 : vector<8x8xf32> to vector<8x8x1xf32>
      %111 = vector.broadcast %110 : vector<8x8x1xf32> to vector<8x8x8xf32>
      %112 = arith.subf %108, %111 : vector<8x8x8xf32>
      %113 = math.exp %112 : vector<8x8x8xf32>
      %cst_90 = arith.constant dense<0.000000e+00> : vector<8x8xf32>
      %114 = vector.multi_reduction <add>, %113, %cst_90 [2] : vector<8x8x8xf32> to vector<8x8xf32>
      %115 = vector.shape_cast %114 : vector<8x8xf32> to vector<8x8x1xf32>
      %116 = tpu.reciprocal %115 {approx = true} : vector<8x8x1xf32> -> vector<8x8x1xf32>
      %117 = vector.broadcast %116 : vector<8x8x1xf32> to vector<8x8x8xf32>
      %118 = arith.mulf %113, %117 : vector<8x8x8xf32>
      "tpu.trace_start"() <{level = 10 : i32, message = "nqk,nkd->nqd"}> : () -> ()
      %cst_91 = arith.constant dense<0.000000e+00> : vector<8x8x16xf32>
      %119 = tpu.matmul %118, %97, %cst_91 {dimension_numbers = #tpu.dot_dimension_numbers<[2], [1], [1], [2], [0, 0, 0, 1, 1, 2], [0], [0]>} : vector<8x8x8xf32>, vector<8x8x16xf32>, vector<8x8x16xf32> -> vector<8x8x16xf32>
      "tpu.trace_stop"() : () -> ()
      %120 = vector.extract_strided_slice %119 {offsets = [0, 0, 0], sizes = [2, 8, 16], strides = [1, 1, 1]} : vector<8x8x16xf32> to vector<2x8x16xf32>
      %c0_92 = arith.constant 0 : index
      %c0_93 = arith.constant 0 : index
      %c0_94 = arith.constant 0 : index
      %121 = vector.load %arg25[%c0_92, %c0_93, %c0_94] : memref<2x8x64xf32, #tpu.memory_space<vmem>>, vector<2x8x16xf32>
      tpu.vector_store %arg25[%c0_92, %c0_93, %c0_94], %120 {strides = array<i32>} : memref<2x8x64xf32, #tpu.memory_space<vmem>>, vector<2x8x16xf32>,
      %122 = vector.extract_strided_slice %119 {offsets = [2, 0, 0], sizes = [2, 8, 16], strides = [1, 1, 1]} : vector<8x8x16xf32> to vector<2x8x16xf32>
      %c0_95 = arith.constant 0 : index
      %c0_96 = arith.constant 0 : index
      %c16 = arith.constant 16 : index
      %123 = vector.load %arg25[%c0_95, %c0_96, %c16] : memref<2x8x64xf32, #tpu.memory_space<vmem>>, vector<2x8x16xf32>
      tpu.vector_store %arg25[%c0_95, %c0_96, %c16], %122 {strides = array<i32>} : memref<2x8x64xf32, #tpu.memory_space<vmem>>, vector<2x8x16xf32>,
      %124 = vector.extract_strided_slice %119 {offsets = [4, 0, 0], sizes = [2, 8, 16], strides = [1, 1, 1]} : vector<8x8x16xf32> to vector<2x8x16xf32>
      %c0_97 = arith.constant 0 : index
      %c0_98 = arith.constant 0 : index
      %c32 = arith.constant 32 : index
      %125 = vector.load %arg25[%c0_97, %c0_98, %c32] : memref<2x8x64xf32, #tpu.memory_space<vmem>>, vector<2x8x16xf32>
      tpu.vector_store %arg25[%c0_97, %c0_98, %c32], %124 {strides = array<i32>} : memref<2x8x64xf32, #tpu.memory_space<vmem>>, vector<2x8x16xf32>,
      %126 = vector.extract_strided_slice %119 {offsets = [6, 0, 0], sizes = [2, 8, 16], strides = [1, 1, 1]} : vector<8x8x16xf32> to vector<2x8x16xf32>
      %c0_99 = arith.constant 0 : index
      %c0_100 = arith.constant 0 : index
      %c48 = arith.constant 48 : index
      %127 = vector.load %arg25[%c0_99, %c0_100, %c48] : memref<2x8x64xf32, #tpu.memory_space<vmem>>, vector<2x8x16xf32>
      tpu.vector_store %arg25[%c0_99, %c0_100, %c48], %126 {strides = array<i32>} : memref<2x8x64xf32, #tpu.memory_space<vmem>>, vector<2x8x16xf32>,
      %c0_101 = arith.constant 0 : index
      %c0_102 = arith.constant 0 : index
      %c0_103 = arith.constant 0 : index
      %128 = vector.load %arg25[%c0_101, %c0_102, %c0_103] : memref<2x8x64xf32, #tpu.memory_space<vmem>>, vector<2x8x64xf32>
      %129 = vector.shape_cast %128 : vector<2x8x64xf32> to vector<16x64xf32>
      %c0_104 = arith.constant 0 : index
      %c0_105 = arith.constant 0 : index
      %130 = vector.load %arg10[%c0_104, %c0_105] : memref<64x64xf32, #tpu.memory_space<vmem>>, vector<64x64xf32>
      %cst_106 = arith.constant dense<0.000000e+00> : vector<16x64xf32>
      %131 = tpu.matmul %129, %130, %cst_106 {dimension_numbers = #tpu.dot_dimension_numbers<[1], [0], [0], [1], [0, 0, 1, 1], [], []>} : vector<16x64xf32>, vector<64x64xf32>, vector<16x64xf32> -> vector<16x64xf32>
      %c0_107 = arith.constant 0 : index
      %c0_108 = arith.constant 0 : index
      %132 = vector.load %arg11[%c0_107, %c0_108] : memref<1x64xf32, #tpu.memory_space<vmem>>, vector<1x64xf32>
      %133 = vector.broadcast %132 : vector<1x64xf32> to vector<16x64xf32>
      %134 = arith.addf %131, %133 : vector<16x64xf32>
      %135 = arith.addf %30, %134 : vector<16x64xf32>
      %c0_109 = arith.constant 0 : index
      %c0_110 = arith.constant 0 : index
      %136 = vector.load %arg19[%c0_109, %c0_110] : memref<16x64xf32, #tpu.memory_space<vmem>>, vector<16x64xf32>
      tpu.vector_store %arg19[%c0_109, %c0_110], %135 {strides = array<i32>} : memref<16x64xf32, #tpu.memory_space<vmem>>, vector<16x64xf32>,
      %c0_111 = arith.constant 0 : index
      %c0_112 = arith.constant 0 : index
      %137 = vector.load %arg12[%c0_111, %c0_112] : memref<1x64xf32, #tpu.memory_space<vmem>>, vector<1x64xf32>
      %c0_113 = arith.constant 0 : index
      %c0_114 = arith.constant 0 : index
      %138 = vector.load %arg13[%c0_113, %c0_114] : memref<1x64xf32, #tpu.memory_space<vmem>>, vector<1x64xf32>
      %cst_115 = arith.constant dense<0.000000e+00> : vector<16xf32>
      %139 = vector.multi_reduction <add>, %135, %cst_115 [1] : vector<16x64xf32> to vector<16xf32>
      %140 = vector.shape_cast %139 : vector<16xf32> to vector<16x1xf32>
      %cst_116 = arith.constant 6.400000e+01 : f32
      %141 = vector.broadcast %cst_116 : f32 to vector<16x1xf32>
      %142 = arith.divf %140, %141 : vector<16x1xf32>
      %143 = vector.broadcast %142 : vector<16x1xf32> to vector<16x64xf32>
      %144 = arith.subf %135, %143 : vector<16x64xf32>
      %145 = arith.mulf %144, %144 : vector<16x64xf32>
      %cst_117 = arith.constant dense<0.000000e+00> : vector<16xf32>
      %146 = vector.multi_reduction <add>, %145, %cst_117 [1] : vector<16x64xf32> to vector<16xf32>
      %147 = vector.shape_cast %146 : vector<16xf32> to vector<16x1xf32>
      %cst_118 = arith.constant 6.400000e+01 : f32
      %148 = vector.broadcast %cst_118 : f32 to vector<16x1xf32>
      %149 = arith.divf %147, %148 : vector<16x1xf32>
      %cst_119 = arith.constant 9.99999974E-6 : f32
      %150 = vector.broadcast %cst_119 : f32 to vector<16x1xf32>
      %151 = arith.addf %149, %150 : vector<16x1xf32>
      %152 = math.rsqrt %151 : vector<16x1xf32>
      %153 = vector.broadcast %152 : vector<16x1xf32> to vector<16x64xf32>
      %154 = arith.mulf %144, %153 : vector<16x64xf32>
      %155 = vector.broadcast %137 : vector<1x64xf32> to vector<16x64xf32>
      %156 = arith.mulf %154, %155 : vector<16x64xf32>
      %157 = vector.broadcast %138 : vector<1x64xf32> to vector<16x64xf32>
      %158 = arith.addf %156, %157 : vector<16x64xf32>
      %c0_120 = arith.constant 0 : index
      %c0_121 = arith.constant 0 : index
      %159 = vector.load %arg20[%c0_120, %c0_121] : memref<16x64xf32, #tpu.memory_space<vmem>>, vector<16x64xf32>
      tpu.vector_store %arg20[%c0_120, %c0_121], %158 {strides = array<i32>} : memref<16x64xf32, #tpu.memory_space<vmem>>, vector<16x64xf32>,
      %cst_122 = arith.constant 0.000000e+00 : f32
      %160 = vector.broadcast %cst_122 : f32 to vector<16x64xf32>
      %c0_123 = arith.constant 0 : index
      %c0_124 = arith.constant 0 : index
      %161 = vector.load %arg21[%c0_123, %c0_124] : memref<16x64xf32, #tpu.memory_space<vmem>>, vector<16x64xf32>
      tpu.vector_store %arg21[%c0_123, %c0_124], %160 {strides = array<i32>} : memref<16x64xf32, #tpu.memory_space<vmem>>, vector<16x64xf32>,
    } else {
    }
    %c0 = arith.constant 0 : index
    %c0_1 = arith.constant 0 : index
    %3 = vector.load %arg20[%c0, %c0_1] : memref<16x64xf32, #tpu.memory_space<vmem>>, vector<16x64xf32>
    %c0_2 = arith.constant 0 : index
    %c0_3 = arith.constant 0 : index
    %4 = vector.load %arg14[%c0_2, %c0_3] : memref<64x128xf32, #tpu.memory_space<vmem>>, vector<64x128xf32>
    %cst = arith.constant dense<0.000000e+00> : vector<16x128xf32>
    %5 = tpu.matmul %3, %4, %cst {dimension_numbers = #tpu.dot_dimension_numbers<[1], [0], [0], [1], [0, 0, 1, 1], [], []>} : vector<16x64xf32>, vector<64x128xf32>, vector<16x128xf32> -> vector<16x128xf32>
    %c0_4 = arith.constant 0 : index
    %c0_5 = arith.constant 0 : index
    %6 = vector.load %arg15[%c0_4, %c0_5] : memref<1x128xf32, #tpu.memory_space<vmem>>, vector<1x128xf32>
    %7 = vector.broadcast %6 : vector<1x128xf32> to vector<16x128xf32>
    %8 = arith.addf %5, %7 : vector<16x128xf32>
    %cst_6 = arith.constant 5.000000e-01 : f32
    %9 = vector.broadcast %cst_6 : f32 to vector<16x128xf32>
    %10 = arith.mulf %9, %8 : vector<16x128xf32>
    %11 = arith.mulf %8, %8 : vector<16x128xf32>
    %12 = arith.mulf %11, %8 : vector<16x128xf32>
    %cst_7 = arith.constant 4.471500e-02 : f32
    %13 = vector.broadcast %cst_7 : f32 to vector<16x128xf32>
    %14 = arith.mulf %13, %12 : vector<16x128xf32>
    %15 = arith.addf %8, %14 : vector<16x128xf32>
    %cst_8 = arith.constant 0.797884583 : f32
    %16 = vector.broadcast %cst_8 : f32 to vector<16x128xf32>
    %17 = arith.mulf %16, %15 : vector<16x128xf32>
    %18 = math.tanh %17 : vector<16x128xf32>
    %cst_9 = arith.constant 1.000000e+00 : f32
    %19 = vector.broadcast %cst_9 : f32 to vector<16x128xf32>
    %20 = arith.addf %19, %18 : vector<16x128xf32>
    %21 = arith.mulf %10, %20 : vector<16x128xf32>
    %c0_10 = arith.constant 0 : index
    %c0_11 = arith.constant 0 : index
    %22 = vector.load %arg21[%c0_10, %c0_11] : memref<16x64xf32, #tpu.memory_space<vmem>>, vector<16x64xf32>
    %c0_12 = arith.constant 0 : index
    %c0_13 = arith.constant 0 : index
    %23 = vector.load %arg16[%c0_12, %c0_13] : memref<128x64xf32, #tpu.memory_space<vmem>>, vector<128x64xf32>
    %cst_14 = arith.constant dense<0.000000e+00> : vector<16x64xf32>
    %24 = tpu.matmul %21, %23, %cst_14 {dimension_numbers = #tpu.dot_dimension_numbers<[1], [0], [0], [1], [0, 0, 1, 1], [], []>} : vector<16x128xf32>, vector<128x64xf32>, vector<16x64xf32> -> vector<16x64xf32>
    %25 = arith.addf %22, %24 : vector<16x64xf32>
    %c0_15 = arith.constant 0 : index
    %c0_16 = arith.constant 0 : index
    %26 = vector.load %arg21[%c0_15, %c0_16] : memref<16x64xf32, #tpu.memory_space<vmem>>, vector<16x64xf32>
    tpu.vector_store %arg21[%c0_15, %c0_16], %25 {strides = array<i32>} : memref<16x64xf32, #tpu.memory_space<vmem>>, vector<16x64xf32>,
    %c1_i32 = arith.constant 1 : i32
    %27 = arith.cmpi eq, %arg0, %c1_i32 : i32
    %28 = arith.extui %27 : i1 to i32
    %c0_i32_17 = arith.constant 0 : i32
    %29 = arith.cmpi ne, %28, %c0_i32_17 : i32
    scf.if %29 {
      %c0_18 = arith.constant 0 : index
      %c0_19 = arith.constant 0 : index
      %30 = vector.load %arg19[%c0_18, %c0_19] : memref<16x64xf32, #tpu.memory_space<vmem>>, vector<16x64xf32>
      %c0_20 = arith.constant 0 : index
      %c0_21 = arith.constant 0 : index
      %31 = vector.load %arg21[%c0_20, %c0_21] : memref<16x64xf32, #tpu.memory_space<vmem>>, vector<16x64xf32>
      %32 = arith.addf %30, %31 : vector<16x64xf32>
      %c0_22 = arith.constant 0 : index
      %c0_23 = arith.constant 0 : index
      %33 = vector.load %arg17[%c0_22, %c0_23] : memref<1x64xf32, #tpu.memory_space<vmem>>, vector<1x64xf32>
      %34 = vector.broadcast %33 : vector<1x64xf32> to vector<16x64xf32>
      %35 = arith.addf %32, %34 : vector<16x64xf32>
      %c0_24 = arith.constant 0 : index
      %c0_25 = arith.constant 0 : index
      %36 = vector.load %arg18[%c0_24, %c0_25] : memref<16x64xf32, #tpu.memory_space<vmem>>, vector<16x64xf32>
      tpu.vector_store %arg18[%c0_24, %c0_25], %35 {strides = array<i32>} : memref<16x64xf32, #tpu.memory_space<vmem>>, vector<16x64xf32>,
    } else {
    }
    return
  }
  func.func @transform_0(%arg0: i32) -> (i32, i32) {
    %c0_i32 = arith.constant 0 : i32
    %c0_i32_0 = arith.constant 0 : i32
    %c0_i32_1 = arith.constant 0 : i32
    return %c0_i32, %c0_i32_0 : i32, i32
  }
  func.func @transform_1(%arg0: i32) -> (i32, i32) {
    %c0_i32 = arith.constant 0 : i32
    %c0_i32_0 = arith.constant 0 : i32
    %c0_i32_1 = arith.constant 0 : i32
    return %c0_i32, %c0_i32_0 : i32, i32
  }
  func.func @transform_2(%arg0: i32) -> (i32, i32) {
    %c0_i32 = arith.constant 0 : i32
    %c0_i32_0 = arith.constant 0 : i32
    %c0_i32_1 = arith.constant 0 : i32
    return %c0_i32, %c0_i32_0 : i32, i32
  }
  func.func @transform_3(%arg0: i32) -> (i32, i32) {
    %c0_i32 = arith.constant 0 : i32
    %c0_i32_0 = arith.constant 0 : i32
    %c0_i32_1 = arith.constant 0 : i32
    return %c0_i32, %c0_i32_0 : i32, i32
  }
  func.func @transform_4(%arg0: i32) -> (i32, i32) {
    %c0_i32 = arith.constant 0 : i32
    %c0_i32_0 = arith.constant 0 : i32
    %c0_i32_1 = arith.constant 0 : i32
    return %c0_i32, %c0_i32_0 : i32, i32
  }
  func.func @transform_5(%arg0: i32) -> (i32, i32) {
    %c0_i32 = arith.constant 0 : i32
    %c0_i32_0 = arith.constant 0 : i32
    %c0_i32_1 = arith.constant 0 : i32
    return %c0_i32, %c0_i32_0 : i32, i32
  }
  func.func @transform_6(%arg0: i32) -> (i32, i32) {
    %c0_i32 = arith.constant 0 : i32
    %c0_i32_0 = arith.constant 0 : i32
    %c0_i32_1 = arith.constant 0 : i32
    return %c0_i32, %c0_i32_0 : i32, i32
  }
  func.func @transform_7(%arg0: i32) -> (i32, i32) {
    %c0_i32 = arith.constant 0 : i32
    %c0_i32_0 = arith.constant 0 : i32
    %c0_i32_1 = arith.constant 0 : i32
    return %c0_i32, %c0_i32_0 : i32, i32
  }
  func.func @transform_8(%arg0: i32) -> (i32, i32) {
    %c0_i32 = arith.constant 0 : i32
    %c0_i32_0 = arith.constant 0 : i32
    %c0_i32_1 = arith.constant 0 : i32
    return %c0_i32, %c0_i32_0 : i32, i32
  }
  func.func @transform_9(%arg0: i32) -> (i32, i32) {
    %c0_i32 = arith.constant 0 : i32
    %c0_i32_0 = arith.constant 0 : i32
    %c0_i32_1 = arith.constant 0 : i32
    return %c0_i32, %c0_i32_0 : i32, i32
  }
  func.func @transform_10(%arg0: i32) -> (i32, i32) {
    %c0_i32 = arith.constant 0 : i32
    %c0_i32_0 = arith.constant 0 : i32
    %c0_i32_1 = arith.constant 0 : i32
    return %c0_i32, %c0_i32_0 : i32, i32
  }
  func.func @transform_11(%arg0: i32) -> (i32, i32) {
    %c0_i32 = arith.constant 0 : i32
    %c0_i32_0 = arith.constant 0 : i32
    %c0_i32_1 = arith.constant 0 : i32
    return %c0_i32, %c0_i32_0 : i32, i32
  }
  func.func @transform_12(%arg0: i32) -> (i32, i32) {
    %c0_i32 = arith.constant 0 : i32
    %c0_i32_0 = arith.constant 0 : i32
    %c0_i32_1 = arith.constant 0 : i32
    return %c0_i32, %c0_i32_0 : i32, i32
  }
  func.func @transform_13(%arg0: i32) -> (i32, i32) {
    %c0_i32 = arith.constant 0 : i32
    %c0_i32_0 = arith.constant 0 : i32
    return %c0_i32, %arg0 : i32, i32
  }
  func.func @transform_14(%arg0: i32) -> (i32, i32) {
    %c0_i32 = arith.constant 0 : i32
    %c0_i32_0 = arith.constant 0 : i32
    return %c0_i32, %arg0 : i32, i32
  }
  func.func @transform_15(%arg0: i32) -> (i32, i32) {
    %c0_i32 = arith.constant 0 : i32
    %c0_i32_0 = arith.constant 0 : i32
    return %arg0, %c0_i32 : i32, i32
  }
  func.func @transform_16(%arg0: i32) -> (i32, i32) {
    %c0_i32 = arith.constant 0 : i32
    %c0_i32_0 = arith.constant 0 : i32
    %c0_i32_1 = arith.constant 0 : i32
    return %c0_i32, %c0_i32_0 : i32, i32
  }
  func.func @transform_17(%arg0: i32) -> (i32, i32) {
    %c0_i32 = arith.constant 0 : i32
    %c0_i32_0 = arith.constant 0 : i32
    %c0_i32_1 = arith.constant 0 : i32
    return %c0_i32, %c0_i32_0 : i32, i32
  }
}

</mosaic_0001>

<llo_original>
// kernel: tpu_custom_call.1
$region0: #{tpu_custom_call.1}
  #allocation0 [shape = 'u32[]', space=smem, size = 0x4, offset = 0x4, fixed_abs, tag = 'smem constant byte address 0x4 - core index']
  #allocation1 [shape = 'u32[144,128]{1,0:T(1,128)}', space=vmem, size = 0x12000, scoped, tag = 'internal scratch']
  #allocation2 [shape = 'f32[16,64]{1,0:T(8,128)}', space=vmem, size = 0x2000, scoped, tag = 'scratch operand']
  #allocation3 [shape = 'f32[16,64]{1,0:T(8,128)}', space=vmem, size = 0x2000, scoped, tag = 'scratch operand']
  #allocation4 [shape = 'f32[16,64]{1,0:T(8,128)}', space=vmem, size = 0x2000, scoped, tag = 'scratch operand']
  #allocation5 [shape = 'f32[8,8,16]{2,1,0:T(8,128)}', space=vmem, size = 0x8000, scoped, tag = 'scratch operand']
  #allocation6 [shape = 'f32[8,8,16]{2,1,0:T(8,128)}', space=vmem, size = 0x8000, scoped, tag = 'scratch operand']
  #allocation7 [shape = 'f32[8,8,16]{2,1,0:T(8,128)}', space=vmem, size = 0x8000, scoped, tag = 'scratch operand']
  #allocation8 [shape = 'f32[2,8,64]{2,1,0:T(8,128)}', space=vmem, size = 0x2000, scoped, tag = 'scratch operand']
  %s0 = inlined_call_operand.hbm [shape: f32[16,64], index: 0, kind: input, shape index: {}]
  %s1 = inlined_call_operand.hbm [shape: f32[1,64], index: 1, kind: input, shape index: {}]
  %s2 = inlined_call_operand.vmem [shape: f32[1,64], index: 2, kind: input, shape index: {}]
  %s3 = inlined_call_operand.vmem [shape: f32[64,64], index: 3, kind: input, shape index: {}]
  %s4 = inlined_call_operand.vmem [shape: f32[1,64], index: 4, kind: input, shape index: {}]
  %s5 = inlined_call_operand.vmem [shape: f32[64,64], index: 5, kind: input, shape index: {}]
  %s6 = inlined_call_operand.vmem [shape: f32[1,64], index: 6, kind: input, shape index: {}]
  %s7 = inlined_call_operand.vmem [shape: f32[64,64], index: 7, kind: input, shape index: {}]
  %s8 = inlined_call_operand.vmem [shape: f32[1,64], index: 8, kind: input, shape index: {}]
  %s9 = inlined_call_operand.vmem [shape: f32[64,64], index: 9, kind: input, shape index: {}]
  %s10 = inlined_call_operand.vmem [shape: f32[1,64], index: 10, kind: input, shape index: {}]
  %s11 = inlined_call_operand.vmem [shape: f32[1,64], index: 11, kind: input, shape index: {}]
  %s12 = inlined_call_operand.vmem [shape: f32[1,64], index: 12, kind: input, shape index: {}]
  %s13 = inlined_call_operand.vmem [shape: f32[64,256], index: 13, kind: input, shape index: {}]
  %s14 = inlined_call_operand.vmem [shape: f32[1,256], index: 14, kind: input, shape index: {}]
  %s15 = inlined_call_operand.vmem [shape: f32[256,64], index: 15, kind: input, shape index: {}]
  %s16 = inlined_call_operand.vmem [shape: f32[1,64], index: 16, kind: input, shape index: {}]
  %s17 = inlined_call_operand.hbm [shape: f32[16,64], index: 17, kind: output, shape index: {}]
  %s18 = sld [smem:[#allocation0]]
  $region155: #{tpu_custom_call.1} parent=0
    _
  %s20 = ssub.s32 1, %s18
  %s21 = scalar_select 0, %s20, %s18
  $region1: #{tpu_custom_call.1} parent=0
    #allocation9 [shape = 'u8[8192]{0}', space=vmem, size = 0x2000, scoped, tag = 'input window, operand 0, single buffered']
    #allocation10 [shape = 's32[2]{0}', space=sflag, size = 0x8, scoped, tag = 'scoped memory for tpu_custom_call.1']
    #allocation11 [shape = 's32[2]{0}', space=sflag, size = 0x8, scoped, tag = 'scoped memory for tpu_custom_call.1']
    #allocation12 [shape = 'u8[512]{0}', space=vmem, size = 0x400, scoped, tag = 'input window, operand 1, single buffered']
    #allocation13 [shape = 's32[1]{0}', space=sflag, size = 0x4, scoped, tag = 'scoped memory for tpu_custom_call.1']
    #allocation14 [shape = 'u8[65536]{0}', space=vmem, size = 0x10000, scoped, tag = 'input window, operand 13']
    #allocation15 [shape = 'u8[8192]{0}', space=vmem, size = 0x2000, scoped, tag = 'output window, operand 0, single buffered']
    %22 = vsyncpa [#allocation10], 0
    %23 = vsyncpa [#allocation13], 0
    %24 = vsyncpa [#allocation11], 0
    loop: start=0, step=1, limit=4
    $region2: #{tpu_custom_call.1} parent=1 // loop_pre_header
      _
    $region3: #{tpu_custom_call.1} parent=1 // loop_header
      %s26 = sphi 0, %s30
      %p27 = scmp.ge.s32.totalorder %s26, 4
      %s34 = sphi 0, %s34
      %s36 = sphi 0, %s34
      %s37 = sphi 0, %s36
      %s51 = sphi 0, %s37
      %s55 = sphi 0, %s55
      %s57 = sphi 0, %s55
      %s58 = sphi 0, %s57
      %s72 = sphi 0, %s58
      %s76 = sphi 0, %s76
      %s78 = sphi 0, %s76
      %s79 = sphi 0, %s78
      %s93 = sphi 0, %s79
      %s97 = sphi 0, %s97
      %s99 = sphi 0, %s97
      %s100 = sphi 0, %s99
      %s114 = sphi 0, %s100
      %s118 = sphi 0, %s118
      %s120 = sphi 0, %s118
      %s121 = sphi 0, %s120
      %s135 = sphi 0, %s121
      %s139 = sphi 0, %s139
      %s141 = sphi 0, %s139
      %s142 = sphi 0, %s141
      %s156 = sphi 0, %s142
      %s160 = sphi 0, %s160
      %s162 = sphi 0, %s160
      %s163 = sphi 0, %s162
      %s177 = sphi 0, %s163
      %s181 = sphi 0, %s181
      %s183 = sphi 0, %s181
      %s184 = sphi 0, %s183
      %s198 = sphi 0, %s184
      %s202 = sphi 0, %s202
      %s204 = sphi 0, %s202
      %s205 = sphi 0, %s204
      %s219 = sphi 0, %s205
      %s223 = sphi 0, %s223
      %s225 = sphi 0, %s223
      %s226 = sphi 0, %s225
      %s240 = sphi 0, %s226
      %s244 = sphi 0, %s244
      %s246 = sphi 0, %s244
      %s247 = sphi 0, %s246
      %s261 = sphi 0, %s247
      %s265 = sphi 0, %s265
      %s267 = sphi 0, %s265
      %s268 = sphi 0, %s267
      %s282 = sphi 0, %s268
      %s286 = sphi 0, %s286
      %s288 = sphi 0, %s286
      %s289 = sphi 0, %s288
      %s303 = sphi 0, %s289
      %s309 = sphi 0, %s311
      %s312 = sphi 0, %s309
      %s313 = sphi 0, %s312
      %s329 = sphi 0, %s313
      %s335 = sphi 0, %s337
      %s338 = sphi 0, %s335
      %s339 = sphi 0, %s338
      %s355 = sphi 0, %s339
      %s361 = sphi 0, %s363
      %s364 = sphi 0, %s361
      %s365 = sphi 0, %s364
      %s381 = sphi 0, %s365
      %s385 = sphi 0, %s385
      %s387 = sphi 0, %s385
      %s388 = sphi 0, %s387
      %s402 = sphi 0, %s388
      %s406 = sphi 0, %s406
      %s408 = sphi 0, %s406
      %s409 = sphi 0, %s408
      %s423 = sphi 0, %s409
    $region4: #{tpu_custom_call.1} parent=1 // loop_header_branch
      %29 = sbr.rel (%p27) target = $region8
    $region5: #{tpu_custom_call.1} parent=1 // loop_body
      %s31 = ssub.s32 %s26, 1
      %s32 = ssub.s32 %s26, 2
      %s33 = sadd.s32 %s26, 1
      %s35 = sadd.s32 %s34, 1
      %p38 = scmp.eq.s32.totalorder %s26, 1
      %p39 = scmp.ne.s32.totalorder %s34, %s36
      %p40 = scmp.eq.s32.totalorder %s26, 0
      %p41 = por %p39, %p40
      %p42 = scmp.ne.s32.totalorder %s34, %s36
      %p43 = scmp.eq.s32.totalorder %s31, 1
      %p44 = por %p42, %p43
      %p45 = scmp.ne.s32.totalorder %s36, %s37
      %p46 = scmp.eq.s32.totalorder %s31, 0
      %p47 = por %p45, %p46
      %p48 = scmp.ne.s32.totalorder %s36, %s37
      %p49 = scmp.eq.s32.totalorder %s32, 1
      %p50 = por %p48, %p49
      %p52 = scmp.ne.s32.totalorder %s37, %s51
      %p53 = scmp.eq.s32.totalorder %s32, 0
      %p54 = por %p52, %p53
      %s56 = sadd.s32 %s55, 1
      %p59 = scmp.eq.s32.totalorder %s26, 1
      %p60 = scmp.ne.s32.totalorder %s55, %s57
      %p61 = scmp.eq.s32.totalorder %s26, 0
      %p62 = por %p60, %p61
      %p63 = scmp.ne.s32.totalorder %s55, %s57
      %p64 = scmp.eq.s32.totalorder %s31, 1
      %p65 = por %p63, %p64
      %p66 = scmp.ne.s32.totalorder %s57, %s58
      %p67 = scmp.eq.s32.totalorder %s31, 0
      %p68 = por %p66, %p67
      %p69 = scmp.ne.s32.totalorder %s57, %s58
      %p70 = scmp.eq.s32.totalorder %s32, 1
      %p71 = por %p69, %p70
      %p73 = scmp.ne.s32.totalorder %s58, %s72
      %p74 = scmp.eq.s32.totalorder %s32, 0
      %p75 = por %p73, %p74
      %s77 = sadd.s32 %s76, 1
      %p80 = scmp.eq.s32.totalorder %s26, 1
      %p81 = scmp.ne.s32.totalorder %s76, %s78
      %p82 = scmp.eq.s32.totalorder %s26, 0
      %p83 = por %p81, %p82
      %p84 = scmp.ne.s32.totalorder %s76, %s78
      %p85 = scmp.eq.s32.totalorder %s31, 1
      %p86 = por %p84, %p85
      %p87 = scmp.ne.s32.totalorder %s78, %s79
      %p88 = scmp.eq.s32.totalorder %s31, 0
      %p89 = por %p87, %p88
      %p90 = scmp.ne.s32.totalorder %s78, %s79
      %p91 = scmp.eq.s32.totalorder %s32, 1
      %p92 = por %p90, %p91
      %p94 = scmp.ne.s32.totalorder %s79, %s93
      %p95 = scmp.eq.s32.totalorder %s32, 0
      %p96 = por %p94, %p95
      %s98 = sadd.s32 %s97, 1
      %p101 = scmp.eq.s32.totalorder %s26, 1
      %p102 = scmp.ne.s32.totalorder %s97, %s99
      %p103 = scmp.eq.s32.totalorder %s26, 0
      %p104 = por %p102, %p103
      %p105 = scmp.ne.s32.totalorder %s97, %s99
      %p106 = scmp.eq.s32.totalorder %s31, 1
      %p107 = por %p105, %p106
      %p108 = scmp.ne.s32.totalorder %s99, %s100
      %p109 = scmp.eq.s32.totalorder %s31, 0
      %p110 = por %p108, %p109
      %p111 = scmp.ne.s32.totalorder %s99, %s100
      %p112 = scmp.eq.s32.totalorder %s32, 1
      %p113 = por %p111, %p112
      %p115 = scmp.ne.s32.totalorder %s100, %s114
      %p116 = scmp.eq.s32.totalorder %s32, 0
      %p117 = por %p115, %p116
      %s119 = sadd.s32 %s118, 1
      %p122 = scmp.eq.s32.totalorder %s26, 1
      %p123 = scmp.ne.s32.totalorder %s118, %s120
      %p124 = scmp.eq.s32.totalorder %s26, 0
      %p125 = por %p123, %p124
      %p126 = scmp.ne.s32.totalorder %s118, %s120
      %p127 = scmp.eq.s32.totalorder %s31, 1
      %p128 = por %p126, %p127
      %p129 = scmp.ne.s32.totalorder %s120, %s121
      %p130 = scmp.eq.s32.totalorder %s31, 0
      %p131 = por %p129, %p130
      %p132 = scmp.ne.s32.totalorder %s120, %s121
      %p133 = scmp.eq.s32.totalorder %s32, 1
      %p134 = por %p132, %p133
      %p136 = scmp.ne.s32.totalorder %s121, %s135
      %p137 = scmp.eq.s32.totalorder %s32, 0
      %p138 = por %p136, %p137
      %s140 = sadd.s32 %s139, 1
      %p143 = scmp.eq.s32.totalorder %s26, 1
      %p144 = scmp.ne.s32.totalorder %s139, %s141
      %p145 = scmp.eq.s32.totalorder %s26, 0
      %p146 = por %p144, %p145
      %p147 = scmp.ne.s32.totalorder %s139, %s141
      %p148 = scmp.eq.s32.totalorder %s31, 1
      %p149 = por %p147, %p148
      %p150 = scmp.ne.s32.totalorder %s141, %s142
      %p151 = scmp.eq.s32.totalorder %s31, 0
      %p152 = por %p150, %p151
      %p153 = scmp.ne.s32.totalorder %s141, %s142
      %p154 = scmp.eq.s32.totalorder %s32, 1
      %p155 = por %p153, %p154
      %p157 = scmp.ne.s32.totalorder %s142, %s156
      %p158 = scmp.eq.s32.totalorder %s32, 0
      %p159 = por %p157, %p158
      %s161 = sadd.s32 %s160, 1
      %p164 = scmp.eq.s32.totalorder %s26, 1
      %p165 = scmp.ne.s32.totalorder %s160, %s162
      %p166 = scmp.eq.s32.totalorder %s26, 0
      %p167 = por %p165, %p166
      %p168 = scmp.ne.s32.totalorder %s160, %s162
      %p169 = scmp.eq.s32.totalorder %s31, 1
      %p170 = por %p168, %p169
      %p171 = scmp.ne.s32.totalorder %s162, %s163
      %p172 = scmp.eq.s32.totalorder %s31, 0
      %p173 = por %p171, %p172
      %p174 = scmp.ne.s32.totalorder %s162, %s163
      %p175 = scmp.eq.s32.totalorder %s32, 1
      %p176 = por %p174, %p175
      %p178 = scmp.ne.s32.totalorder %s163, %s177
      %p179 = scmp.eq.s32.totalorder %s32, 0
      %p180 = por %p178, %p179
      %s182 = sadd.s32 %s181, 1
      %p185 = scmp.eq.s32.totalorder %s26, 1
      %p186 = scmp.ne.s32.totalorder %s181, %s183
      %p187 = scmp.eq.s32.totalorder %s26, 0
      %p188 = por %p186, %p187
      %p189 = scmp.ne.s32.totalorder %s181, %s183
      %p190 = scmp.eq.s32.totalorder %s31, 1
      %p191 = por %p189, %p190
      %p192 = scmp.ne.s32.totalorder %s183, %s184
      %p193 = scmp.eq.s32.totalorder %s31, 0
      %p194 = por %p192, %p193
      %p195 = scmp.ne.s32.totalorder %s183, %s184
      %p196 = scmp.eq.s32.totalorder %s32, 1
      %p197 = por %p195, %p196
      %p199 = scmp.ne.s32.totalorder %s184, %s198
      %p200 = scmp.eq.s32.totalorder %s32, 0
      %p201 = por %p199, %p200
      %s203 = sadd.s32 %s202, 1
      %p206 = scmp.eq.s32.totalorder %s26, 1
      %p207 = scmp.ne.s32.totalorder %s202, %s204
      %p208 = scmp.eq.s32.totalorder %s26, 0
      %p209 = por %p207, %p208
      %p210 = scmp.ne.s32.totalorder %s202, %s204
      %p211 = scmp.eq.s32.totalorder %s31, 1
      %p212 = por %p210, %p211
      %p213 = scmp.ne.s32.totalorder %s204, %s205
      %p214 = scmp.eq.s32.totalorder %s31, 0
      %p215 = por %p213, %p214
      %p216 = scmp.ne.s32.totalorder %s204, %s205
      %p217 = scmp.eq.s32.totalorder %s32, 1
      %p218 = por %p216, %p217
      %p220 = scmp.ne.s32.totalorder %s205, %s219
      %p221 = scmp.eq.s32.totalorder %s32, 0
      %p222 = por %p220, %p221
      %s224 = sadd.s32 %s223, 1
      %p227 = scmp.eq.s32.totalorder %s26, 1
      %p228 = scmp.ne.s32.totalorder %s223, %s225
      %p229 = scmp.eq.s32.totalorder %s26, 0
      %p230 = por %p228, %p229
      %p231 = scmp.ne.s32.totalorder %s223, %s225
      %p232 = scmp.eq.s32.totalorder %s31, 1
      %p233 = por %p231, %p232
      %p234 = scmp.ne.s32.totalorder %s225, %s226
      %p235 = scmp.eq.s32.totalorder %s31, 0
      %p236 = por %p234, %p235
      %p237 = scmp.ne.s32.totalorder %s225, %s226
      %p238 = scmp.eq.s32.totalorder %s32, 1
      %p239 = por %p237, %p238
      %p241 = scmp.ne.s32.totalorder %s226, %s240
      %p242 = scmp.eq.s32.totalorder %s32, 0
      %p243 = por %p241, %p242
      %s245 = sadd.s32 %s244, 1
      %p248 = scmp.eq.s32.totalorder %s26, 1
      %p249 = scmp.ne.s32.totalorder %s244, %s246
      %p250 = scmp.eq.s32.totalorder %s26, 0
      %p251 = por %p249, %p250
      %p252 = scmp.ne.s32.totalorder %s244, %s246
      %p253 = scmp.eq.s32.totalorder %s31, 1
      %p254 = por %p252, %p253
      %p255 = scmp.ne.s32.totalorder %s246, %s247
      %p256 = scmp.eq.s32.totalorder %s31, 0
      %p257 = por %p255, %p256
      %p258 = scmp.ne.s32.totalorder %s246, %s247
      %p259 = scmp.eq.s32.totalorder %s32, 1
      %p260 = por %p258, %p259
      %p262 = scmp.ne.s32.totalorder %s247, %s261
      %p263 = scmp.eq.s32.totalorder %s32, 0
      %p264 = por %p262, %p263
      %s266 = sadd.s32 %s265, 1
      %p269 = scmp.eq.s32.totalorder %s26, 1
      %p270 = scmp.ne.s32.totalorder %s265, %s267
      %p271 = scmp.eq.s32.totalorder %s26, 0
      %p272 = por %p270, %p271
      %p273 = scmp.ne.s32.totalorder %s265, %s267
      %p274 = scmp.eq.s32.totalorder %s31, 1
      %p275 = por %p273, %p274
      %p276 = scmp.ne.s32.totalorder %s267, %s268
      %p277 = scmp.eq.s32.totalorder %s31, 0
      %p278 = por %p276, %p277
      %p279 = scmp.ne.s32.totalorder %s267, %s268
      %p280 = scmp.eq.s32.totalorder %s32, 1
      %p281 = por %p279, %p280
      %p283 = scmp.ne.s32.totalorder %s268, %s282
      %p284 = scmp.eq.s32.totalorder %s32, 0
      %p285 = por %p283, %p284
      %s287 = sadd.s32 %s286, 1
      %p290 = scmp.eq.s32.totalorder %s26, 1
      %p291 = scmp.ne.s32.totalorder %s286, %s288
      %p292 = scmp.eq.s32.totalorder %s26, 0
      %p293 = por %p291, %p292
      %p294 = scmp.ne.s32.totalorder %s286, %s288
      %p295 = scmp.eq.s32.totalorder %s31, 1
      %p296 = por %p294, %p295
      %p297 = scmp.ne.s32.totalorder %s288, %s289
      %p298 = scmp.eq.s32.totalorder %s31, 0
      %p299 = por %p297, %p298
      %p300 = scmp.ne.s32.totalorder %s288, %s289
      %p301 = scmp.eq.s32.totalorder %s32, 1
      %p302 = por %p300, %p301
      %p304 = scmp.ne.s32.totalorder %s289, %s303
      %p305 = scmp.eq.s32.totalorder %s32, 0
      %p306 = por %p304, %p305
      %s307 = ssub.s32 %s26, %s33
      %p308 = scmp.eq.s32.totalorder %s307, 0
      %s310 = sadd.s32 %s309, 1
      %s311 = scalar_select %p308, %s309, %s310
      %p314 = pneg %p308
      %p315 = scmp.eq.s32.totalorder %s26, 1
      %p316 = por %p314, %p315
      %p317 = scmp.ne.s32.totalorder %s309, %s312
      %p318 = scmp.eq.s32.totalorder %s26, 0
      %p319 = por %p317, %p318
      %p320 = scmp.ne.s32.totalorder %s309, %s312
      %p321 = scmp.eq.s32.totalorder %s31, 1
      %p322 = por %p320, %p321
      %p323 = scmp.ne.s32.totalorder %s312, %s313
      %p324 = scmp.eq.s32.totalorder %s31, 0
      %p325 = por %p323, %p324
      %p326 = scmp.ne.s32.totalorder %s312, %s313
      %p327 = scmp.eq.s32.totalorder %s32, 1
      %p328 = por %p326, %p327
      %p330 = scmp.ne.s32.totalorder %s313, %s329
      %p331 = scmp.eq.s32.totalorder %s32, 0
      %p332 = por %p330, %p331
      %s333 = ssub.s32 %s26, %s33
      %p334 = scmp.eq.s32.totalorder %s333, 0
      %s336 = sadd.s32 %s335, 1
      %s337 = scalar_select %p334, %s335, %s336
      %p340 = pneg %p334
      %p341 = scmp.eq.s32.totalorder %s26, 1
      %p342 = por %p340, %p341
      %p343 = scmp.ne.s32.totalorder %s335, %s338
      %p344 = scmp.eq.s32.totalorder %s26, 0
      %p345 = por %p343, %p344
      %p346 = scmp.ne.s32.totalorder %s335, %s338
      %p347 = scmp.eq.s32.totalorder %s31, 1
      %p348 = por %p346, %p347
      %p349 = scmp.ne.s32.totalorder %s338, %s339
      %p350 = scmp.eq.s32.totalorder %s31, 0
      %p351 = por %p349, %p350
      %p352 = scmp.ne.s32.totalorder %s338, %s339
      %p353 = scmp.eq.s32.totalorder %s32, 1
      %p354 = por %p352, %p353
      %p356 = scmp.ne.s32.totalorder %s339, %s355
      %p357 = scmp.eq.s32.totalorder %s32, 0
      %p358 = por %p356, %p357
      %s359 = ssub.s32 %s26, %s33
      %p360 = scmp.eq.s32.totalorder %s359, 0
      %s362 = sadd.s32 %s361, 1
      %s363 = scalar_select %p360, %s361, %s362
      %p366 = pneg %p360
      %p367 = scmp.eq.s32.totalorder %s26, 1
      %p368 = por %p366, %p367
      %p369 = scmp.ne.s32.totalorder %s361, %s364
      %p370 = scmp.eq.s32.totalorder %s26, 0
      %p371 = por %p369, %p370
      %p372 = scmp.ne.s32.totalorder %s361, %s364
      %p373 = scmp.eq.s32.totalorder %s31, 1
      %p374 = por %p372, %p373
      %p375 = scmp.ne.s32.totalorder %s364, %s365
      %p376 = scmp.eq.s32.totalorder %s31, 0
      %p377 = por %p375, %p376
      %p378 = scmp.ne.s32.totalorder %s364, %s365
      %p379 = scmp.eq.s32.totalorder %s32, 1
      %p380 = por %p378, %p379
      %p382 = scmp.ne.s32.totalorder %s365, %s381
      %p383 = scmp.eq.s32.totalorder %s32, 0
      %p384 = por %p382, %p383
      %s386 = sadd.s32 %s385, 1
      %p389 = scmp.eq.s32.totalorder %s26, 1
      %p390 = scmp.ne.s32.totalorder %s385, %s387
      %p391 = scmp.eq.s32.totalorder %s26, 0
      %p392 = por %p390, %p391
      %p393 = scmp.ne.s32.totalorder %s385, %s387
      %p394 = scmp.eq.s32.totalorder %s31, 1
      %p395 = por %p393, %p394
      %p396 = scmp.ne.s32.totalorder %s387, %s388
      %p397 = scmp.eq.s32.totalorder %s31, 0
      %p398 = por %p396, %p397
      %p399 = scmp.ne.s32.totalorder %s387, %s388
      %p400 = scmp.eq.s32.totalorder %s32, 1
      %p401 = por %p399, %p400
      %p403 = scmp.ne.s32.totalorder %s388, %s402
      %p404 = scmp.eq.s32.totalorder %s32, 0
      %p405 = por %p403, %p404
      %s407 = sadd.s32 %s406, 1
      %p410 = scmp.eq.s32.totalorder %s26, 1
      %p411 = scmp.ne.s32.totalorder %s406, %s408
      %p412 = scmp.eq.s32.totalorder %s26, 0
      %p413 = por %p411, %p412
      %p414 = scmp.ne.s32.totalorder %s406, %s408
      %p415 = scmp.eq.s32.totalorder %s31, 1
      %p416 = por %p414, %p415
      %p417 = scmp.ne.s32.totalorder %s408, %s409
      %p418 = scmp.eq.s32.totalorder %s31, 0
      %p419 = por %p417, %p418
      %p420 = scmp.ne.s32.totalorder %s408, %s409
      %p421 = scmp.eq.s32.totalorder %s32, 1
      %p422 = por %p420, %p421
      %p424 = scmp.ne.s32.totalorder %s409, %s423
      %p425 = scmp.eq.s32.totalorder %s32, 0
      %p426 = por %p424, %p425
      %p427 = scmp.le.s32.totalorder 1, %s26
      %p428 = scmp.lt.s32.totalorder %s26, 3
      %p429 = pnand %p427, %p428
      %p430 = pneg %p429
      // Predicated region
      $region9: #{tpu_custom_call.1} parent=5 // pred_check
        _
      $region10: #{tpu_custom_call.1} parent=5 // pred_check_branch
        %432 = sbr.rel (%p429) target = $region12
      $region11: #{tpu_custom_call.1} parent=5 // pred_region
        %s433 = ssub.s32 %s26, 1
        // Predicated region
        $region13: #{tpu_custom_call.1} parent=11 // pred_check
          %p434 = pneg %p47
        $region14: #{tpu_custom_call.1} parent=11 // pred_check_branch
          %436 = sbr.rel (%p434) target = $region16
        $region15: #{tpu_custom_call.1} parent=11 // pred_region
          %s438 = ssub.s32 256, 256
          %439 = vsyncadd [#allocation10], %s438
          %s440 = sshll.u32 [#allocation9], 4
          %s441 = int_to_ptr.vmem [resolvable:$true] %s440
          %446 = dma.hbm_to_vmem [thread:$0]  %s0, 256, %s441, [#allocation10], 128, 128, 8
        $region16: #{tpu_custom_call.1} parent=11 // pred_fallthru
          _
        // Predicated region
        $region17: #{tpu_custom_call.1} parent=11 // pred_check
          %p447 = pneg %p68
        $region18: #{tpu_custom_call.1} parent=11 // pred_check_branch
          %449 = sbr.rel (%p447) target = $region20
        $region19: #{tpu_custom_call.1} parent=11 // pred_region
          %s451 = ssub.s32 16, 16
          %452 = vsyncadd [#allocation13], %s451
          %s454 = sshll.u32 [#allocation12], 4
          %s455 = int_to_ptr.vmem [resolvable:$true] %s454
          %457 = dma.hbm_to_vmem [thread:$0]  %s1, 16, %s455, [#allocation13]
        $region20: #{tpu_custom_call.1} parent=11 // pred_fallthru
          _
        // Predicated region
        $region21: #{tpu_custom_call.1} parent=11 // pred_check
          %p458 = pneg %p89
        $region22: #{tpu_custom_call.1} parent=11 // pred_check_branch
          %460 = sbr.rel (%p458) target = $region24
        $region23: #{tpu_custom_call.1} parent=11 // pred_region
          _
        $region24: #{tpu_custom_call.1} parent=11 // pred_fallthru
          _
        // Predicated region
        $region25: #{tpu_custom_call.1} parent=11 // pred_check
          %p461 = pneg %p110
        $region26: #{tpu_custom_call.1} parent=11 // pred_check_branch
          %463 = sbr.rel (%p461) target = $region28
        $region27: #{tpu_custom_call.1} parent=11 // pred_region
          _
        $region28: #{tpu_custom_call.1} parent=11 // pred_fallthru
          _
        // Predicated region
        $region29: #{tpu_custom_call.1} parent=11 // pred_check
          %p464 = pneg %p131
        $region30: #{tpu_custom_call.1} parent=11 // pred_check_branch
          %466 = sbr.rel (%p464) target = $region32
        $region31: #{tpu_custom_call.1} parent=11 // pred_region
          _
        $region32: #{tpu_custom_call.1} parent=11 // pred_fallthru
          _
        // Predicated region
        $region33: #{tpu_custom_call.1} parent=11 // pred_check
          %p467 = pneg %p152
        $region34: #{tpu_custom_call.1} parent=11 // pred_check_branch
          %469 = sbr.rel (%p467) target = $region36
        $region35: #{tpu_custom_call.1} parent=11 // pred_region
          _
        $region36: #{tpu_custom_call.1} parent=11 // pred_fallthru
          _
        // Predicated region
        $region37: #{tpu_custom_call.1} parent=11 // pred_check
          %p470 = pneg %p173
        $region38: #{tpu_custom_call.1} parent=11 // pred_check_branch
          %472 = sbr.rel (%p470) target = $region40
        $region39: #{tpu_custom_call.1} parent=11 // pred_region
          _
        $region40: #{tpu_custom_call.1} parent=11 // pred_fallthru
          _
        // Predicated region
        $region41: #{tpu_custom_call.1} parent=11 // pred_check
          %p473 = pneg %p194
        $region42: #{tpu_custom_call.1} parent=11 // pred_check_branch
          %475 = sbr.rel (%p473) target = $region44
        $region43: #{tpu_custom_call.1} parent=11 // pred_region
          _
        $region44: #{tpu_custom_call.1} parent=11 // pred_fallthru
          _
        // Predicated region
        $region45: #{tpu_custom_call.1} parent=11 // pred_check
          %p476 = pneg %p215
        $region46: #{tpu_custom_call.1} parent=11 // pred_check_branch
          %478 = sbr.rel (%p476) target = $region48
        $region47: #{tpu_custom_call.1} parent=11 // pred_region
          _
        $region48: #{tpu_custom_call.1} parent=11 // pred_fallthru
          _
        // Predicated region
        $region49: #{tpu_custom_call.1} parent=11 // pred_check
          %p479 = pneg %p236
        $region50: #{tpu_custom_call.1} parent=11 // pred_check_branch
          %481 = sbr.rel (%p479) target = $region52
        $region51: #{tpu_custom_call.1} parent=11 // pred_region
          _
        $region52: #{tpu_custom_call.1} parent=11 // pred_fallthru
          _
        // Predicated region
        $region53: #{tpu_custom_call.1} parent=11 // pred_check
          %p482 = pneg %p257
        $region54: #{tpu_custom_call.1} parent=11 // pred_check_branch
          %484 = sbr.rel (%p482) target = $region56
        $region55: #{tpu_custom_call.1} parent=11 // pred_region
          _
        $region56: #{tpu_custom_call.1} parent=11 // pred_fallthru
          _
        // Predicated region
        $region57: #{tpu_custom_call.1} parent=11 // pred_check
          %p485 = pneg %p278
        $region58: #{tpu_custom_call.1} parent=11 // pred_check_branch
          %487 = sbr.rel (%p485) target = $region60
        $region59: #{tpu_custom_call.1} parent=11 // pred_region
          _
        $region60: #{tpu_custom_call.1} parent=11 // pred_fallthru
          _
        // Predicated region
        $region61: #{tpu_custom_call.1} parent=11 // pred_check
          %p488 = pneg %p299
        $region62: #{tpu_custom_call.1} parent=11 // pred_check_branch
          %490 = sbr.rel (%p488) target = $region64
        $region63: #{tpu_custom_call.1} parent=11 // pred_region
          _
        $region64: #{tpu_custom_call.1} parent=11 // pred_fallthru
          _
        // Predicated region
        $region65: #{tpu_custom_call.1} parent=11 // pred_check
          %p491 = pneg %p398
        $region66: #{tpu_custom_call.1} parent=11 // pred_check_branch
          %493 = sbr.rel (%p491) target = $region68
        $region67: #{tpu_custom_call.1} parent=11 // pred_region
          _
        $region68: #{tpu_custom_call.1} parent=11 // pred_fallthru
          _
      $region12: #{tpu_custom_call.1} parent=5 // pred_fallthru
        _
      %p494 = scmp.lt.s32.totalorder %s26, 2
      // Predicated region
      $region69: #{tpu_custom_call.1} parent=5 // pred_check
        %p495 = pneg %p494
      $region70: #{tpu_custom_call.1} parent=5 // pred_check_branch
        %497 = sbr.rel (%p495) target = $region72
      $region71: #{tpu_custom_call.1} parent=5 // pred_region
        // Predicated region
        $region73: #{tpu_custom_call.1} parent=71 // pred_check
          %p498 = pneg %p319
        $region74: #{tpu_custom_call.1} parent=71 // pred_check_branch
          %500 = sbr.rel (%p498) target = $region76
        $region75: #{tpu_custom_call.1} parent=71 // pred_region
          %s501 = sand.u32 %s309, 1
          %s502 = sand.u32 %s309, 1
          %s503 = smul.addr %s502, 64
          %s504 = scalar_lea.vmem [#allocation14], %s503
          %s505 = smul.addr %s26, 8
          %s506 = scalar_lea.vmem %s13, %s505
          // Predicated region
          $region77: #{tpu_custom_call.1} parent=75 // pred_check
            _
          $region78: #{tpu_custom_call.1} parent=75 // pred_check_branch
            %508 = sbr.rel (0) target = $region80
          $region79: #{tpu_custom_call.1} parent=75 // pred_region
            // Predicated region
            $region81: #{tpu_custom_call.1} parent=79 // pred_check
              _
            $region82: #{tpu_custom_call.1} parent=79 // pred_check_branch
              %510 = sbr.rel (0) target = $region84
            $region83: #{tpu_custom_call.1} parent=79 // pred_region
              // Predicated region
              $region96: #{tpu_custom_call.1} parent=83 // pred_check
                _
              $region97: #{tpu_custom_call.1} parent=83 // pred_check_branch
                %539 = sbr.rel (0) target = $region99
              $region98: #{tpu_custom_call.1} parent=83 // pred_region
                loop: start=0, step=1, limit=1
                $region100: #{tpu_custom_call.1} parent=98 // loop_pre_header
                  _
                $region101: #{tpu_custom_call.1} parent=98 // loop_header
                  %s541 = sphi 0, %s545
                  %p542 = scmp.ge.s32.totalorder %s541, 1
                  %s546 = sphi %s506, %s506
                  %s547 = sphi %s504, %s504
                $region102: #{tpu_custom_call.1} parent=98 // loop_header_branch
                  %544 = sbr.rel (%p542) target = $region106
                $region103: #{tpu_custom_call.1} parent=98 // loop_body
                  %v548 = vld [vmem:[%s546] sm:$0xff]
                  %549 = vst [vmem:[%s547] sm:$0xff] %v548
                  %v550 = vld [vmem:[%s546 + $0x10] sm:$0xff]
                  %551 = vst [vmem:[%s547 + $0x8] sm:$0xff] %v550
                  %v552 = vld [vmem:[%s546 + $0x20] sm:$0xff]
                  %553 = vst [vmem:[%s547 + $0x10] sm:$0xff] %v552
                  %v554 = vld [vmem:[%s546 + $0x30] sm:$0xff]
                  %555 = vst [vmem:[%s547 + $0x18] sm:$0xff] %v554
                  %v556 = vld [vmem:[%s546 + $0x40] sm:$0xff]
                  %557 = vst [vmem:[%s547 + $0x20] sm:$0xff] %v556
                  %v558 = vld [vmem:[%s546 + $0x50] sm:$0xff]
                  %559 = vst [vmem:[%s547 + $0x28] sm:$0xff] %v558
                  %v560 = vld [vmem:[%s546 + $0x60] sm:$0xff]
                  %561 = vst [vmem:[%s547 + $0x30] sm:$0xff] %v560
                  %v562 = vld [vmem:[%s546 + $0x70] sm:$0xff]
                  %563 = vst [vmem:[%s547 + $0x38] sm:$0xff] %v562
                $region104: #{tpu_custom_call.1} parent=98 // loop_footer
                  %s545 = sadd.s32 1, %s541
                $region105: #{tpu_custom_call.1} parent=98 // loop_footer_branch
                  %540 = sbr.rel target = $region101
                $region106: #{tpu_custom_call.1} parent=98 // loop_exit
                  _
              $region99: #{tpu_custom_call.1} parent=83 // pred_fallthru
                _
              // Predicated region
              $region107: #{tpu_custom_call.1} parent=83 // pred_check
                _
              $region108: #{tpu_custom_call.1} parent=83 // pred_check_branch
                %565 = sbr.rel target = $region110
              $region109: #{tpu_custom_call.1} parent=83 // pred_region
                _
              $region110: #{tpu_custom_call.1} parent=83 // pred_fallthru
                _
            $region84: #{tpu_custom_call.1} parent=79 // pred_fallthru
              _
            // Predicated region
            $region85: #{tpu_custom_call.1} parent=79 // pred_check
              _
            $region86: #{tpu_custom_call.1} parent=79 // pred_check_branch
              %512 = sbr.rel target = $region88
            $region87: #{tpu_custom_call.1} parent=79 // pred_region
              loop: start=0, step=1, limit=1
              $region89: #{tpu_custom_call.1} parent=87 // loop_pre_header
                _
              $region90: #{tpu_custom_call.1} parent=87 // loop_header
                %s515 = sphi 0, %s519
                %p516 = scmp.ge.s32.totalorder %s515, 1
                %s520 = sphi %s506, %s506
                %s521 = sphi %s504, %s504
              $region91: #{tpu_custom_call.1} parent=87 // loop_header_branch
                %518 = sbr.rel (%p516) target = $region95
              $region92: #{tpu_custom_call.1} parent=87 // loop_body
                %v522 = vld [vmem:[%s520] sm:$0xff]
                %523 = vst [vmem:[%s521] sm:$0xff] %v522
                %v524 = vld [vmem:[%s520 + $0x10] sm:$0xff]
                %525 = vst [vmem:[%s521 + $0x8] sm:$0xff] %v524
                %v526 = vld [vmem:[%s520 + $0x20] sm:$0xff]
                %527 = vst [vmem:[%s521 + $0x10] sm:$0xff] %v526
                %v528 = vld [vmem:[%s520 + $0x30] sm:$0xff]
                %529 = vst [vmem:[%s521 + $0x18] sm:$0xff] %v528
                %v530 = vld [vmem:[%s520 + $0x40] sm:$0xff]
                %531 = vst [vmem:[%s521 + $0x20] sm:$0xff] %v530
                %v532 = vld [vmem:[%s520 + $0x50] sm:$0xff]
                %533 = vst [vmem:[%s521 + $0x28] sm:$0xff] %v532
                %v534 = vld [vmem:[%s520 + $0x60] sm:$0xff]
                %535 = vst [vmem:[%s521 + $0x30] sm:$0xff] %v534
                %v536 = vld [vmem:[%s520 + $0x70] sm:$0xff]
                %537 = vst [vmem:[%s521 + $0x38] sm:$0xff] %v536
              $region93: #{tpu_custom_call.1} parent=87 // loop_footer
                %s519 = sadd.s32 1, %s515
              $region94: #{tpu_custom_call.1} parent=87 // loop_footer_branch
                %514 = sbr.rel target = $region90
              $region95: #{tpu_custom_call.1} parent=87 // loop_exit
                _
            $region88: #{tpu_custom_call.1} parent=79 // pred_fallthru
              _
          $region80: #{tpu_custom_call.1} parent=75 // pred_fallthru
            _
          %566 = vnop
        $region76: #{tpu_custom_call.1} parent=71 // pred_fallthru
          _
        // Predicated region
        $region111: #{tpu_custom_call.1} parent=71 // pred_check
          %p567 = pneg %p345
        $region112: #{tpu_custom_call.1} parent=71 // pred_check_branch
          %569 = sbr.rel (%p567) target = $region114
        $region113: #{tpu_custom_call.1} parent=71 // pred_region
          %p570 = scmp.lt.s32.totalorder %s26, 1
          %s571 = scalar_select %p570, %s26, 1
          %s572 = scalar_lea.vmem %s14, %s571
        $region114: #{tpu_custom_call.1} parent=71 // pred_fallthru
          _
        // Predicated region
        $region115: #{tpu_custom_call.1} parent=71 // pred_check
          %p573 = pneg %p371
        $region116: #{tpu_custom_call.1} parent=71 // pred_check_branch
          %575 = sbr.rel (%p573) target = $region118
        $region117: #{tpu_custom_call.1} parent=71 // pred_region
          %s576 = smul.u32 16, %s26
          %p577 = scmp.lt.s32.totalorder %s576, 31
          %s578 = scalar_select %p577, %s576, 31
          %s579 = smul.addr %s578, 8
          %s580 = scalar_lea.vmem %s15, %s579
          %s581 = smul.u32 16, %s26
        $region118: #{tpu_custom_call.1} parent=71 // pred_fallthru
          _
      $region72: #{tpu_custom_call.1} parent=5 // pred_fallthru
        _
      %p582 = scmp.le.s32.totalorder 1, %s26
      %p583 = scmp.lt.s32.totalorder %s26, 3
      %p584 = pnand %p582, %p583
      %p585 = pneg %p584
      // Predicated region
      $region119: #{tpu_custom_call.1} parent=5 // pred_check
        _
      $region120: #{tpu_custom_call.1} parent=5 // pred_check_branch
        %587 = sbr.rel (%p584) target = $region122
      $region121: #{tpu_custom_call.1} parent=5 // pred_region
        %s588 = ssub.s32 %s26, 1
        // Predicated region
        $region123: #{tpu_custom_call.1} parent=121 // pred_check
          %p589 = pneg %p47
        $region124: #{tpu_custom_call.1} parent=121 // pred_check_branch
          %591 = sbr.rel (%p589) target = $region126
        $region125: #{tpu_custom_call.1} parent=121 // pred_region
          %592 = dma.done [#allocation10], 256
        $region126: #{tpu_custom_call.1} parent=121 // pred_fallthru
          _
        // Predicated region
        $region127: #{tpu_custom_call.1} parent=121 // pred_check
          %p593 = pneg %p68
        $region128: #{tpu_custom_call.1} parent=121 // pred_check_branch
          %595 = sbr.rel (%p593) target = $region130
        $region129: #{tpu_custom_call.1} parent=121 // pred_region
          %596 = dma.done [#allocation13], 16
        $region130: #{tpu_custom_call.1} parent=121 // pred_fallthru
          _
        %s597 = sand.u32 %s312, 1
        %s598 = sand.u32 %s312, 1
        %s599 = smul.addr %s598, 64
        %s600 = scalar_lea.vmem [#allocation14], %s599
        // Predicated region
        $region131: #{tpu_custom_call.1} parent=121 // pred_check
          %p601 = pneg %p325
        $region132: #{tpu_custom_call.1} parent=121 // pred_check_branch
          %603 = sbr.rel (%p601) target = $region134
        $region133: #{tpu_custom_call.1} parent=121 // pred_region
          _
        $region134: #{tpu_custom_call.1} parent=121 // pred_fallthru
          _
        %p604 = pneg %p47
        %p605 = pneg %p44
        %p606 = pneg %p68
        %p607 = pneg %p65
        %p608 = pneg %p89
        %p609 = pneg %p86
        %p610 = pneg %p110
        %p611 = pneg %p107
        %p612 = pneg %p131
        %p613 = pneg %p128
        %p614 = pneg %p152
        %p615 = pneg %p149
        %p616 = pneg %p173
        %p617 = pneg %p170
        %p618 = pneg %p194
        %p619 = pneg %p191
        %p620 = pneg %p215
        %p621 = pneg %p212
        %p622 = pneg %p236
        %p623 = pneg %p233
        %p624 = pneg %p257
        %p625 = pneg %p254
        %p626 = pneg %p278
        %p627 = pneg %p275
        %p628 = pneg %p299
        %p629 = pneg %p296
        %s630 = sand.u32 %s312, 1
        %s631 = sand.u32 %s312, 1
        %s632 = smul.addr %s631, 64
        %s633 = scalar_lea.vmem [#allocation14], %s632
        %p634 = pneg %p325
        %p635 = pneg %p322
        %p636 = scmp.lt.s32.totalorder %s31, 1
        %s637 = scalar_select %p636, %s31, 1
        %s638 = scalar_lea.vmem %s14, %s637
        %p639 = pneg %p351
        %p640 = pneg %p348
        %s641 = smul.u32 16, %s31
        %p642 = scmp.lt.s32.totalorder %s641, 31
        %s643 = scalar_select %p642, %s641, 31
        %s644 = smul.addr %s643, 8
        %s645 = scalar_lea.vmem %s15, %s644
        %p646 = pneg %p377
        %p647 = pneg %p374
        %p648 = pneg %p398
        %p649 = pneg %p395
        %p650 = pneg %p419
        %p651 = pneg %p416
        %p652 = scmp.lt.s32.totalorder %s31, 1
        %s653 = scalar_select %p652, %s31, 1
        %s654 = scalar_lea.vmem %s14, %s653
        %s655 = smul.u32 16, %s31
        %p656 = scmp.lt.s32.totalorder %s655, 31
        %s657 = scalar_select %p656, %s655, 31
        %s658 = smul.addr %s657, 8
        %s659 = scalar_lea.vmem %s15, %s658
        %s660 = smul.u32 16, %s31
        %p661 = scmp.eq.s32.totalorder %s31, 0
        // Predicated region
        $region135: #{tpu_custom_call.1} parent=121 // pred_check
          %p662 = pneg %p661
        $region136: #{tpu_custom_call.1} parent=121 // pred_check_branch
          %664 = sbr.rel (%p662) target = $region138
        $region137: #{tpu_custom_call.1} parent=121 // pred_region
          %v665 = vld [vmem:[#allocation9] sm:$0xff]
          %v666 = vld [vmem:[#allocation9 + $0x8] sm:$0xff]
          %v667 = vld [vmem:[#allocation12] sm:$0x1]
          %v668 = vld [vmem:[%s2] sm:$0x1]
          %vm669 = vcmask 523264
          %v670 = vsel %vm669, %v665, 0.0
          %671 = vadd.xlane.f32.xlu0 %v670
          %v672 = vpop.xlane.xlu0 %671
          %v673 = vsel %vm669, %v666, 0.0
          %674 = vadd.xlane.f32.xlu0 %v673
          %v675 = vpop.xlane.xlu0 %674
          %v676 = vrcp.pop 64.0
          %v677 = vmul.f32 %v672, %v676
          %v678 = vmul.f32 %v675, %v676
          %v679 = vsub.f32 %v665, %v677
          %v680 = vsub.f32 %v666, %v678
          %v681 = vmul.f32 %v679, %v679
          %v682 = vmul.f32 %v680, %v680
          %v683 = vsel %vm669, %v681, 0.0
          %684 = vadd.xlane.f32.xlu0 %v683
          %v685 = vpop.xlane.xlu0 %684
          %v686 = vsel %vm669, %v682, 0.0
          %687 = vadd.xlane.f32.xlu0 %v686
          %v688 = vpop.xlane.xlu0 %687
          %v689 = vmul.f32 %v685, %v676
          %v690 = vmul.f32 %v688, %v676
          %v691 = vadd.f32 %v689, 1e-05
          %v692 = vadd.f32 %v690, 1e-05
          %v693 = vrsqrt.pop %v691
          %v694 = vrsqrt.pop %v692
          %v695 = vmul.f32 %v679, %v693
          %v696 = vmul.f32 %v680, %v694
          %v698 = vlaneseq
          %v699 = vshrl.u32 %v698, 7
          %v700 = vsub.s32 0, %v699
          %v701 = vrot.slane %v667, %v700
          %v703 = vmul.f32 %v695, %v701
          %v704 = vmul.f32 %v696, %v701
          %v706 = vlaneseq
          %v707 = vshrl.u32 %v706, 7
          %v708 = vsub.s32 0, %v707
          %v709 = vrot.slane %v668, %v708
          %v711 = vadd.f32 %v703, %v709
          %v712 = vadd.f32 %v704, %v709
          %v713 = vld [vmem:[%s3] sm:$0xff]
          %v714 = vld [vmem:[%s3 + $0x8] sm:$0xff]
          %v715 = vld [vmem:[%s3 + $0x10] sm:$0xff]
          %v716 = vld [vmem:[%s3 + $0x18] sm:$0xff]
          %v717 = vld [vmem:[%s3 + $0x20] sm:$0xff]
          %v718 = vld [vmem:[%s3 + $0x28] sm:$0xff]
          %v719 = vld [vmem:[%s3 + $0x30] sm:$0xff]
          %v720 = vld [vmem:[%s3 + $0x38] sm:$0xff]
          %v721 = vld [vmem:[%s4] sm:$0x1]
          %v723 = vlaneseq
          %v724 = vshrl.u32 %v723, 7
          %v725 = vsub.s32 0, %v724
          %v726 = vrot.slane %v721, %v725
          %v729 = vsel %vm669, %v711, 0
          %v732 = vsel %vm669, %v712, 0
          %734 = vmatprep.subr.mxu0 0.0
          %735 = vmatpush1.msra.mxu0 %v713
          %736 = vmatprep.subr.mxu0 0.0
          %737 = vmatpush1.msra.mxu0 %v714
          %738 = vmatprep.subr.mxu0 0.0
          %739 = vmatpush1.msra.mxu0 %v715
          %740 = vmatprep.subr.mxu0 0.0
          %741 = vmatpush1.msra.mxu0 %v716
          %742 = vmatprep.subr.mxu0 0.0
          %743 = vmatpush1.msra.mxu0 %v717
          %744 = vmatprep.subr.mxu0 0.0
          %745 = vmatpush1.msra.mxu0 %v718
          %746 = vmatprep.subr.mxu0 0.0
          %747 = vmatpush1.msra.mxu0 %v719
          %748 = vmatprep.subr.mxu0 0.0
          %749 = vmatpush1.msra.mxu0 %v720
          %750 = vmatprep.subr.mxu0 0.0
          %751 = vmatpush1.msra.mxu0 0.0
          %752 = vmatprep.subr.mxu0 0.0
          %753 = vmatpush1.msra.mxu0 0.0
          %754 = vmatprep.subr.mxu0 0.0
          %755 = vmatpush1.msra.mxu0 0.0
          %756 = vmatprep.subr.mxu0 0.0
          %757 = vmatpush1.msra.mxu0 0.0
          %758 = vmatprep.subr.mxu0 0.0
          %759 = vmatpush1.msra.mxu0 0.0
          %760 = vmatprep.subr.mxu0 0.0
          %761 = vmatpush1.msra.mxu0 0.0
          %762 = vmatprep.subr.mxu0 0.0
          %763 = vmatpush1.msra.mxu0 0.0
          %764 = vmatprep.subr.mxu0 0.0
          %765 = vmatpush1.msra.mxu0 0.0
          %766 = vmatprep.subr.mxu0 0.0
          %767 = vmatpush1.msra.mxu0 0.0
          %768 = vmatprep.subr.mxu0 0.0
          %769 = vmatpush1.msra.mxu0 0.0
          %770 = vmatprep.subr.mxu0 0.0
          %771 = vmatpush1.msra.mxu0 0.0
          %772 = vmatprep.subr.mxu0 0.0
          %773 = vmatpush1.msra.mxu0 0.0
          %774 = vmatprep.subr.mxu0 0.0
          %775 = vmatpush1.msra.mxu0 0.0
          %776 = vmatprep.subr.mxu0 0.0
          %777 = vmatpush1.msra.mxu0 0.0
          %778 = vmatprep.subr.mxu0 0.0
          %779 = vmatpush1.msra.mxu0 0.0
          %780 = vmatprep.subr.mxu0 0.0
          %781 = vmatpush1.msra.mxu0 0.0
          %782 = vmatprep.subr.mxu0 0.0
          %783 = vmatpush1.msra.mxu0 0.0
          %784 = vmatprep.subr.mxu0 0.0
          %785 = vmatpush1.msra.mxu0 0.0
          %786 = vmatprep.subr.mxu0 0.0
          %787 = vmatpush1.msra.mxu0 0.0
          %788 = vmatprep.subr.mxu0 0.0
          %789 = vmatpush1.msra.mxu0 0.0
          %790 = vmatprep.subr.mxu0 0.0
          %791 = vmatpush1.msra.mxu0 0.0
          %792 = vmatprep.subr.mxu0 0.0
          %793 = vmatpush1.msra.mxu0 0.0
          %794 = vmatprep.subr.mxu0 0.0
          %795 = vmatpush1.msra.mxu0 0.0
          %796 = vmatprep.subr.mxu0 0.0
          %797 = vmatpush1.msra.mxu0 0.0
          %798 = vmatprep.mubr.f32.mxu0 0.0
          %799 = vmatmul.mubr.f32.gmra.mrb[0].mxu0 %v729
          %v800 = vpop.f32.mrb[0].mxu0
          %v801 = vadd.f32 %v726, %v800
          %v802 = vpop.f32.mrb[0].mxu0
          %803 = vmatprep.mubr.f32.mxu0 0.0
          %804 = vmatmul.mubr.f32.gmra.mrb[0].mxu0 %v732
          %v805 = vpop.f32.mrb[0].mxu0
          %v806 = vadd.f32 %v726, %v805
          %v807 = vpop.f32.mrb[0].mxu0
          %808 = vdwg.mxu0
          %v809 = vld [vmem:[%s5] sm:$0xff]
          %v810 = vld [vmem:[%s5 + $0x8] sm:$0xff]
          %v811 = vld [vmem:[%s5 + $0x10] sm:$0xff]
          %v812 = vld [vmem:[%s5 + $0x18] sm:$0xff]
          %v813 = vld [vmem:[%s5 + $0x20] sm:$0xff]
          %v814 = vld [vmem:[%s5 + $0x28] sm:$0xff]
          %v815 = vld [vmem:[%s5 + $0x30] sm:$0xff]
          %v816 = vld [vmem:[%s5 + $0x38] sm:$0xff]
          %v817 = vld [vmem:[%s6] sm:$0x1]
          %v819 = vlaneseq
          %v820 = vshrl.u32 %v819, 7
          %v821 = vsub.s32 0, %v820
          %v822 = vrot.slane %v817, %v821
          %824 = vmatprep.subr.mxu0 0.0
          %825 = vmatpush1.msra.mxu0 %v809
          %826 = vmatprep.subr.mxu0 0.0
          %827 = vmatpush1.msra.mxu0 %v810
          %828 = vmatprep.subr.mxu0 0.0
          %829 = vmatpush1.msra.mxu0 %v811
          %830 = vmatprep.subr.mxu0 0.0
          %831 = vmatpush1.msra.mxu0 %v812
          %832 = vmatprep.subr.mxu0 0.0
          %833 = vmatpush1.msra.mxu0 %v813
          %834 = vmatprep.subr.mxu0 0.0
          %835 = vmatpush1.msra.mxu0 %v814
          %836 = vmatprep.subr.mxu0 0.0
          %837 = vmatpush1.msra.mxu0 %v815
          %838 = vmatprep.subr.mxu0 0.0
          %839 = vmatpush1.msra.mxu0 %v816
          %840 = vmatprep.subr.mxu0 0.0
          %841 = vmatpush1.msra.mxu0 0.0
          %842 = vmatprep.subr.mxu0 0.0
          %843 = vmatpush1.msra.mxu0 0.0
          %844 = vmatprep.subr.mxu0 0.0
          %845 = vmatpush1.msra.mxu0 0.0
          %846 = vmatprep.subr.mxu0 0.0
          %847 = vmatpush1.msra.mxu0 0.0
          %848 = vmatprep.subr.mxu0 0.0
          %849 = vmatpush1.msra.mxu0 0.0
          %850 = vmatprep.subr.mxu0 0.0
          %851 = vmatpush1.msra.mxu0 0.0
          %852 = vmatprep.subr.mxu0 0.0
          %853 = vmatpush1.msra.mxu0 0.0
          %854 = vmatprep.subr.mxu0 0.0
          %855 = vmatpush1.msra.mxu0 0.0
          %856 = vmatprep.subr.mxu0 0.0
          %857 = vmatpush1.msra.mxu0 0.0
          %858 = vmatprep.subr.mxu0 0.0
          %859 = vmatpush1.msra.mxu0 0.0
          %860 = vmatprep.subr.mxu0 0.0
          %861 = vmatpush1.msra.mxu0 0.0
          %862 = vmatprep.subr.mxu0 0.0
          %863 = vmatpush1.msra.mxu0 0.0
          %864 = vmatprep.subr.mxu0 0.0
          %865 = vmatpush1.msra.mxu0 0.0
          %866 = vmatprep.subr.mxu0 0.0
          %867 = vmatpush1.msra.mxu0 0.0
          %868 = vmatprep.subr.mxu0 0.0
          %869 = vmatpush1.msra.mxu0 0.0
          %870 = vmatprep.subr.mxu0 0.0
          %871 = vmatpush1.msra.mxu0 0.0
          %872 = vmatprep.subr.mxu0 0.0
          %873 = vmatpush1.msra.mxu0 0.0
          %874 = vmatprep.subr.mxu0 0.0
          %875 = vmatpush1.msra.mxu0 0.0
          %876 = vmatprep.subr.mxu0 0.0
          %877 = vmatpush1.msra.mxu0 0.0
          %878 = vmatprep.subr.mxu0 0.0
          %879 = vmatpush1.msra.mxu0 0.0
          %880 = vmatprep.subr.mxu0 0.0
          %881 = vmatpush1.msra.mxu0 0.0
          %882 = vmatprep.subr.mxu0 0.0
          %883 = vmatpush1.msra.mxu0 0.0
          %884 = vmatprep.subr.mxu0 0.0
          %885 = vmatpush1.msra.mxu0 0.0
          %886 = vmatprep.subr.mxu0 0.0
          %887 = vmatpush1.msra.mxu0 0.0
          %888 = vmatprep.mubr.f32.mxu0 0.0
          %889 = vmatmul.mubr.f32.gmra.mrb[0].mxu0 %v729
          %v890 = vpop.f32.mrb[0].mxu0
          %v891 = vadd.f32 %v822, %v890
          %v892 = vpop.f32.mrb[0].mxu0
          %893 = vmatprep.mubr.f32.mxu0 0.0
          %894 = vmatmul.mubr.f32.gmra.mrb[0].mxu0 %v732
          %v895 = vpop.f32.mrb[0].mxu0
          %v896 = vadd.f32 %v822, %v895
          %v897 = vpop.f32.mrb[0].mxu0
          %898 = vdwg.mxu0
          %v899 = vld [vmem:[%s7] sm:$0xff]
          %v900 = vld [vmem:[%s7 + $0x8] sm:$0xff]
          %v901 = vld [vmem:[%s7 + $0x10] sm:$0xff]
          %v902 = vld [vmem:[%s7 + $0x18] sm:$0xff]
          %v903 = vld [vmem:[%s7 + $0x20] sm:$0xff]
          %v904 = vld [vmem:[%s7 + $0x28] sm:$0xff]
          %v905 = vld [vmem:[%s7 + $0x30] sm:$0xff]
          %v906 = vld [vmem:[%s7 + $0x38] sm:$0xff]
          %v907 = vld [vmem:[%s8] sm:$0x1]
          %v909 = vlaneseq
          %v910 = vshrl.u32 %v909, 7
          %v911 = vsub.s32 0, %v910
          %v912 = vrot.slane %v907, %v911
          %914 = vmatprep.subr.mxu0 0.0
          %915 = vmatpush1.msra.mxu0 %v899
          %916 = vmatprep.subr.mxu0 0.0
          %917 = vmatpush1.msra.mxu0 %v900
          %918 = vmatprep.subr.mxu0 0.0
          %919 = vmatpush1.msra.mxu0 %v901
          %920 = vmatprep.subr.mxu0 0.0
          %921 = vmatpush1.msra.mxu0 %v902
          %922 = vmatprep.subr.mxu0 0.0
          %923 = vmatpush1.msra.mxu0 %v903
          %924 = vmatprep.subr.mxu0 0.0
          %925 = vmatpush1.msra.mxu0 %v904
          %926 = vmatprep.subr.mxu0 0.0
          %927 = vmatpush1.msra.mxu0 %v905
          %928 = vmatprep.subr.mxu0 0.0
          %929 = vmatpush1.msra.mxu0 %v906
          %930 = vmatprep.subr.mxu0 0.0
          %931 = vmatpush1.msra.mxu0 0.0
          %932 = vmatprep.subr.mxu0 0.0
          %933 = vmatpush1.msra.mxu0 0.0
          %934 = vmatprep.subr.mxu0 0.0
          %935 = vmatpush1.msra.mxu0 0.0
          %936 = vmatprep.subr.mxu0 0.0
          %937 = vmatpush1.msra.mxu0 0.0
          %938 = vmatprep.subr.mxu0 0.0
          %939 = vmatpush1.msra.mxu0 0.0
          %940 = vmatprep.subr.mxu0 0.0
          %941 = vmatpush1.msra.mxu0 0.0
          %942 = vmatprep.subr.mxu0 0.0
          %943 = vmatpush1.msra.mxu0 0.0
          %944 = vmatprep.subr.mxu0 0.0
          %945 = vmatpush1.msra.mxu0 0.0
          %946 = vmatprep.subr.mxu0 0.0
          %947 = vmatpush1.msra.mxu0 0.0
          %948 = vmatprep.subr.mxu0 0.0
          %949 = vmatpush1.msra.mxu0 0.0
          %950 = vmatprep.subr.mxu0 0.0
          %951 = vmatpush1.msra.mxu0 0.0
          %952 = vmatprep.subr.mxu0 0.0
          %953 = vmatpush1.msra.mxu0 0.0
          %954 = vmatprep.subr.mxu0 0.0
          %955 = vmatpush1.msra.mxu0 0.0
          %956 = vmatprep.subr.mxu0 0.0
          %957 = vmatpush1.msra.mxu0 0.0
          %958 = vmatprep.subr.mxu0 0.0
          %959 = vmatpush1.msra.mxu0 0.0
          %960 = vmatprep.subr.mxu0 0.0
          %961 = vmatpush1.msra.mxu0 0.0
          %962 = vmatprep.subr.mxu0 0.0
          %963 = vmatpush1.msra.mxu0 0.0
          %964 = vmatprep.subr.mxu0 0.0
          %965 = vmatpush1.msra.mxu0 0.0
          %966 = vmatprep.subr.mxu0 0.0
          %967 = vmatpush1.msra.mxu0 0.0
          %968 = vmatprep.subr.mxu0 0.0
          %969 = vmatpush1.msra.mxu0 0.0
          %970 = vmatprep.subr.mxu0 0.0
          %971 = vmatpush1.msra.mxu0 0.0
          %972 = vmatprep.subr.mxu0 0.0
          %973 = vmatpush1.msra.mxu0 0.0
          %974 = vmatprep.subr.mxu0 0.0
          %975 = vmatpush1.msra.mxu0 0.0
          %976 = vmatprep.subr.mxu0 0.0
          %977 = vmatpush1.msra.mxu0 0.0
          %978 = vmatprep.mubr.f32.mxu0 0.0
          %979 = vmatmul.mubr.f32.gmra.mrb[0].mxu0 %v729
          %v980 = vpop.f32.mrb[0].mxu0
          %v981 = vadd.f32 %v912, %v980
          %v982 = vpop.f32.mrb[0].mxu0
          %983 = vmatprep.mubr.f32.mxu0 0.0
          %984 = vmatmul.mubr.f32.gmra.mrb[0].mxu0 %v732
          %v985 = vpop.f32.mrb[0].mxu0
          %v986 = vadd.f32 %v912, %v985
          %v987 = vpop.f32.mrb[0].mxu0
          %988 = vdwg.mxu0
          %vm989 = vcmask 130048
          %990 = vst.msk [vmem:[#allocation5] sm:$0xff] %vm989, %v801
          %991 = vst.msk [vmem:[#allocation5 + $0x8] sm:$0xff] %vm989, %v806
          %992 = vst.msk [vmem:[#allocation6] sm:$0xff] %vm989, %v891
          %993 = vst.msk [vmem:[#allocation6 + $0x8] sm:$0xff] %vm989, %v896
          %994 = vst.msk [vmem:[#allocation7] sm:$0xff] %vm989, %v981
          %995 = vst.msk [vmem:[#allocation7 + $0x8] sm:$0xff] %vm989, %v986
          %998 = vrot.lane.b32.xlu0 %v801, 112
          %v999 = vpop.permute.xlu0 %998
          %1000 = vrot.lane.b32.xlu0 %v806, 112
          %v1001 = vpop.permute.xlu0 %1000
          %s1004 = scalar_lea.vmem [#allocation5], 16
          %1005 = vst.msk [vmem:[%s1004] sm:$0xff] %vm989, %v999
          %1006 = vst.msk [vmem:[%s1004 + $0x8] sm:$0xff] %vm989, %v1001
          %1009 = vrot.lane.b32.xlu0 %v891, 112
          %v1010 = vpop.permute.xlu0 %1009
          %1011 = vrot.lane.b32.xlu0 %v896, 112
          %v1012 = vpop.permute.xlu0 %1011
          %s1015 = scalar_lea.vmem [#allocation6], 16
          %1016 = vst.msk [vmem:[%s1015] sm:$0xff] %vm989, %v1010
          %1017 = vst.msk [vmem:[%s1015 + $0x8] sm:$0xff] %vm989, %v1012
          %1020 = vrot.lane.b32.xlu0 %v981, 112
          %v1021 = vpop.permute.xlu0 %1020
          %1022 = vrot.lane.b32.xlu0 %v986, 112
          %v1023 = vpop.permute.xlu0 %1022
          %s1026 = scalar_lea.vmem [#allocation7], 16
          %1027 = vst.msk [vmem:[%s1026] sm:$0xff] %vm989, %v1021
          %1028 = vst.msk [vmem:[%s1026 + $0x8] sm:$0xff] %vm989, %v1023
          %1029 = vrot.lane.b32.xlu0 %v801, 96
          %v1030 = vpop.permute.xlu0 %1029
          %1031 = vrot.lane.b32.xlu0 %v806, 96
          %v1032 = vpop.permute.xlu0 %1031
          %s1035 = scalar_lea.vmem [#allocation5], 32
          %1036 = vst.msk [vmem:[%s1035] sm:$0xff] %vm989, %v1030
          %1037 = vst.msk [vmem:[%s1035 + $0x8] sm:$0xff] %vm989, %v1032
          %1038 = vrot.lane.b32.xlu0 %v891, 96
          %v1039 = vpop.permute.xlu0 %1038
          %1040 = vrot.lane.b32.xlu0 %v896, 96
          %v1041 = vpop.permute.xlu0 %1040
          %s1044 = scalar_lea.vmem [#allocation6], 32
          %1045 = vst.msk [vmem:[%s1044] sm:$0xff] %vm989, %v1039
          %1046 = vst.msk [vmem:[%s1044 + $0x8] sm:$0xff] %vm989, %v1041
          %1047 = vrot.lane.b32.xlu0 %v981, 96
          %v1048 = vpop.permute.xlu0 %1047
          %1049 = vrot.lane.b32.xlu0 %v986, 96
          %v1050 = vpop.permute.xlu0 %1049
          %s1053 = scalar_lea.vmem [#allocation7], 32
          %1054 = vst.msk [vmem:[%s1053] sm:$0xff] %vm989, %v1048
          %1055 = vst.msk [vmem:[%s1053 + $0x8] sm:$0xff] %vm989, %v1050
          %1056 = vrot.lane.b32.xlu0 %v801, 80
          %v1057 = vpop.permute.xlu0 %1056
          %1058 = vrot.lane.b32.xlu0 %v806, 80
          %v1059 = vpop.permute.xlu0 %1058
          %s1062 = scalar_lea.vmem [#allocation5], 48
          %1063 = vst.msk [vmem:[%s1062] sm:$0xff] %vm989, %v1057
          %1064 = vst.msk [vmem:[%s1062 + $0x8] sm:$0xff] %vm989, %v1059
          %1065 = vrot.lane.b32.xlu0 %v891, 80
          %v1066 = vpop.permute.xlu0 %1065
          %1067 = vrot.lane.b32.xlu0 %v896, 80
          %v1068 = vpop.permute.xlu0 %1067
          %s1071 = scalar_lea.vmem [#allocation6], 48
          %1072 = vst.msk [vmem:[%s1071] sm:$0xff] %vm989, %v1066
          %1073 = vst.msk [vmem:[%s1071 + $0x8] sm:$0xff] %vm989, %v1068
          %1074 = vrot.lane.b32.xlu0 %v981, 80
          %v1075 = vpop.permute.xlu0 %1074
          %1076 = vrot.lane.b32.xlu0 %v986, 80
          %v1077 = vpop.permute.xlu0 %1076
          %s1080 = scalar_lea.vmem [#allocation7], 48
          %1081 = vst.msk [vmem:[%s1080] sm:$0xff] %vm989, %v1075
          %1082 = vst.msk [vmem:[%s1080 + $0x8] sm:$0xff] %vm989, %v1077
          %v1083 = vld [vmem:[#allocation5] sm:$0xff]
          %v1084 = vld [vmem:[#allocation5 + $0x8] sm:$0xff]
          %v1085 = vld [vmem:[#allocation5 + $0x10] sm:$0xff]
          %v1086 = vld [vmem:[#allocation5 + $0x18] sm:$0xff]
          %v1087 = vld [vmem:[#allocation5 + $0x20] sm:$0xff]
          %v1088 = vld [vmem:[#allocation5 + $0x28] sm:$0xff]
          %v1089 = vld [vmem:[#allocation5 + $0x30] sm:$0xff]
          %v1090 = vld [vmem:[#allocation5 + $0x38] sm:$0xff]
          %v1091 = vld [vmem:[#allocation6] sm:$0xff]
          %v1092 = vld [vmem:[#allocation6 + $0x8] sm:$0xff]
          %v1093 = vld [vmem:[#allocation6 + $0x10] sm:$0xff]
          %v1094 = vld [vmem:[#allocation6 + $0x18] sm:$0xff]
          %v1095 = vld [vmem:[#allocation6 + $0x20] sm:$0xff]
          %v1096 = vld [vmem:[#allocation6 + $0x28] sm:$0xff]
          %v1097 = vld [vmem:[#allocation6 + $0x30] sm:$0xff]
          %v1098 = vld [vmem:[#allocation6 + $0x38] sm:$0xff]
          %v1099 = vld [vmem:[#allocation7] sm:$0xff]
          %v1100 = vld [vmem:[#allocation7 + $0x8] sm:$0xff]
          %v1101 = vld [vmem:[#allocation7 + $0x10] sm:$0xff]
          %v1102 = vld [vmem:[#allocation7 + $0x18] sm:$0xff]
          %v1103 = vld [vmem:[#allocation7 + $0x20] sm:$0xff]
          %v1104 = vld [vmem:[#allocation7 + $0x28] sm:$0xff]
          %v1105 = vld [vmem:[#allocation7 + $0x30] sm:$0xff]
          %v1106 = vld [vmem:[#allocation7 + $0x38] sm:$0xff]
          %v1107 = vlaneseq
          %v1108 = vshrl.u32 %v1107, 7
          %v1109 = vlaneseq
          %v1110 = vand.u32 %v1109, 127
          %vm1111 = vcmp.gt.s32.totalorder %v1110, %v1108
          %v1113 = vsel %vm989, %v1083, 0
          %v1116 = vsel %vm989, %v1091, 0
          %1118 = vmatprep.subr.mxu0 0.0
          %1119 = vmatpush1.xpose.msra.mxu0 %v1116
          %1120 = vmatprep.subr.mxu0 0.0
          %1121 = vmatpush1.xpose.msra.mxu0 0.0
          %1122 = vmatprep.subr.mxu0 0.0
          %1123 = vmatpush1.xpose.msra.mxu0 0.0
          %1124 = vmatprep.subr.mxu0 0.0
          %1125 = vmatpush1.xpose.msra.mxu0 0.0
          %1126 = vmatprep.subr.mxu0 0.0
          %1127 = vmatpush1.xpose.msra.mxu0 0.0
          %1128 = vmatprep.subr.mxu0 0.0
          %1129 = vmatpush1.xpose.msra.mxu0 0.0
          %1130 = vmatprep.subr.mxu0 0.0
          %1131 = vmatpush1.xpose.msra.mxu0 0.0
          %1132 = vmatprep.subr.mxu0 0.0
          %1133 = vmatpush1.xpose.msra.mxu0 0.0
          %1134 = vmatprep.subr.mxu0 0.0
          %1135 = vmatpush1.xpose.msra.mxu0 0.0
          %1136 = vmatprep.subr.mxu0 0.0
          %1137 = vmatpush1.xpose.msra.mxu0 0.0
          %1138 = vmatprep.subr.mxu0 0.0
          %1139 = vmatpush1.xpose.msra.mxu0 0.0
          %1140 = vmatprep.subr.mxu0 0.0
          %1141 = vmatpush1.xpose.msra.mxu0 0.0
          %1142 = vmatprep.subr.mxu0 0.0
          %1143 = vmatpush1.xpose.msra.mxu0 0.0
          %1144 = vmatprep.subr.mxu0 0.0
          %1145 = vmatpush1.xpose.msra.mxu0 0.0
          %1146 = vmatprep.subr.mxu0 0.0
          %1147 = vmatpush1.xpose.msra.mxu0 0.0
          %1148 = vmatprep.subr.mxu0 0.0
          %1149 = vmatpush1.xpose.msra.mxu0 0.0
          %1150 = vmatprep.subr.mxu0 0.0
          %1151 = vmatpush1.xpose.msra.mxu0 0.0
          %1152 = vmatprep.subr.mxu0 0.0
          %1153 = vmatpush1.xpose.msra.mxu0 0.0
          %1154 = vmatprep.subr.mxu0 0.0
          %1155 = vmatpush1.xpose.msra.mxu0 0.0
          %1156 = vmatprep.subr.mxu0 0.0
          %1157 = vmatpush1.xpose.msra.mxu0 0.0
          %1158 = vmatprep.subr.mxu0 0.0
          %1159 = vmatpush1.xpose.msra.mxu0 0.0
          %1160 = vmatprep.subr.mxu0 0.0
          %1161 = vmatpush1.xpose.msra.mxu0 0.0
          %1162 = vmatprep.subr.mxu0 0.0
          %1163 = vmatpush1.xpose.msra.mxu0 0.0
          %1164 = vmatprep.subr.mxu0 0.0
          %1165 = vmatpush1.xpose.msra.mxu0 0.0
          %1166 = vmatprep.subr.mxu0 0.0
          %1167 = vmatpush1.xpose.msra.mxu0 0.0
          %1168 = vmatprep.subr.mxu0 0.0
          %1169 = vmatpush1.xpose.msra.mxu0 0.0
          %1170 = vmatprep.subr.mxu0 0.0
          %1171 = vmatpush1.xpose.msra.mxu0 0.0
          %1172 = vmatprep.subr.mxu0 0.0
          %1173 = vmatpush1.xpose.msra.mxu0 0.0
          %1174 = vmatprep.subr.mxu0 0.0
          %1175 = vmatpush1.xpose.msra.mxu0 0.0
          %1176 = vmatprep.subr.mxu0 0.0
          %1177 = vmatpush1.xpose.msra.mxu0 0.0
          %1178 = vmatprep.subr.mxu0 0.0
          %1179 = vmatpush1.xpose.msra.mxu0 0.0
          %1180 = vmatprep.subr.mxu0 0.0
          %1181 = vmatpush1.xpose.msra.mxu0 0.0
          %1182 = vmatprep.mubr.f32.mxu0 0.0
          %1183 = vmatmul.mubr.f32.gmra.mrb[0].mxu0 %v1113
          %v1184 = vpop.f32.mrb[0].mxu0
          %v1185 = vadd.f32 0.0, %v1184
          %v1186 = vpop.f32.mrb[0].mxu0
          %1187 = vdwg.mxu0
          %v1189 = vsel %vm989, %v1084, 0
          %v1192 = vsel %vm989, %v1092, 0
          %1194 = vmatprep.subr.mxu0 0.0
          %1195 = vmatpush1.xpose.msra.mxu0 %v1192
          %1196 = vmatprep.subr.mxu0 0.0
          %1197 = vmatpush1.xpose.msra.mxu0 0.0
          %1198 = vmatprep.subr.mxu0 0.0
          %1199 = vmatpush1.xpose.msra.mxu0 0.0
          %1200 = vmatprep.subr.mxu0 0.0
          %1201 = vmatpush1.xpose.msra.mxu0 0.0
          %1202 = vmatprep.subr.mxu0 0.0
          %1203 = vmatpush1.xpose.msra.mxu0 0.0
          %1204 = vmatprep.subr.mxu0 0.0
          %1205 = vmatpush1.xpose.msra.mxu0 0.0
          %1206 = vmatprep.subr.mxu0 0.0
          %1207 = vmatpush1.xpose.msra.mxu0 0.0
          %1208 = vmatprep.subr.mxu0 0.0
          %1209 = vmatpush1.xpose.msra.mxu0 0.0
          %1210 = vmatprep.subr.mxu0 0.0
          %1211 = vmatpush1.xpose.msra.mxu0 0.0
          %1212 = vmatprep.subr.mxu0 0.0
          %1213 = vmatpush1.xpose.msra.mxu0 0.0
          %1214 = vmatprep.subr.mxu0 0.0
          %1215 = vmatpush1.xpose.msra.mxu0 0.0
          %1216 = vmatprep.subr.mxu0 0.0
          %1217 = vmatpush1.xpose.msra.mxu0 0.0
          %1218 = vmatprep.subr.mxu0 0.0
          %1219 = vmatpush1.xpose.msra.mxu0 0.0
          %1220 = vmatprep.subr.mxu0 0.0
          %1221 = vmatpush1.xpose.msra.mxu0 0.0
          %1222 = vmatprep.subr.mxu0 0.0
          %1223 = vmatpush1.xpose.msra.mxu0 0.0
          %1224 = vmatprep.subr.mxu0 0.0
          %1225 = vmatpush1.xpose.msra.mxu0 0.0
          %1226 = vmatprep.subr.mxu0 0.0
          %1227 = vmatpush1.xpose.msra.mxu0 0.0
          %1228 = vmatprep.subr.mxu0 0.0
          %1229 = vmatpush1.xpose.msra.mxu0 0.0
          %1230 = vmatprep.subr.mxu0 0.0
          %1231 = vmatpush1.xpose.msra.mxu0 0.0
          %1232 = vmatprep.subr.mxu0 0.0
          %1233 = vmatpush1.xpose.msra.mxu0 0.0
          %1234 = vmatprep.subr.mxu0 0.0
          %1235 = vmatpush1.xpose.msra.mxu0 0.0
          %1236 = vmatprep.subr.mxu0 0.0
          %1237 = vmatpush1.xpose.msra.mxu0 0.0
          %1238 = vmatprep.subr.mxu0 0.0
          %1239 = vmatpush1.xpose.msra.mxu0 0.0
          %1240 = vmatprep.subr.mxu0 0.0
          %1241 = vmatpush1.xpose.msra.mxu0 0.0
          %1242 = vmatprep.subr.mxu0 0.0
          %1243 = vmatpush1.xpose.msra.mxu0 0.0
          %1244 = vmatprep.subr.mxu0 0.0
          %1245 = vmatpush1.xpose.msra.mxu0 0.0
          %1246 = vmatprep.subr.mxu0 0.0
          %1247 = vmatpush1.xpose.msra.mxu0 0.0
          %1248 = vmatprep.subr.mxu0 0.0
          %1249 = vmatpush1.xpose.msra.mxu0 0.0
          %1250 = vmatprep.subr.mxu0 0.0
          %1251 = vmatpush1.xpose.msra.mxu0 0.0
          %1252 = vmatprep.subr.mxu0 0.0
          %1253 = vmatpush1.xpose.msra.mxu0 0.0
          %1254 = vmatprep.subr.mxu0 0.0
          %1255 = vmatpush1.xpose.msra.mxu0 0.0
          %1256 = vmatprep.subr.mxu0 0.0
          %1257 = vmatpush1.xpose.msra.mxu0 0.0
          %1258 = vmatprep.mubr.f32.mxu0 0.0
          %1259 = vmatmul.mubr.f32.gmra.mrb[0].mxu0 %v1189
          %v1260 = vpop.f32.mrb[0].mxu0
          %v1261 = vadd.f32 0.0, %v1260
          %v1262 = vpop.f32.mrb[0].mxu0
          %1263 = vdwg.mxu0
          %v1265 = vsel %vm989, %v1085, 0
          %v1268 = vsel %vm989, %v1093, 0
          %1270 = vmatprep.subr.mxu0 0.0
          %1271 = vmatpush1.xpose.msra.mxu0 %v1268
          %1272 = vmatprep.subr.mxu0 0.0
          %1273 = vmatpush1.xpose.msra.mxu0 0.0
          %1274 = vmatprep.subr.mxu0 0.0
          %1275 = vmatpush1.xpose.msra.mxu0 0.0
          %1276 = vmatprep.subr.mxu0 0.0
          %1277 = vmatpush1.xpose.msra.mxu0 0.0
          %1278 = vmatprep.subr.mxu0 0.0
          %1279 = vmatpush1.xpose.msra.mxu0 0.0
          %1280 = vmatprep.subr.mxu0 0.0
          %1281 = vmatpush1.xpose.msra.mxu0 0.0
          %1282 = vmatprep.subr.mxu0 0.0
          %1283 = vmatpush1.xpose.msra.mxu0 0.0
          %1284 = vmatprep.subr.mxu0 0.0
          %1285 = vmatpush1.xpose.msra.mxu0 0.0
          %1286 = vmatprep.subr.mxu0 0.0
          %1287 = vmatpush1.xpose.msra.mxu0 0.0
          %1288 = vmatprep.subr.mxu0 0.0
          %1289 = vmatpush1.xpose.msra.mxu0 0.0
          %1290 = vmatprep.subr.mxu0 0.0
          %1291 = vmatpush1.xpose.msra.mxu0 0.0
          %1292 = vmatprep.subr.mxu0 0.0
          %1293 = vmatpush1.xpose.msra.mxu0 0.0
          %1294 = vmatprep.subr.mxu0 0.0
          %1295 = vmatpush1.xpose.msra.mxu0 0.0
          %1296 = vmatprep.subr.mxu0 0.0
          %1297 = vmatpush1.xpose.msra.mxu0 0.0
          %1298 = vmatprep.subr.mxu0 0.0
          %1299 = vmatpush1.xpose.msra.mxu0 0.0
          %1300 = vmatprep.subr.mxu0 0.0
          %1301 = vmatpush1.xpose.msra.mxu0 0.0
          %1302 = vmatprep.subr.mxu0 0.0
          %1303 = vmatpush1.xpose.msra.mxu0 0.0
          %1304 = vmatprep.subr.mxu0 0.0
          %1305 = vmatpush1.xpose.msra.mxu0 0.0
          %1306 = vmatprep.subr.mxu0 0.0
          %1307 = vmatpush1.xpose.msra.mxu0 0.0
          %1308 = vmatprep.subr.mxu0 0.0
          %1309 = vmatpush1.xpose.msra.mxu0 0.0
          %1310 = vmatprep.subr.mxu0 0.0
          %1311 = vmatpush1.xpose.msra.mxu0 0.0
          %1312 = vmatprep.subr.mxu0 0.0
          %1313 = vmatpush1.xpose.msra.mxu0 0.0
          %1314 = vmatprep.subr.mxu0 0.0
          %1315 = vmatpush1.xpose.msra.mxu0 0.0
          %1316 = vmatprep.subr.mxu0 0.0
          %1317 = vmatpush1.xpose.msra.mxu0 0.0
          %1318 = vmatprep.subr.mxu0 0.0
          %1319 = vmatpush1.xpose.msra.mxu0 0.0
          %1320 = vmatprep.subr.mxu0 0.0
          %1321 = vmatpush1.xpose.msra.mxu0 0.0
          %1322 = vmatprep.subr.mxu0 0.0
          %1323 = vmatpush1.xpose.msra.mxu0 0.0
          %1324 = vmatprep.subr.mxu0 0.0
          %1325 = vmatpush1.xpose.msra.mxu0 0.0
          %1326 = vmatprep.subr.mxu0 0.0
          %1327 = vmatpush1.xpose.msra.mxu0 0.0
          %1328 = vmatprep.subr.mxu0 0.0
          %1329 = vmatpush1.xpose.msra.mxu0 0.0
          %1330 = vmatprep.subr.mxu0 0.0
          %1331 = vmatpush1.xpose.msra.mxu0 0.0
          %1332 = vmatprep.subr.mxu0 0.0
          %1333 = vmatpush1.xpose.msra.mxu0 0.0
          %1334 = vmatprep.mubr.f32.mxu0 0.0
          %1335 = vmatmul.mubr.f32.gmra.mrb[0].mxu0 %v1265
          %v1336 = vpop.f32.mrb[0].mxu0
          %v1337 = vadd.f32 0.0, %v1336
          %v1338 = vpop.f32.mrb[0].mxu0
          %1339 = vdwg.mxu0
          %v1341 = vsel %vm989, %v1086, 0
          %v1344 = vsel %vm989, %v1094, 0
          %1346 = vmatprep.subr.mxu0 0.0
          %1347 = vmatpush1.xpose.msra.mxu0 %v1344
          %1348 = vmatprep.subr.mxu0 0.0
          %1349 = vmatpush1.xpose.msra.mxu0 0.0
          %1350 = vmatprep.subr.mxu0 0.0
          %1351 = vmatpush1.xpose.msra.mxu0 0.0
          %1352 = vmatprep.subr.mxu0 0.0
          %1353 = vmatpush1.xpose.msra.mxu0 0.0
          %1354 = vmatprep.subr.mxu0 0.0
          %1355 = vmatpush1.xpose.msra.mxu0 0.0
          %1356 = vmatprep.subr.mxu0 0.0
          %1357 = vmatpush1.xpose.msra.mxu0 0.0
          %1358 = vmatprep.subr.mxu0 0.0
          %1359 = vmatpush1.xpose.msra.mxu0 0.0
          %1360 = vmatprep.subr.mxu0 0.0
          %1361 = vmatpush1.xpose.msra.mxu0 0.0
          %1362 = vmatprep.subr.mxu0 0.0
          %1363 = vmatpush1.xpose.msra.mxu0 0.0
          %1364 = vmatprep.subr.mxu0 0.0
          %1365 = vmatpush1.xpose.msra.mxu0 0.0
          %1366 = vmatprep.subr.mxu0 0.0
          %1367 = vmatpush1.xpose.msra.mxu0 0.0
          %1368 = vmatprep.subr.mxu0 0.0
          %1369 = vmatpush1.xpose.msra.mxu0 0.0
          %1370 = vmatprep.subr.mxu0 0.0
          %1371 = vmatpush1.xpose.msra.mxu0 0.0
          %1372 = vmatprep.subr.mxu0 0.0
          %1373 = vmatpush1.xpose.msra.mxu0 0.0
          %1374 = vmatprep.subr.mxu0 0.0
          %1375 = vmatpush1.xpose.msra.mxu0 0.0
          %1376 = vmatprep.subr.mxu0 0.0
          %1377 = vmatpush1.xpose.msra.mxu0 0.0
          %1378 = vmatprep.subr.mxu0 0.0
          %1379 = vmatpush1.xpose.msra.mxu0 0.0
          %1380 = vmatprep.subr.mxu0 0.0
          %1381 = vmatpush1.xpose.msra.mxu0 0.0
          %1382 = vmatprep.subr.mxu0 0.0
          %1383 = vmatpush1.xpose.msra.mxu0 0.0
          %1384 = vmatprep.subr.mxu0 0.0
          %1385 = vmatpush1.xpose.msra.mxu0 0.0
          %1386 = vmatprep.subr.mxu0 0.0
          %1387 = vmatpush1.xpose.msra.mxu0 0.0
          %1388 = vmatprep.subr.mxu0 0.0
          %1389 = vmatpush1.xpose.msra.mxu0 0.0
          %1390 = vmatprep.subr.mxu0 0.0
          %1391 = vmatpush1.xpose.msra.mxu0 0.0
          %1392 = vmatprep.subr.mxu0 0.0
          %1393 = vmatpush1.xpose.msra.mxu0 0.0
          %1394 = vmatprep.subr.mxu0 0.0
          %1395 = vmatpush1.xpose.msra.mxu0 0.0
          %1396 = vmatprep.subr.mxu0 0.0
          %1397 = vmatpush1.xpose.msra.mxu0 0.0
          %1398 = vmatprep.subr.mxu0 0.0
          %1399 = vmatpush1.xpose.msra.mxu0 0.0
          %1400 = vmatprep.subr.mxu0 0.0
          %1401 = vmatpush1.xpose.msra.mxu0 0.0
          %1402 = vmatprep.subr.mxu0 0.0
          %1403 = vmatpush1.xpose.msra.mxu0 0.0
          %1404 = vmatprep.subr.mxu0 0.0
          %1405 = vmatpush1.xpose.msra.mxu0 0.0
          %1406 = vmatprep.subr.mxu0 0.0
          %1407 = vmatpush1.xpose.msra.mxu0 0.0
          %1408 = vmatprep.subr.mxu0 0.0
          %1409 = vmatpush1.xpose.msra.mxu0 0.0
          %1410 = vmatprep.mubr.f32.mxu0 0.0
          %1411 = vmatmul.mubr.f32.gmra.mrb[0].mxu0 %v1341
          %v1412 = vpop.f32.mrb[0].mxu0
          %v1413 = vadd.f32 0.0, %v1412
          %v1414 = vpop.f32.mrb[0].mxu0
          %1415 = vdwg.mxu0
          %v1417 = vsel %vm989, %v1087, 0
          %v1420 = vsel %vm989, %v1095, 0
          %1422 = vmatprep.subr.mxu0 0.0
          %1423 = vmatpush1.xpose.msra.mxu0 %v1420
          %1424 = vmatprep.subr.mxu0 0.0
          %1425 = vmatpush1.xpose.msra.mxu0 0.0
          %1426 = vmatprep.subr.mxu0 0.0
          %1427 = vmatpush1.xpose.msra.mxu0 0.0
          %1428 = vmatprep.subr.mxu0 0.0
          %1429 = vmatpush1.xpose.msra.mxu0 0.0
          %1430 = vmatprep.subr.mxu0 0.0
          %1431 = vmatpush1.xpose.msra.mxu0 0.0
          %1432 = vmatprep.subr.mxu0 0.0
          %1433 = vmatpush1.xpose.msra.mxu0 0.0
          %1434 = vmatprep.subr.mxu0 0.0
          %1435 = vmatpush1.xpose.msra.mxu0 0.0
          %1436 = vmatprep.subr.mxu0 0.0
          %1437 = vmatpush1.xpose.msra.mxu0 0.0
          %1438 = vmatprep.subr.mxu0 0.0
          %1439 = vmatpush1.xpose.msra.mxu0 0.0
          %1440 = vmatprep.subr.mxu0 0.0
          %1441 = vmatpush1.xpose.msra.mxu0 0.0
          %1442 = vmatprep.subr.mxu0 0.0
          %1443 = vmatpush1.xpose.msra.mxu0 0.0
          %1444 = vmatprep.subr.mxu0 0.0
          %1445 = vmatpush1.xpose.msra.mxu0 0.0
          %1446 = vmatprep.subr.mxu0 0.0
          %1447 = vmatpush1.xpose.msra.mxu0 0.0
          %1448 = vmatprep.subr.mxu0 0.0
          %1449 = vmatpush1.xpose.msra.mxu0 0.0
          %1450 = vmatprep.subr.mxu0 0.0
          %1451 = vmatpush1.xpose.msra.mxu0 0.0
          %1452 = vmatprep.subr.mxu0 0.0
          %1453 = vmatpush1.xpose.msra.mxu0 0.0
          %1454 = vmatprep.subr.mxu0 0.0
          %1455 = vmatpush1.xpose.msra.mxu0 0.0
          %1456 = vmatprep.subr.mxu0 0.0
          %1457 = vmatpush1.xpose.msra.mxu0 0.0
          %1458 = vmatprep.subr.mxu0 0.0
          %1459 = vmatpush1.xpose.msra.mxu0 0.0
          %1460 = vmatprep.subr.mxu0 0.0
          %1461 = vmatpush1.xpose.msra.mxu0 0.0
          %1462 = vmatprep.subr.mxu0 0.0
          %1463 = vmatpush1.xpose.msra.mxu0 0.0
          %1464 = vmatprep.subr.mxu0 0.0
          %1465 = vmatpush1.xpose.msra.mxu0 0.0
          %1466 = vmatprep.subr.mxu0 0.0
          %1467 = vmatpush1.xpose.msra.mxu0 0.0
          %1468 = vmatprep.subr.mxu0 0.0
          %1469 = vmatpush1.xpose.msra.mxu0 0.0
          %1470 = vmatprep.subr.mxu0 0.0
          %1471 = vmatpush1.xpose.msra.mxu0 0.0
          %1472 = vmatprep.subr.mxu0 0.0
          %1473 = vmatpush1.xpose.msra.mxu0 0.0
          %1474 = vmatprep.subr.mxu0 0.0
          %1475 = vmatpush1.xpose.msra.mxu0 0.0
          %1476 = vmatprep.subr.mxu0 0.0
          %1477 = vmatpush1.xpose.msra.mxu0 0.0
          %1478 = vmatprep.subr.mxu0 0.0
          %1479 = vmatpush1.xpose.msra.mxu0 0.0
          %1480 = vmatprep.subr.mxu0 0.0
          %1481 = vmatpush1.xpose.msra.mxu0 0.0
          %1482 = vmatprep.subr.mxu0 0.0
          %1483 = vmatpush1.xpose.msra.mxu0 0.0
          %1484 = vmatprep.subr.mxu0 0.0
          %1485 = vmatpush1.xpose.msra.mxu0 0.0
          %1486 = vmatprep.mubr.f32.mxu0 0.0
          %1487 = vmatmul.mubr.f32.gmra.mrb[0].mxu0 %v1417
          %v1488 = vpop.f32.mrb[0].mxu0
          %v1489 = vadd.f32 0.0, %v1488
          %v1490 = vpop.f32.mrb[0].mxu0
          %1491 = vdwg.mxu0
          %v1493 = vsel %vm989, %v1088, 0
          %v1496 = vsel %vm989, %v1096, 0
          %1498 = vmatprep.subr.mxu0 0.0
          %1499 = vmatpush1.xpose.msra.mxu0 %v1496
          %1500 = vmatprep.subr.mxu0 0.0
          %1501 = vmatpush1.xpose.msra.mxu0 0.0
          %1502 = vmatprep.subr.mxu0 0.0
          %1503 = vmatpush1.xpose.msra.mxu0 0.0
          %1504 = vmatprep.subr.mxu0 0.0
          %1505 = vmatpush1.xpose.msra.mxu0 0.0
          %1506 = vmatprep.subr.mxu0 0.0
          %1507 = vmatpush1.xpose.msra.mxu0 0.0
          %1508 = vmatprep.subr.mxu0 0.0
          %1509 = vmatpush1.xpose.msra.mxu0 0.0
          %1510 = vmatprep.subr.mxu0 0.0
          %1511 = vmatpush1.xpose.msra.mxu0 0.0
          %1512 = vmatprep.subr.mxu0 0.0
          %1513 = vmatpush1.xpose.msra.mxu0 0.0
          %1514 = vmatprep.subr.mxu0 0.0
          %1515 = vmatpush1.xpose.msra.mxu0 0.0
          %1516 = vmatprep.subr.mxu0 0.0
          %1517 = vmatpush1.xpose.msra.mxu0 0.0
          %1518 = vmatprep.subr.mxu0 0.0
          %1519 = vmatpush1.xpose.msra.mxu0 0.0
          %1520 = vmatprep.subr.mxu0 0.0
          %1521 = vmatpush1.xpose.msra.mxu0 0.0
          %1522 = vmatprep.subr.mxu0 0.0
          %1523 = vmatpush1.xpose.msra.mxu0 0.0
          %1524 = vmatprep.subr.mxu0 0.0
          %1525 = vmatpush1.xpose.msra.mxu0 0.0
          %1526 = vmatprep.subr.mxu0 0.0
          %1527 = vmatpush1.xpose.msra.mxu0 0.0
          %1528 = vmatprep.subr.mxu0 0.0
          %1529 = vmatpush1.xpose.msra.mxu0 0.0
          %1530 = vmatprep.subr.mxu0 0.0
          %1531 = vmatpush1.xpose.msra.mxu0 0.0
          %1532 = vmatprep.subr.mxu0 0.0
          %1533 = vmatpush1.xpose.msra.mxu0 0.0
          %1534 = vmatprep.subr.mxu0 0.0
          %1535 = vmatpush1.xpose.msra.mxu0 0.0
          %1536 = vmatprep.subr.mxu0 0.0
          %1537 = vmatpush1.xpose.msra.mxu0 0.0
          %1538 = vmatprep.subr.mxu0 0.0
          %1539 = vmatpush1.xpose.msra.mxu0 0.0
          %1540 = vmatprep.subr.mxu0 0.0
          %1541 = vmatpush1.xpose.msra.mxu0 0.0
          %1542 = vmatprep.subr.mxu0 0.0
          %1543 = vmatpush1.xpose.msra.mxu0 0.0
          %1544 = vmatprep.subr.mxu0 0.0
          %1545 = vmatpush1.xpose.msra.mxu0 0.0
          %1546 = vmatprep.subr.mxu0 0.0
          %1547 = vmatpush1.xpose.msra.mxu0 0.0
          %1548 = vmatprep.subr.mxu0 0.0
          %1549 = vmatpush1.xpose.msra.mxu0 0.0
          %1550 = vmatprep.subr.mxu0 0.0
          %1551 = vmatpush1.xpose.msra.mxu0 0.0
          %1552 = vmatprep.subr.mxu0 0.0
          %1553 = vmatpush1.xpose.msra.mxu0 0.0
          %1554 = vmatprep.subr.mxu0 0.0
          %1555 = vmatpush1.xpose.msra.mxu0 0.0
          %1556 = vmatprep.subr.mxu0 0.0
          %1557 = vmatpush1.xpose.msra.mxu0 0.0
          %1558 = vmatprep.subr.mxu0 0.0
          %1559 = vmatpush1.xpose.msra.mxu0 0.0
          %1560 = vmatprep.subr.mxu0 0.0
          %1561 = vmatpush1.xpose.msra.mxu0 0.0
          %1562 = vmatprep.mubr.f32.mxu0 0.0
          %1563 = vmatmul.mubr.f32.gmra.mrb[0].mxu0 %v1493
          %v1564 = vpop.f32.mrb[0].mxu0
          %v1565 = vadd.f32 0.0, %v1564
          %v1566 = vpop.f32.mrb[0].mxu0
          %1567 = vdwg.mxu0
          %v1569 = vsel %vm989, %v1089, 0
          %v1572 = vsel %vm989, %v1097, 0
          %1574 = vmatprep.subr.mxu0 0.0
          %1575 = vmatpush1.xpose.msra.mxu0 %v1572
          %1576 = vmatprep.subr.mxu0 0.0
          %1577 = vmatpush1.xpose.msra.mxu0 0.0
          %1578 = vmatprep.subr.mxu0 0.0
          %1579 = vmatpush1.xpose.msra.mxu0 0.0
          %1580 = vmatprep.subr.mxu0 0.0
          %1581 = vmatpush1.xpose.msra.mxu0 0.0
          %1582 = vmatprep.subr.mxu0 0.0
          %1583 = vmatpush1.xpose.msra.mxu0 0.0
          %1584 = vmatprep.subr.mxu0 0.0
          %1585 = vmatpush1.xpose.msra.mxu0 0.0
          %1586 = vmatprep.subr.mxu0 0.0
          %1587 = vmatpush1.xpose.msra.mxu0 0.0
          %1588 = vmatprep.subr.mxu0 0.0
          %1589 = vmatpush1.xpose.msra.mxu0 0.0
          %1590 = vmatprep.subr.mxu0 0.0
          %1591 = vmatpush1.xpose.msra.mxu0 0.0
          %1592 = vmatprep.subr.mxu0 0.0
          %1593 = vmatpush1.xpose.msra.mxu0 0.0
          %1594 = vmatprep.subr.mxu0 0.0
          %1595 = vmatpush1.xpose.msra.mxu0 0.0
          %1596 = vmatprep.subr.mxu0 0.0
          %1597 = vmatpush1.xpose.msra.mxu0 0.0
          %1598 = vmatprep.subr.mxu0 0.0
          %1599 = vmatpush1.xpose.msra.mxu0 0.0
          %1600 = vmatprep.subr.mxu0 0.0
          %1601 = vmatpush1.xpose.msra.mxu0 0.0
          %1602 = vmatprep.subr.mxu0 0.0
          %1603 = vmatpush1.xpose.msra.mxu0 0.0
          %1604 = vmatprep.subr.mxu0 0.0
          %1605 = vmatpush1.xpose.msra.mxu0 0.0
          %1606 = vmatprep.subr.mxu0 0.0
          %1607 = vmatpush1.xpose.msra.mxu0 0.0
          %1608 = vmatprep.subr.mxu0 0.0
          %1609 = vmatpush1.xpose.msra.mxu0 0.0
          %1610 = vmatprep.subr.mxu0 0.0
          %1611 = vmatpush1.xpose.msra.mxu0 0.0
          %1612 = vmatprep.subr.mxu0 0.0
          %1613 = vmatpush1.xpose.msra.mxu0 0.0
          %1614 = vmatprep.subr.mxu0 0.0
          %1615 = vmatpush1.xpose.msra.mxu0 0.0
          %1616 = vmatprep.subr.mxu0 0.0
          %1617 = vmatpush1.xpose.msra.mxu0 0.0
          %1618 = vmatprep.subr.mxu0 0.0
          %1619 = vmatpush1.xpose.msra.mxu0 0.0
          %1620 = vmatprep.subr.mxu0 0.0
          %1621 = vmatpush1.xpose.msra.mxu0 0.0
          %1622 = vmatprep.subr.mxu0 0.0
          %1623 = vmatpush1.xpose.msra.mxu0 0.0
          %1624 = vmatprep.subr.mxu0 0.0
          %1625 = vmatpush1.xpose.msra.mxu0 0.0
          %1626 = vmatprep.subr.mxu0 0.0
          %1627 = vmatpush1.xpose.msra.mxu0 0.0
          %1628 = vmatprep.subr.mxu0 0.0
          %1629 = vmatpush1.xpose.msra.mxu0 0.0
          %1630 = vmatprep.subr.mxu0 0.0
          %1631 = vmatpush1.xpose.msra.mxu0 0.0
          %1632 = vmatprep.subr.mxu0 0.0
          %1633 = vmatpush1.xpose.msra.mxu0 0.0
          %1634 = vmatprep.subr.mxu0 0.0
          %1635 = vmatpush1.xpose.msra.mxu0 0.0
          %1636 = vmatprep.subr.mxu0 0.0
          %1637 = vmatpush1.xpose.msra.mxu0 0.0
          %1638 = vmatprep.mubr.f32.mxu0 0.0
          %1639 = vmatmul.mubr.f32.gmra.mrb[0].mxu0 %v1569
          %v1640 = vpop.f32.mrb[0].mxu0
          %v1641 = vadd.f32 0.0, %v1640
          %v1642 = vpop.f32.mrb[0].mxu0
          %1643 = vdwg.mxu0
          %v1645 = vsel %vm989, %v1090, 0
          %v1648 = vsel %vm989, %v1098, 0
          %1650 = vmatprep.subr.mxu0 0.0
          %1651 = vmatpush1.xpose.msra.mxu0 %v1648
          %1652 = vmatprep.subr.mxu0 0.0
          %1653 = vmatpush1.xpose.msra.mxu0 0.0
          %1654 = vmatprep.subr.mxu0 0.0
          %1655 = vmatpush1.xpose.msra.mxu0 0.0
          %1656 = vmatprep.subr.mxu0 0.0
          %1657 = vmatpush1.xpose.msra.mxu0 0.0
          %1658 = vmatprep.subr.mxu0 0.0
          %1659 = vmatpush1.xpose.msra.mxu0 0.0
          %1660 = vmatprep.subr.mxu0 0.0
          %1661 = vmatpush1.xpose.msra.mxu0 0.0
          %1662 = vmatprep.subr.mxu0 0.0
          %1663 = vmatpush1.xpose.msra.mxu0 0.0
          %1664 = vmatprep.subr.mxu0 0.0
          %1665 = vmatpush1.xpose.msra.mxu0 0.0
          %1666 = vmatprep.subr.mxu0 0.0
          %1667 = vmatpush1.xpose.msra.mxu0 0.0
          %1668 = vmatprep.subr.mxu0 0.0
          %1669 = vmatpush1.xpose.msra.mxu0 0.0
          %1670 = vmatprep.subr.mxu0 0.0
          %1671 = vmatpush1.xpose.msra.mxu0 0.0
          %1672 = vmatprep.subr.mxu0 0.0
          %1673 = vmatpush1.xpose.msra.mxu0 0.0
          %1674 = vmatprep.subr.mxu0 0.0
          %1675 = vmatpush1.xpose.msra.mxu0 0.0
          %1676 = vmatprep.subr.mxu0 0.0
          %1677 = vmatpush1.xpose.msra.mxu0 0.0
          %1678 = vmatprep.subr.mxu0 0.0
          %1679 = vmatpush1.xpose.msra.mxu0 0.0
          %1680 = vmatprep.subr.mxu0 0.0
          %1681 = vmatpush1.xpose.msra.mxu0 0.0
          %1682 = vmatprep.subr.mxu0 0.0
          %1683 = vmatpush1.xpose.msra.mxu0 0.0
          %1684 = vmatprep.subr.mxu0 0.0
          %1685 = vmatpush1.xpose.msra.mxu0 0.0
          %1686 = vmatprep.subr.mxu0 0.0
          %1687 = vmatpush1.xpose.msra.mxu0 0.0
          %1688 = vmatprep.subr.mxu0 0.0
          %1689 = vmatpush1.xpose.msra.mxu0 0.0
          %1690 = vmatprep.subr.mxu0 0.0
          %1691 = vmatpush1.xpose.msra.mxu0 0.0
          %1692 = vmatprep.subr.mxu0 0.0
          %1693 = vmatpush1.xpose.msra.mxu0 0.0
          %1694 = vmatprep.subr.mxu0 0.0
          %1695 = vmatpush1.xpose.msra.mxu0 0.0
          %1696 = vmatprep.subr.mxu0 0.0
          %1697 = vmatpush1.xpose.msra.mxu0 0.0
          %1698 = vmatprep.subr.mxu0 0.0
          %1699 = vmatpush1.xpose.msra.mxu0 0.0
          %1700 = vmatprep.subr.mxu0 0.0
          %1701 = vmatpush1.xpose.msra.mxu0 0.0
          %1702 = vmatprep.subr.mxu0 0.0
          %1703 = vmatpush1.xpose.msra.mxu0 0.0
          %1704 = vmatprep.subr.mxu0 0.0
          %1705 = vmatpush1.xpose.msra.mxu0 0.0
          %1706 = vmatprep.subr.mxu0 0.0
          %1707 = vmatpush1.xpose.msra.mxu0 0.0
          %1708 = vmatprep.subr.mxu0 0.0
          %1709 = vmatpush1.xpose.msra.mxu0 0.0
          %1710 = vmatprep.subr.mxu0 0.0
          %1711 = vmatpush1.xpose.msra.mxu0 0.0
          %1712 = vmatprep.subr.mxu0 0.0
          %1713 = vmatpush1.xpose.msra.mxu0 0.0
          %1714 = vmatprep.mubr.f32.mxu0 0.0
          %1715 = vmatmul.mubr.f32.gmra.mrb[0].mxu0 %v1645
          %v1716 = vpop.f32.mrb[0].mxu0
          %v1717 = vadd.f32 0.0, %v1716
          %v1718 = vpop.f32.mrb[0].mxu0
          %1719 = vdwg.mxu0
          %v1720 = vmul.f32 %v1185, 0.25
          %v1721 = vmul.f32 %v1261, 0.25
          %v1722 = vmul.f32 %v1337, 0.25
          %v1723 = vmul.f32 %v1413, 0.25
          %v1724 = vmul.f32 %v1489, 0.25
          %v1725 = vmul.f32 %v1565, 0.25
          %v1726 = vmul.f32 %v1641, 0.25
          %v1727 = vmul.f32 %v1717, 0.25
          %v1728 = vsel %vm1111, 1, 0
          %vm1729 = vcmp.eq.s32.totalorder %v1728, 1
          %v1730 = vsel %vm1729, -1e+30, %v1720
          %v1731 = vsel %vm1729, -1e+30, %v1721
          %v1732 = vsel %vm1729, -1e+30, %v1722
          %v1733 = vsel %vm1729, -1e+30, %v1723
          %v1734 = vsel %vm1729, -1e+30, %v1724
          %v1735 = vsel %vm1729, -1e+30, %v1725
          %v1736 = vsel %vm1729, -1e+30, %v1726
          %v1737 = vsel %vm1729, -1e+30, %v1727
          %vm1738 = vcmask 64512
          %v1739 = vsel %vm1738, %v1730, -inf
          %1740 = vmax.xlane.f32.xlu0 %v1739
          %v1741 = vpop.xlane.xlu0 %1740
          %v1742 = vsel %vm1738, %v1731, -inf
          %1743 = vmax.xlane.f32.xlu0 %v1742
          %v1744 = vpop.xlane.xlu0 %1743
          %v1745 = vsel %vm1738, %v1732, -inf
          %1746 = vmax.xlane.f32.xlu0 %v1745
          %v1747 = vpop.xlane.xlu0 %1746
          %v1748 = vsel %vm1738, %v1733, -inf
          %1749 = vmax.xlane.f32.xlu0 %v1748
          %v1750 = vpop.xlane.xlu0 %1749
          %v1751 = vsel %vm1738, %v1734, -inf
          %1752 = vmax.xlane.f32.xlu0 %v1751
          %v1753 = vpop.xlane.xlu0 %1752
          %v1754 = vsel %vm1738, %v1735, -inf
          %1755 = vmax.xlane.f32.xlu0 %v1754
          %v1756 = vpop.xlane.xlu0 %1755
          %v1757 = vsel %vm1738, %v1736, -inf
          %1758 = vmax.xlane.f32.xlu0 %v1757
          %v1759 = vpop.xlane.xlu0 %1758
          %v1760 = vsel %vm1738, %v1737, -inf
          %1761 = vmax.xlane.f32.xlu0 %v1760
          %v1762 = vpop.xlane.xlu0 %1761
          %v1763 = vsub.f32 %v1730, %v1741
          %v1764 = vsub.f32 %v1731, %v1744
          %v1765 = vsub.f32 %v1732, %v1747
          %v1766 = vsub.f32 %v1733, %v1750
          %v1767 = vsub.f32 %v1734, %v1753
          %v1768 = vsub.f32 %v1735, %v1756
          %v1769 = vsub.f32 %v1736, %v1759
          %v1770 = vsub.f32 %v1737, %v1762
          %v1771 = vmul.f32 %v1763, 1.442695
          %v1772 = vpow.pop %v1771
          %v1773 = vmul.f32 %v1764, 1.442695
          %v1774 = vpow.pop %v1773
          %v1775 = vmul.f32 %v1765, 1.442695
          %v1776 = vpow.pop %v1775
          %v1777 = vmul.f32 %v1766, 1.442695
          %v1778 = vpow.pop %v1777
          %v1779 = vmul.f32 %v1767, 1.442695
          %v1780 = vpow.pop %v1779
          %v1781 = vmul.f32 %v1768, 1.442695
          %v1782 = vpow.pop %v1781
          %v1783 = vmul.f32 %v1769, 1.442695
          %v1784 = vpow.pop %v1783
          %v1785 = vmul.f32 %v1770, 1.442695
          %v1786 = vpow.pop %v1785
          %v1787 = vsel %vm1738, %v1772, 0.0
          %1788 = vadd.xlane.f32.xlu0 %v1787
          %v1789 = vpop.xlane.xlu0 %1788
          %v1790 = vsel %vm1738, %v1774, 0.0
          %1791 = vadd.xlane.f32.xlu0 %v1790
          %v1792 = vpop.xlane.xlu0 %1791
          %v1793 = vsel %vm1738, %v1776, 0.0
          %1794 = vadd.xlane.f32.xlu0 %v1793
          %v1795 = vpop.xlane.xlu0 %1794
          %v1796 = vsel %vm1738, %v1778, 0.0
          %1797 = vadd.xlane.f32.xlu0 %v1796
          %v1798 = vpop.xlane.xlu0 %1797
          %v1799 = vsel %vm1738, %v1780, 0.0
          %1800 = vadd.xlane.f32.xlu0 %v1799
          %v1801 = vpop.xlane.xlu0 %1800
          %v1802 = vsel %vm1738, %v1782, 0.0
          %1803 = vadd.xlane.f32.xlu0 %v1802
          %v1804 = vpop.xlane.xlu0 %1803
          %v1805 = vsel %vm1738, %v1784, 0.0
          %1806 = vadd.xlane.f32.xlu0 %v1805
          %v1807 = vpop.xlane.xlu0 %1806
          %v1808 = vsel %vm1738, %v1786, 0.0
          %1809 = vadd.xlane.f32.xlu0 %v1808
          %v1810 = vpop.xlane.xlu0 %1809
          %v1811 = vrcp.pop %v1789
          %v1812 = vrcp.pop %v1792
          %v1813 = vrcp.pop %v1795
          %v1814 = vrcp.pop %v1798
          %v1815 = vrcp.pop %v1801
          %v1816 = vrcp.pop %v1804
          %v1817 = vrcp.pop %v1807
          %v1818 = vrcp.pop %v1810
          %v1819 = vmul.f32 %v1772, %v1811
          %v1820 = vmul.f32 %v1774, %v1812
          %v1821 = vmul.f32 %v1776, %v1813
          %v1822 = vmul.f32 %v1778, %v1814
          %v1823 = vmul.f32 %v1780, %v1815
          %v1824 = vmul.f32 %v1782, %v1816
          %v1825 = vmul.f32 %v1784, %v1817
          %v1826 = vmul.f32 %v1786, %v1818
          %v1828 = vsel %vm1738, %v1819, 0
          %1830 = vmatprep.subr.mxu0 0.0
          %1831 = vmatpush1.msra.mxu0 %v1099
          %1832 = vmatprep.subr.mxu0 0.0
          %1833 = vmatpush1.msra.mxu0 0.0
          %1834 = vmatprep.subr.mxu0 0.0
          %1835 = vmatpush1.msra.mxu0 0.0
          %1836 = vmatprep.subr.mxu0 0.0
          %1837 = vmatpush1.msra.mxu0 0.0
          %1838 = vmatprep.subr.mxu0 0.0
          %1839 = vmatpush1.msra.mxu0 0.0
          %1840 = vmatprep.subr.mxu0 0.0
          %1841 = vmatpush1.msra.mxu0 0.0
          %1842 = vmatprep.subr.mxu0 0.0
          %1843 = vmatpush1.msra.mxu0 0.0
          %1844 = vmatprep.subr.mxu0 0.0
          %1845 = vmatpush1.msra.mxu0 0.0
          %1846 = vmatprep.subr.mxu0 0.0
          %1847 = vmatpush1.msra.mxu0 0.0
          %1848 = vmatprep.subr.mxu0 0.0
          %1849 = vmatpush1.msra.mxu0 0.0
          %1850 = vmatprep.subr.mxu0 0.0
          %1851 = vmatpush1.msra.mxu0 0.0
          %1852 = vmatprep.subr.mxu0 0.0
          %1853 = vmatpush1.msra.mxu0 0.0
          %1854 = vmatprep.subr.mxu0 0.0
          %1855 = vmatpush1.msra.mxu0 0.0
          %1856 = vmatprep.subr.mxu0 0.0
          %1857 = vmatpush1.msra.mxu0 0.0
          %1858 = vmatprep.subr.mxu0 0.0
          %1859 = vmatpush1.msra.mxu0 0.0
          %1860 = vmatprep.subr.mxu0 0.0
          %1861 = vmatpush1.msra.mxu0 0.0
          %1862 = vmatprep.subr.mxu0 0.0
          %1863 = vmatpush1.msra.mxu0 0.0
          %1864 = vmatprep.subr.mxu0 0.0
          %1865 = vmatpush1.msra.mxu0 0.0
          %1866 = vmatprep.subr.mxu0 0.0
          %1867 = vmatpush1.msra.mxu0 0.0
          %1868 = vmatprep.subr.mxu0 0.0
          %1869 = vmatpush1.msra.mxu0 0.0
          %1870 = vmatprep.subr.mxu0 0.0
          %1871 = vmatpush1.msra.mxu0 0.0
          %1872 = vmatprep.subr.mxu0 0.0
          %1873 = vmatpush1.msra.mxu0 0.0
          %1874 = vmatprep.subr.mxu0 0.0
          %1875 = vmatpush1.msra.mxu0 0.0
          %1876 = vmatprep.subr.mxu0 0.0
          %1877 = vmatpush1.msra.mxu0 0.0
          %1878 = vmatprep.subr.mxu0 0.0
          %1879 = vmatpush1.msra.mxu0 0.0
          %1880 = vmatprep.subr.mxu0 0.0
          %1881 = vmatpush1.msra.mxu0 0.0
          %1882 = vmatprep.subr.mxu0 0.0
          %1883 = vmatpush1.msra.mxu0 0.0
          %1884 = vmatprep.subr.mxu0 0.0
          %1885 = vmatpush1.msra.mxu0 0.0
          %1886 = vmatprep.subr.mxu0 0.0
          %1887 = vmatpush1.msra.mxu0 0.0
          %1888 = vmatprep.subr.mxu0 0.0
          %1889 = vmatpush1.msra.mxu0 0.0
          %1890 = vmatprep.subr.mxu0 0.0
          %1891 = vmatpush1.msra.mxu0 0.0
          %1892 = vmatprep.subr.mxu0 0.0
          %1893 = vmatpush1.msra.mxu0 0.0
          %1894 = vmatprep.mubr.f32.mxu0 0.0
          %1895 = vmatmul.mubr.f32.gmra.mrb[0].mxu0 %v1828
          %v1896 = vpop.f32.mrb[0].mxu0
          %v1897 = vadd.f32 0.0, %v1896
          %v1898 = vpop.f32.mrb[0].mxu0
          %1899 = vdwg.mxu0
          %v1901 = vsel %vm1738, %v1820, 0
          %1903 = vmatprep.subr.mxu0 0.0
          %1904 = vmatpush1.msra.mxu0 %v1100
          %1905 = vmatprep.subr.mxu0 0.0
          %1906 = vmatpush1.msra.mxu0 0.0
          %1907 = vmatprep.subr.mxu0 0.0
          %1908 = vmatpush1.msra.mxu0 0.0
          %1909 = vmatprep.subr.mxu0 0.0
          %1910 = vmatpush1.msra.mxu0 0.0
          %1911 = vmatprep.subr.mxu0 0.0
          %1912 = vmatpush1.msra.mxu0 0.0
          %1913 = vmatprep.subr.mxu0 0.0
          %1914 = vmatpush1.msra.mxu0 0.0
          %1915 = vmatprep.subr.mxu0 0.0
          %1916 = vmatpush1.msra.mxu0 0.0
          %1917 = vmatprep.subr.mxu0 0.0
          %1918 = vmatpush1.msra.mxu0 0.0
          %1919 = vmatprep.subr.mxu0 0.0
          %1920 = vmatpush1.msra.mxu0 0.0
          %1921 = vmatprep.subr.mxu0 0.0
          %1922 = vmatpush1.msra.mxu0 0.0
          %1923 = vmatprep.subr.mxu0 0.0
          %1924 = vmatpush1.msra.mxu0 0.0
          %1925 = vmatprep.subr.mxu0 0.0
          %1926 = vmatpush1.msra.mxu0 0.0
          %1927 = vmatprep.subr.mxu0 0.0
          %1928 = vmatpush1.msra.mxu0 0.0
          %1929 = vmatprep.subr.mxu0 0.0
          %1930 = vmatpush1.msra.mxu0 0.0
          %1931 = vmatprep.subr.mxu0 0.0
          %1932 = vmatpush1.msra.mxu0 0.0
          %1933 = vmatprep.subr.mxu0 0.0
          %1934 = vmatpush1.msra.mxu0 0.0
          %1935 = vmatprep.subr.mxu0 0.0
          %1936 = vmatpush1.msra.mxu0 0.0
          %1937 = vmatprep.subr.mxu0 0.0
          %1938 = vmatpush1.msra.mxu0 0.0
          %1939 = vmatprep.subr.mxu0 0.0
          %1940 = vmatpush1.msra.mxu0 0.0
          %1941 = vmatprep.subr.mxu0 0.0
          %1942 = vmatpush1.msra.mxu0 0.0
          %1943 = vmatprep.subr.mxu0 0.0
          %1944 = vmatpush1.msra.mxu0 0.0
          %1945 = vmatprep.subr.mxu0 0.0
          %1946 = vmatpush1.msra.mxu0 0.0
          %1947 = vmatprep.subr.mxu0 0.0
          %1948 = vmatpush1.msra.mxu0 0.0
          %1949 = vmatprep.subr.mxu0 0.0
          %1950 = vmatpush1.msra.mxu0 0.0
          %1951 = vmatprep.subr.mxu0 0.0
          %1952 = vmatpush1.msra.mxu0 0.0
          %1953 = vmatprep.subr.mxu0 0.0
          %1954 = vmatpush1.msra.mxu0 0.0
          %1955 = vmatprep.subr.mxu0 0.0
          %1956 = vmatpush1.msra.mxu0 0.0
          %1957 = vmatprep.subr.mxu0 0.0
          %1958 = vmatpush1.msra.mxu0 0.0
          %1959 = vmatprep.subr.mxu0 0.0
          %1960 = vmatpush1.msra.mxu0 0.0
          %1961 = vmatprep.subr.mxu0 0.0
          %1962 = vmatpush1.msra.mxu0 0.0
          %1963 = vmatprep.subr.mxu0 0.0
          %1964 = vmatpush1.msra.mxu0 0.0
          %1965 = vmatprep.subr.mxu0 0.0
          %1966 = vmatpush1.msra.mxu0 0.0
          %1967 = vmatprep.mubr.f32.mxu0 0.0
          %1968 = vmatmul.mubr.f32.gmra.mrb[0].mxu0 %v1901
          %v1969 = vpop.f32.mrb[0].mxu0
          %v1970 = vadd.f32 0.0, %v1969
          %v1971 = vpop.f32.mrb[0].mxu0
          %1972 = vdwg.mxu0
          %v1974 = vsel %vm1738, %v1821, 0
          %1976 = vmatprep.subr.mxu0 0.0
          %1977 = vmatpush1.msra.mxu0 %v1101
          %1978 = vmatprep.subr.mxu0 0.0
          %1979 = vmatpush1.msra.mxu0 0.0
          %1980 = vmatprep.subr.mxu0 0.0
          %1981 = vmatpush1.msra.mxu0 0.0
          %1982 = vmatprep.subr.mxu0 0.0
          %1983 = vmatpush1.msra.mxu0 0.0
          %1984 = vmatprep.subr.mxu0 0.0
          %1985 = vmatpush1.msra.mxu0 0.0
          %1986 = vmatprep.subr.mxu0 0.0
          %1987 = vmatpush1.msra.mxu0 0.0
          %1988 = vmatprep.subr.mxu0 0.0
          %1989 = vmatpush1.msra.mxu0 0.0
          %1990 = vmatprep.subr.mxu0 0.0
          %1991 = vmatpush1.msra.mxu0 0.0
          %1992 = vmatprep.subr.mxu0 0.0
          %1993 = vmatpush1.msra.mxu0 0.0
          %1994 = vmatprep.subr.mxu0 0.0
          %1995 = vmatpush1.msra.mxu0 0.0
          %1996 = vmatprep.subr.mxu0 0.0
          %1997 = vmatpush1.msra.mxu0 0.0
          %1998 = vmatprep.subr.mxu0 0.0
          %1999 = vmatpush1.msra.mxu0 0.0
          %2000 = vmatprep.subr.mxu0 0.0
          %2001 = vmatpush1.msra.mxu0 0.0
          %2002 = vmatprep.subr.mxu0 0.0
          %2003 = vmatpush1.msra.mxu0 0.0
          %2004 = vmatprep.subr.mxu0 0.0
          %2005 = vmatpush1.msra.mxu0 0.0
          %2006 = vmatprep.subr.mxu0 0.0
          %2007 = vmatpush1.msra.mxu0 0.0
          %2008 = vmatprep.subr.mxu0 0.0
          %2009 = vmatpush1.msra.mxu0 0.0
          %2010 = vmatprep.subr.mxu0 0.0
          %2011 = vmatpush1.msra.mxu0 0.0
          %2012 = vmatprep.subr.mxu0 0.0
          %2013 = vmatpush1.msra.mxu0 0.0
          %2014 = vmatprep.subr.mxu0 0.0
          %2015 = vmatpush1.msra.mxu0 0.0
          %2016 = vmatprep.subr.mxu0 0.0
          %2017 = vmatpush1.msra.mxu0 0.0
          %2018 = vmatprep.subr.mxu0 0.0
          %2019 = vmatpush1.msra.mxu0 0.0
          %2020 = vmatprep.subr.mxu0 0.0
          %2021 = vmatpush1.msra.mxu0 0.0
          %2022 = vmatprep.subr.mxu0 0.0
          %2023 = vmatpush1.msra.mxu0 0.0
          %2024 = vmatprep.subr.mxu0 0.0
          %2025 = vmatpush1.msra.mxu0 0.0
          %2026 = vmatprep.subr.mxu0 0.0
          %2027 = vmatpush1.msra.mxu0 0.0
          %2028 = vmatprep.subr.mxu0 0.0
          %2029 = vmatpush1.msra.mxu0 0.0
          %2030 = vmatprep.subr.mxu0 0.0
          %2031 = vmatpush1.msra.mxu0 0.0
          %2032 = vmatprep.subr.mxu0 0.0
          %2033 = vmatpush1.msra.mxu0 0.0
          %2034 = vmatprep.subr.mxu0 0.0
          %2035 = vmatpush1.msra.mxu0 0.0
          %2036 = vmatprep.subr.mxu0 0.0
          %2037 = vmatpush1.msra.mxu0 0.0
          %2038 = vmatprep.subr.mxu0 0.0
          %2039 = vmatpush1.msra.mxu0 0.0
          %2040 = vmatprep.mubr.f32.mxu0 0.0
          %2041 = vmatmul.mubr.f32.gmra.mrb[0].mxu0 %v1974
          %v2042 = vpop.f32.mrb[0].mxu0
          %v2043 = vadd.f32 0.0, %v2042
          %v2044 = vpop.f32.mrb[0].mxu0
          %2045 = vdwg.mxu0
          %v2047 = vsel %vm1738, %v1822, 0
          %2049 = vmatprep.subr.mxu0 0.0
          %2050 = vmatpush1.msra.mxu0 %v1102
          %2051 = vmatprep.subr.mxu0 0.0
          %2052 = vmatpush1.msra.mxu0 0.0
          %2053 = vmatprep.subr.mxu0 0.0
          %2054 = vmatpush1.msra.mxu0 0.0
          %2055 = vmatprep.subr.mxu0 0.0
          %2056 = vmatpush1.msra.mxu0 0.0
          %2057 = vmatprep.subr.mxu0 0.0
          %2058 = vmatpush1.msra.mxu0 0.0
          %2059 = vmatprep.subr.mxu0 0.0
          %2060 = vmatpush1.msra.mxu0 0.0
          %2061 = vmatprep.subr.mxu0 0.0
          %2062 = vmatpush1.msra.mxu0 0.0
          %2063 = vmatprep.subr.mxu0 0.0
          %2064 = vmatpush1.msra.mxu0 0.0
          %2065 = vmatprep.subr.mxu0 0.0
          %2066 = vmatpush1.msra.mxu0 0.0
          %2067 = vmatprep.subr.mxu0 0.0
          %2068 = vmatpush1.msra.mxu0 0.0
          %2069 = vmatprep.subr.mxu0 0.0
          %2070 = vmatpush1.msra.mxu0 0.0
          %2071 = vmatprep.subr.mxu0 0.0
          %2072 = vmatpush1.msra.mxu0 0.0
          %2073 = vmatprep.subr.mxu0 0.0
          %2074 = vmatpush1.msra.mxu0 0.0
          %2075 = vmatprep.subr.mxu0 0.0
          %2076 = vmatpush1.msra.mxu0 0.0
          %2077 = vmatprep.subr.mxu0 0.0
          %2078 = vmatpush1.msra.mxu0 0.0
          %2079 = vmatprep.subr.mxu0 0.0
          %2080 = vmatpush1.msra.mxu0 0.0
          %2081 = vmatprep.subr.mxu0 0.0
          %2082 = vmatpush1.msra.mxu0 0.0
          %2083 = vmatprep.subr.mxu0 0.0
          %2084 = vmatpush1.msra.mxu0 0.0
          %2085 = vmatprep.subr.mxu0 0.0
          %2086 = vmatpush1.msra.mxu0 0.0
          %2087 = vmatprep.subr.mxu0 0.0
          %2088 = vmatpush1.msra.mxu0 0.0
          %2089 = vmatprep.subr.mxu0 0.0
          %2090 = vmatpush1.msra.mxu0 0.0
          %2091 = vmatprep.subr.mxu0 0.0
          %2092 = vmatpush1.msra.mxu0 0.0
          %2093 = vmatprep.subr.mxu0 0.0
          %2094 = vmatpush1.msra.mxu0 0.0
          %2095 = vmatprep.subr.mxu0 0.0
          %2096 = vmatpush1.msra.mxu0 0.0
          %2097 = vmatprep.subr.mxu0 0.0
          %2098 = vmatpush1.msra.mxu0 0.0
          %2099 = vmatprep.subr.mxu0 0.0
          %2100 = vmatpush1.msra.mxu0 0.0
          %2101 = vmatprep.subr.mxu0 0.0
          %2102 = vmatpush1.msra.mxu0 0.0
          %2103 = vmatprep.subr.mxu0 0.0
          %2104 = vmatpush1.msra.mxu0 0.0
          %2105 = vmatprep.subr.mxu0 0.0
          %2106 = vmatpush1.msra.mxu0 0.0
          %2107 = vmatprep.subr.mxu0 0.0
          %2108 = vmatpush1.msra.mxu0 0.0
          %2109 = vmatprep.subr.mxu0 0.0
          %2110 = vmatpush1.msra.mxu0 0.0
          %2111 = vmatprep.subr.mxu0 0.0
          %2112 = vmatpush1.msra.mxu0 0.0
          %2113 = vmatprep.mubr.f32.mxu0 0.0
          %2114 = vmatmul.mubr.f32.gmra.mrb[0].mxu0 %v2047
          %v2115 = vpop.f32.mrb[0].mxu0
          %v2116 = vadd.f32 0.0, %v2115
          %v2117 = vpop.f32.mrb[0].mxu0
          %2118 = vdwg.mxu0
          %v2120 = vsel %vm1738, %v1823, 0
          %2122 = vmatprep.subr.mxu0 0.0
          %2123 = vmatpush1.msra.mxu0 %v1103
          %2124 = vmatprep.subr.mxu0 0.0
          %2125 = vmatpush1.msra.mxu0 0.0
          %2126 = vmatprep.subr.mxu0 0.0
          %2127 = vmatpush1.msra.mxu0 0.0
          %2128 = vmatprep.subr.mxu0 0.0
          %2129 = vmatpush1.msra.mxu0 0.0
          %2130 = vmatprep.subr.mxu0 0.0
          %2131 = vmatpush1.msra.mxu0 0.0
          %2132 = vmatprep.subr.mxu0 0.0
          %2133 = vmatpush1.msra.mxu0 0.0
          %2134 = vmatprep.subr.mxu0 0.0
          %2135 = vmatpush1.msra.mxu0 0.0
          %2136 = vmatprep.subr.mxu0 0.0
          %2137 = vmatpush1.msra.mxu0 0.0
          %2138 = vmatprep.subr.mxu0 0.0
          %2139 = vmatpush1.msra.mxu0 0.0
          %2140 = vmatprep.subr.mxu0 0.0
          %2141 = vmatpush1.msra.mxu0 0.0
          %2142 = vmatprep.subr.mxu0 0.0
          %2143 = vmatpush1.msra.mxu0 0.0
          %2144 = vmatprep.subr.mxu0 0.0
          %2145 = vmatpush1.msra.mxu0 0.0
          %2146 = vmatprep.subr.mxu0 0.0
          %2147 = vmatpush1.msra.mxu0 0.0
          %2148 = vmatprep.subr.mxu0 0.0
          %2149 = vmatpush1.msra.mxu0 0.0
          %2150 = vmatprep.subr.mxu0 0.0
          %2151 = vmatpush1.msra.mxu0 0.0
          %2152 = vmatprep.subr.mxu0 0.0
          %2153 = vmatpush1.msra.mxu0 0.0
          %2154 = vmatprep.subr.mxu0 0.0
          %2155 = vmatpush1.msra.mxu0 0.0
          %2156 = vmatprep.subr.mxu0 0.0
          %2157 = vmatpush1.msra.mxu0 0.0
          %2158 = vmatprep.subr.mxu0 0.0
          %2159 = vmatpush1.msra.mxu0 0.0
          %2160 = vmatprep.subr.mxu0 0.0
          %2161 = vmatpush1.msra.mxu0 0.0
          %2162 = vmatprep.subr.mxu0 0.0
          %2163 = vmatpush1.msra.mxu0 0.0
          %2164 = vmatprep.subr.mxu0 0.0
          %2165 = vmatpush1.msra.mxu0 0.0
          %2166 = vmatprep.subr.mxu0 0.0
          %2167 = vmatpush1.msra.mxu0 0.0
          %2168 = vmatprep.subr.mxu0 0.0
          %2169 = vmatpush1.msra.mxu0 0.0
          %2170 = vmatprep.subr.mxu0 0.0
          %2171 = vmatpush1.msra.mxu0 0.0
          %2172 = vmatprep.subr.mxu0 0.0
          %2173 = vmatpush1.msra.mxu0 0.0
          %2174 = vmatprep.subr.mxu0 0.0
          %2175 = vmatpush1.msra.mxu0 0.0
          %2176 = vmatprep.subr.mxu0 0.0
          %2177 = vmatpush1.msra.mxu0 0.0
          %2178 = vmatprep.subr.mxu0 0.0
          %2179 = vmatpush1.msra.mxu0 0.0
          %2180 = vmatprep.subr.mxu0 0.0
          %2181 = vmatpush1.msra.mxu0 0.0
          %2182 = vmatprep.subr.mxu0 0.0
          %2183 = vmatpush1.msra.mxu0 0.0
          %2184 = vmatprep.subr.mxu0 0.0
          %2185 = vmatpush1.msra.mxu0 0.0
          %2186 = vmatprep.mubr.f32.mxu0 0.0
          %2187 = vmatmul.mubr.f32.gmra.mrb[0].mxu0 %v2120
          %v2188 = vpop.f32.mrb[0].mxu0
          %v2189 = vadd.f32 0.0, %v2188
          %v2190 = vpop.f32.mrb[0].mxu0
          %2191 = vdwg.mxu0
          %v2193 = vsel %vm1738, %v1824, 0
          %2195 = vmatprep.subr.mxu0 0.0
          %2196 = vmatpush1.msra.mxu0 %v1104
          %2197 = vmatprep.subr.mxu0 0.0
          %2198 = vmatpush1.msra.mxu0 0.0
          %2199 = vmatprep.subr.mxu0 0.0
          %2200 = vmatpush1.msra.mxu0 0.0
          %2201 = vmatprep.subr.mxu0 0.0
          %2202 = vmatpush1.msra.mxu0 0.0
          %2203 = vmatprep.subr.mxu0 0.0
          %2204 = vmatpush1.msra.mxu0 0.0
          %2205 = vmatprep.subr.mxu0 0.0
          %2206 = vmatpush1.msra.mxu0 0.0
          %2207 = vmatprep.subr.mxu0 0.0
          %2208 = vmatpush1.msra.mxu0 0.0
          %2209 = vmatprep.subr.mxu0 0.0
          %2210 = vmatpush1.msra.mxu0 0.0
          %2211 = vmatprep.subr.mxu0 0.0
          %2212 = vmatpush1.msra.mxu0 0.0
          %2213 = vmatprep.subr.mxu0 0.0
          %2214 = vmatpush1.msra.mxu0 0.0
          %2215 = vmatprep.subr.mxu0 0.0
          %2216 = vmatpush1.msra.mxu0 0.0
          %2217 = vmatprep.subr.mxu0 0.0
          %2218 = vmatpush1.msra.mxu0 0.0
          %2219 = vmatprep.subr.mxu0 0.0
          %2220 = vmatpush1.msra.mxu0 0.0
          %2221 = vmatprep.subr.mxu0 0.0
          %2222 = vmatpush1.msra.mxu0 0.0
          %2223 = vmatprep.subr.mxu0 0.0
          %2224 = vmatpush1.msra.mxu0 0.0
          %2225 = vmatprep.subr.mxu0 0.0
          %2226 = vmatpush1.msra.mxu0 0.0
          %2227 = vmatprep.subr.mxu0 0.0
          %2228 = vmatpush1.msra.mxu0 0.0
          %2229 = vmatprep.subr.mxu0 0.0
          %2230 = vmatpush1.msra.mxu0 0.0
          %2231 = vmatprep.subr.mxu0 0.0
          %2232 = vmatpush1.msra.mxu0 0.0
          %2233 = vmatprep.subr.mxu0 0.0
          %2234 = vmatpush1.msra.mxu0 0.0
          %2235 = vmatprep.subr.mxu0 0.0
          %2236 = vmatpush1.msra.mxu0 0.0
          %2237 = vmatprep.subr.mxu0 0.0
          %2238 = vmatpush1.msra.mxu0 0.0
          %2239 = vmatprep.subr.mxu0 0.0
          %2240 = vmatpush1.msra.mxu0 0.0
          %2241 = vmatprep.subr.mxu0 0.0
          %2242 = vmatpush1.msra.mxu0 0.0
          %2243 = vmatprep.subr.mxu0 0.0
          %2244 = vmatpush1.msra.mxu0 0.0
          %2245 = vmatprep.subr.mxu0 0.0
          %2246 = vmatpush1.msra.mxu0 0.0
          %2247 = vmatprep.subr.mxu0 0.0
          %2248 = vmatpush1.msra.mxu0 0.0
          %2249 = vmatprep.subr.mxu0 0.0
          %2250 = vmatpush1.msra.mxu0 0.0
          %2251 = vmatprep.subr.mxu0 0.0
          %2252 = vmatpush1.msra.mxu0 0.0
          %2253 = vmatprep.subr.mxu0 0.0
          %2254 = vmatpush1.msra.mxu0 0.0
          %2255 = vmatprep.subr.mxu0 0.0
          %2256 = vmatpush1.msra.mxu0 0.0
          %2257 = vmatprep.subr.mxu0 0.0
          %2258 = vmatpush1.msra.mxu0 0.0
          %2259 = vmatprep.mubr.f32.mxu0 0.0
          %2260 = vmatmul.mubr.f32.gmra.mrb[0].mxu0 %v2193
          %v2261 = vpop.f32.mrb[0].mxu0
          %v2262 = vadd.f32 0.0, %v2261
          %v2263 = vpop.f32.mrb[0].mxu0
          %2264 = vdwg.mxu0
          %v2266 = vsel %vm1738, %v1825, 0
          %2268 = vmatprep.subr.mxu0 0.0
          %2269 = vmatpush1.msra.mxu0 %v1105
          %2270 = vmatprep.subr.mxu0 0.0
          %2271 = vmatpush1.msra.mxu0 0.0
          %2272 = vmatprep.subr.mxu0 0.0
          %2273 = vmatpush1.msra.mxu0 0.0
          %2274 = vmatprep.subr.mxu0 0.0
          %2275 = vmatpush1.msra.mxu0 0.0
          %2276 = vmatprep.subr.mxu0 0.0
          %2277 = vmatpush1.msra.mxu0 0.0
          %2278 = vmatprep.subr.mxu0 0.0
          %2279 = vmatpush1.msra.mxu0 0.0
          %2280 = vmatprep.subr.mxu0 0.0
          %2281 = vmatpush1.msra.mxu0 0.0
          %2282 = vmatprep.subr.mxu0 0.0
          %2283 = vmatpush1.msra.mxu0 0.0
          %2284 = vmatprep.subr.mxu0 0.0
          %2285 = vmatpush1.msra.mxu0 0.0
          %2286 = vmatprep.subr.mxu0 0.0
          %2287 = vmatpush1.msra.mxu0 0.0
          %2288 = vmatprep.subr.mxu0 0.0
          %2289 = vmatpush1.msra.mxu0 0.0
          %2290 = vmatprep.subr.mxu0 0.0
          %2291 = vmatpush1.msra.mxu0 0.0
          %2292 = vmatprep.subr.mxu0 0.0
          %2293 = vmatpush1.msra.mxu0 0.0
          %2294 = vmatprep.subr.mxu0 0.0
          %2295 = vmatpush1.msra.mxu0 0.0
          %2296 = vmatprep.subr.mxu0 0.0
          %2297 = vmatpush1.msra.mxu0 0.0
          %2298 = vmatprep.subr.mxu0 0.0
          %2299 = vmatpush1.msra.mxu0 0.0
          %2300 = vmatprep.subr.mxu0 0.0
          %2301 = vmatpush1.msra.mxu0 0.0
          %2302 = vmatprep.subr.mxu0 0.0
          %2303 = vmatpush1.msra.mxu0 0.0
          %2304 = vmatprep.subr.mxu0 0.0
          %2305 = vmatpush1.msra.mxu0 0.0
          %2306 = vmatprep.subr.mxu0 0.0
          %2307 = vmatpush1.msra.mxu0 0.0
          %2308 = vmatprep.subr.mxu0 0.0
          %2309 = vmatpush1.msra.mxu0 0.0
          %2310 = vmatprep.subr.mxu0 0.0
          %2311 = vmatpush1.msra.mxu0 0.0
          %2312 = vmatprep.subr.mxu0 0.0
          %2313 = vmatpush1.msra.mxu0 0.0
          %2314 = vmatprep.subr.mxu0 0.0
          %2315 = vmatpush1.msra.mxu0 0.0
          %2316 = vmatprep.subr.mxu0 0.0
          %2317 = vmatpush1.msra.mxu0 0.0
          %2318 = vmatprep.subr.mxu0 0.0
          %2319 = vmatpush1.msra.mxu0 0.0
          %2320 = vmatprep.subr.mxu0 0.0
          %2321 = vmatpush1.msra.mxu0 0.0
          %2322 = vmatprep.subr.mxu0 0.0
          %2323 = vmatpush1.msra.mxu0 0.0
          %2324 = vmatprep.subr.mxu0 0.0
          %2325 = vmatpush1.msra.mxu0 0.0
          %2326 = vmatprep.subr.mxu0 0.0
          %2327 = vmatpush1.msra.mxu0 0.0
          %2328 = vmatprep.subr.mxu0 0.0
          %2329 = vmatpush1.msra.mxu0 0.0
          %2330 = vmatprep.subr.mxu0 0.0
          %2331 = vmatpush1.msra.mxu0 0.0
          %2332 = vmatprep.mubr.f32.mxu0 0.0
          %2333 = vmatmul.mubr.f32.gmra.mrb[0].mxu0 %v2266
          %v2334 = vpop.f32.mrb[0].mxu0
          %v2335 = vadd.f32 0.0, %v2334
          %v2336 = vpop.f32.mrb[0].mxu0
          %2337 = vdwg.mxu0
          %v2339 = vsel %vm1738, %v1826, 0
          %2341 = vmatprep.subr.mxu0 0.0
          %2342 = vmatpush1.msra.mxu0 %v1106
          %2343 = vmatprep.subr.mxu0 0.0
          %2344 = vmatpush1.msra.mxu0 0.0
          %2345 = vmatprep.subr.mxu0 0.0
          %2346 = vmatpush1.msra.mxu0 0.0
          %2347 = vmatprep.subr.mxu0 0.0
          %2348 = vmatpush1.msra.mxu0 0.0
          %2349 = vmatprep.subr.mxu0 0.0
          %2350 = vmatpush1.msra.mxu0 0.0
          %2351 = vmatprep.subr.mxu0 0.0
          %2352 = vmatpush1.msra.mxu0 0.0
          %2353 = vmatprep.subr.mxu0 0.0
          %2354 = vmatpush1.msra.mxu0 0.0
          %2355 = vmatprep.subr.mxu0 0.0
          %2356 = vmatpush1.msra.mxu0 0.0
          %2357 = vmatprep.subr.mxu0 0.0
          %2358 = vmatpush1.msra.mxu0 0.0
          %2359 = vmatprep.subr.mxu0 0.0
          %2360 = vmatpush1.msra.mxu0 0.0
          %2361 = vmatprep.subr.mxu0 0.0
          %2362 = vmatpush1.msra.mxu0 0.0
          %2363 = vmatprep.subr.mxu0 0.0
          %2364 = vmatpush1.msra.mxu0 0.0
          %2365 = vmatprep.subr.mxu0 0.0
          %2366 = vmatpush1.msra.mxu0 0.0
          %2367 = vmatprep.subr.mxu0 0.0
          %2368 = vmatpush1.msra.mxu0 0.0
          %2369 = vmatprep.subr.mxu0 0.0
          %2370 = vmatpush1.msra.mxu0 0.0
          %2371 = vmatprep.subr.mxu0 0.0
          %2372 = vmatpush1.msra.mxu0 0.0
          %2373 = vmatprep.subr.mxu0 0.0
          %2374 = vmatpush1.msra.mxu0 0.0
          %2375 = vmatprep.subr.mxu0 0.0
          %2376 = vmatpush1.msra.mxu0 0.0
          %2377 = vmatprep.subr.mxu0 0.0
          %2378 = vmatpush1.msra.mxu0 0.0
          %2379 = vmatprep.subr.mxu0 0.0
          %2380 = vmatpush1.msra.mxu0 0.0
          %2381 = vmatprep.subr.mxu0 0.0
          %2382 = vmatpush1.msra.mxu0 0.0
          %2383 = vmatprep.subr.mxu0 0.0
          %2384 = vmatpush1.msra.mxu0 0.0
          %2385 = vmatprep.subr.mxu0 0.0
          %2386 = vmatpush1.msra.mxu0 0.0
          %2387 = vmatprep.subr.mxu0 0.0
          %2388 = vmatpush1.msra.mxu0 0.0
          %2389 = vmatprep.subr.mxu0 0.0
          %2390 = vmatpush1.msra.mxu0 0.0
          %2391 = vmatprep.subr.mxu0 0.0
          %2392 = vmatpush1.msra.mxu0 0.0
          %2393 = vmatprep.subr.mxu0 0.0
          %2394 = vmatpush1.msra.mxu0 0.0
          %2395 = vmatprep.subr.mxu0 0.0
          %2396 = vmatpush1.msra.mxu0 0.0
          %2397 = vmatprep.subr.mxu0 0.0
          %2398 = vmatpush1.msra.mxu0 0.0
          %2399 = vmatprep.subr.mxu0 0.0
          %2400 = vmatpush1.msra.mxu0 0.0
          %2401 = vmatprep.subr.mxu0 0.0
          %2402 = vmatpush1.msra.mxu0 0.0
          %2403 = vmatprep.subr.mxu0 0.0
          %2404 = vmatpush1.msra.mxu0 0.0
          %2405 = vmatprep.mubr.f32.mxu0 0.0
          %2406 = vmatmul.mubr.f32.gmra.mrb[0].mxu0 %v2339
          %v2407 = vpop.f32.mrb[0].mxu0
          %v2408 = vadd.f32 0.0, %v2407
          %v2409 = vpop.f32.mrb[0].mxu0
          %2410 = vdwg.mxu0
          %2411 = vst.msk [vmem:[#allocation8] sm:$0xff] %vm989, %v1897
          %2412 = vst.msk [vmem:[#allocation8 + $0x8] sm:$0xff] %vm989, %v1970
          %2415 = vrot.lane.b32.xlu0 %v2043, 16
          %v2416 = vpop.permute.xlu0 %2415
          %2417 = vrot.lane.b32.xlu0 %v2116, 16
          %v2418 = vpop.permute.xlu0 %2417
          %vm2421 = vcmask 261248
          %2422 = vst.msk [vmem:[#allocation8] sm:$0xff] %vm2421, %v2416
          %2423 = vst.msk [vmem:[#allocation8 + $0x8] sm:$0xff] %vm2421, %v2418
          %2426 = vrot.lane.b32.xlu0 %v2189, 32
          %v2427 = vpop.permute.xlu0 %2426
          %2428 = vrot.lane.b32.xlu0 %v2262, 32
          %v2429 = vpop.permute.xlu0 %2428
          %vm2432 = vcmask 392448
          %2433 = vst.msk [vmem:[#allocation8] sm:$0xff] %vm2432, %v2427
          %2434 = vst.msk [vmem:[#allocation8 + $0x8] sm:$0xff] %vm2432, %v2429
          %2437 = vrot.lane.b32.xlu0 %v2335, 48
          %v2438 = vpop.permute.xlu0 %2437
          %2439 = vrot.lane.b32.xlu0 %v2408, 48
          %v2440 = vpop.permute.xlu0 %2439
          %vm2443 = vcmask 523648
          %2444 = vst.msk [vmem:[#allocation8] sm:$0xff] %vm2443, %v2438
          %2445 = vst.msk [vmem:[#allocation8 + $0x8] sm:$0xff] %vm2443, %v2440
          %v2446 = vld [vmem:[#allocation8] sm:$0xff]
          %v2447 = vld [vmem:[#allocation8 + $0x8] sm:$0xff]
          %v2448 = vld [vmem:[%s9] sm:$0xff]
          %v2449 = vld [vmem:[%s9 + $0x8] sm:$0xff]
          %v2450 = vld [vmem:[%s9 + $0x10] sm:$0xff]
          %v2451 = vld [vmem:[%s9 + $0x18] sm:$0xff]
          %v2452 = vld [vmem:[%s9 + $0x20] sm:$0xff]
          %v2453 = vld [vmem:[%s9 + $0x28] sm:$0xff]
          %v2454 = vld [vmem:[%s9 + $0x30] sm:$0xff]
          %v2455 = vld [vmem:[%s9 + $0x38] sm:$0xff]
          %v2456 = vld [vmem:[%s10] sm:$0x1]
          %v2458 = vlaneseq
          %v2459 = vshrl.u32 %v2458, 7
          %v2460 = vsub.s32 0, %v2459
          %v2461 = vrot.slane %v2456, %v2460
          %v2464 = vsel %vm669, %v2446, 0
          %v2467 = vsel %vm669, %v2447, 0
          %2469 = vmatprep.subr.mxu0 0.0
          %2470 = vmatpush1.msra.mxu0 %v2448
          %2471 = vmatprep.subr.mxu0 0.0
          %2472 = vmatpush1.msra.mxu0 %v2449
          %2473 = vmatprep.subr.mxu0 0.0
          %2474 = vmatpush1.msra.mxu0 %v2450
          %2475 = vmatprep.subr.mxu0 0.0
          %2476 = vmatpush1.msra.mxu0 %v2451
          %2477 = vmatprep.subr.mxu0 0.0
          %2478 = vmatpush1.msra.mxu0 %v2452
          %2479 = vmatprep.subr.mxu0 0.0
          %2480 = vmatpush1.msra.mxu0 %v2453
          %2481 = vmatprep.subr.mxu0 0.0
          %2482 = vmatpush1.msra.mxu0 %v2454
          %2483 = vmatprep.subr.mxu0 0.0
          %2484 = vmatpush1.msra.mxu0 %v2455
          %2485 = vmatprep.subr.mxu0 0.0
          %2486 = vmatpush1.msra.mxu0 0.0
          %2487 = vmatprep.subr.mxu0 0.0
          %2488 = vmatpush1.msra.mxu0 0.0
          %2489 = vmatprep.subr.mxu0 0.0
          %2490 = vmatpush1.msra.mxu0 0.0
          %2491 = vmatprep.subr.mxu0 0.0
          %2492 = vmatpush1.msra.mxu0 0.0
          %2493 = vmatprep.subr.mxu0 0.0
          %2494 = vmatpush1.msra.mxu0 0.0
          %2495 = vmatprep.subr.mxu0 0.0
          %2496 = vmatpush1.msra.mxu0 0.0
          %2497 = vmatprep.subr.mxu0 0.0
          %2498 = vmatpush1.msra.mxu0 0.0
          %2499 = vmatprep.subr.mxu0 0.0
          %2500 = vmatpush1.msra.mxu0 0.0
          %2501 = vmatprep.subr.mxu0 0.0
          %2502 = vmatpush1.msra.mxu0 0.0
          %2503 = vmatprep.subr.mxu0 0.0
          %2504 = vmatpush1.msra.mxu0 0.0
          %2505 = vmatprep.subr.mxu0 0.0
          %2506 = vmatpush1.msra.mxu0 0.0
          %2507 = vmatprep.subr.mxu0 0.0
          %2508 = vmatpush1.msra.mxu0 0.0
          %2509 = vmatprep.subr.mxu0 0.0
          %2510 = vmatpush1.msra.mxu0 0.0
          %2511 = vmatprep.subr.mxu0 0.0
          %2512 = vmatpush1.msra.mxu0 0.0
          %2513 = vmatprep.subr.mxu0 0.0
          %2514 = vmatpush1.msra.mxu0 0.0
          %2515 = vmatprep.subr.mxu0 0.0
          %2516 = vmatpush1.msra.mxu0 0.0
          %2517 = vmatprep.subr.mxu0 0.0
          %2518 = vmatpush1.msra.mxu0 0.0
          %2519 = vmatprep.subr.mxu0 0.0
          %2520 = vmatpush1.msra.mxu0 0.0
          %2521 = vmatprep.subr.mxu0 0.0
          %2522 = vmatpush1.msra.mxu0 0.0
          %2523 = vmatprep.subr.mxu0 0.0
          %2524 = vmatpush1.msra.mxu0 0.0
          %2525 = vmatprep.subr.mxu0 0.0
          %2526 = vmatpush1.msra.mxu0 0.0
          %2527 = vmatprep.subr.mxu0 0.0
          %2528 = vmatpush1.msra.mxu0 0.0
          %2529 = vmatprep.subr.mxu0 0.0
          %2530 = vmatpush1.msra.mxu0 0.0
          %2531 = vmatprep.subr.mxu0 0.0
          %2532 = vmatpush1.msra.mxu0 0.0
          %2533 = vmatprep.mubr.f32.mxu0 0.0
          %2534 = vmatmul.mubr.f32.gmra.mrb[0].mxu0 %v2464
          %v2535 = vpop.f32.mrb[0].mxu0
          %v2536 = vadd.f32 %v2461, %v2535
          %v2537 = vpop.f32.mrb[0].mxu0
          %2538 = vmatprep.mubr.f32.mxu0 0.0
          %2539 = vmatmul.mubr.f32.gmra.mrb[0].mxu0 %v2467
          %v2540 = vpop.f32.mrb[0].mxu0
          %v2541 = vadd.f32 %v2461, %v2540
          %v2542 = vpop.f32.mrb[0].mxu0
          %2543 = vdwg.mxu0
          %v2544 = vadd.f32 %v665, %v2536
          %v2545 = vadd.f32 %v666, %v2541
          %2546 = vst.msk [vmem:[#allocation2] sm:$0xff] %vm669, %v2544
          %2547 = vst.msk [vmem:[#allocation2 + $0x8] sm:$0xff] %vm669, %v2545
          %v2548 = vld [vmem:[%s11] sm:$0x1]
          %v2549 = vld [vmem:[%s12] sm:$0x1]
          %v2550 = vsel %vm669, %v2544, 0.0
          %2551 = vadd.xlane.f32.xlu0 %v2550
          %v2552 = vpop.xlane.xlu0 %2551
          %v2553 = vsel %vm669, %v2545, 0.0
          %2554 = vadd.xlane.f32.xlu0 %v2553
          %v2555 = vpop.xlane.xlu0 %2554
          %v2556 = vmul.f32 %v2552, %v676
          %v2557 = vmul.f32 %v2555, %v676
          %v2558 = vsub.f32 %v2544, %v2556
          %v2559 = vsub.f32 %v2545, %v2557
          %v2560 = vmul.f32 %v2558, %v2558
          %v2561 = vmul.f32 %v2559, %v2559
          %v2562 = vsel %vm669, %v2560, 0.0
          %2563 = vadd.xlane.f32.xlu0 %v2562
          %v2564 = vpop.xlane.xlu0 %2563
          %v2565 = vsel %vm669, %v2561, 0.0
          %2566 = vadd.xlane.f32.xlu0 %v2565
          %v2567 = vpop.xlane.xlu0 %2566
          %v2568 = vmul.f32 %v2564, %v676
          %v2569 = vmul.f32 %v2567, %v676
          %v2570 = vadd.f32 %v2568, 1e-05
          %v2571 = vadd.f32 %v2569, 1e-05
          %v2572 = vrsqrt.pop %v2570
          %v2573 = vrsqrt.pop %v2571
          %v2574 = vmul.f32 %v2558, %v2572
          %v2575 = vmul.f32 %v2559, %v2573
          %v2577 = vlaneseq
          %v2578 = vshrl.u32 %v2577, 7
          %v2579 = vsub.s32 0, %v2578
          %v2580 = vrot.slane %v2548, %v2579
          %v2582 = vmul.f32 %v2574, %v2580
          %v2583 = vmul.f32 %v2575, %v2580
          %v2585 = vlaneseq
          %v2586 = vshrl.u32 %v2585, 7
          %v2587 = vsub.s32 0, %v2586
          %v2588 = vrot.slane %v2549, %v2587
          %v2590 = vadd.f32 %v2582, %v2588
          %v2591 = vadd.f32 %v2583, %v2588
          %2592 = vst.msk [vmem:[#allocation3] sm:$0xff] %vm669, %v2590
          %2593 = vst.msk [vmem:[#allocation3 + $0x8] sm:$0xff] %vm669, %v2591
          %2594 = vst.msk [vmem:[#allocation4] sm:$0xff] %vm669, 0.0
          %2595 = vst.msk [vmem:[#allocation4 + $0x8] sm:$0xff] %vm669, 0.0
        $region138: #{tpu_custom_call.1} parent=121 // pred_fallthru
          _
        %v2596 = vld [vmem:[#allocation3] sm:$0xff]
        %v2597 = vld [vmem:[#allocation3 + $0x8] sm:$0xff]
        %v2598 = vld [vmem:[%s600] sm:$0xff]
        %v2599 = vld [vmem:[%s600 + $0x8] sm:$0xff]
        %v2600 = vld [vmem:[%s600 + $0x10] sm:$0xff]
        %v2601 = vld [vmem:[%s600 + $0x18] sm:$0xff]
        %v2602 = vld [vmem:[%s600 + $0x20] sm:$0xff]
        %v2603 = vld [vmem:[%s600 + $0x28] sm:$0xff]
        %v2604 = vld [vmem:[%s600 + $0x30] sm:$0xff]
        %v2605 = vld [vmem:[%s600 + $0x38] sm:$0xff]
        %v2606 = vld [vmem:[%s654] sm:$0x1]
        %v2608 = vlaneseq
        %v2609 = vshrl.u32 %v2608, 7
        %v2610 = vsub.s32 0, %v2609
        %v2611 = vrot.slane %v2606, %v2610
        %vm2613 = vcmask 523264
        %v2615 = vsel %vm2613, %v2596, 0
        %v2618 = vsel %vm2613, %v2597, 0
        %2620 = vmatprep.subr.mxu0 0.0
        %2621 = vmatpush1.msra.mxu0 %v2598
        %2622 = vmatprep.subr.mxu0 0.0
        %2623 = vmatpush1.msra.mxu0 %v2599
        %2624 = vmatprep.subr.mxu0 0.0
        %2625 = vmatpush1.msra.mxu0 %v2600
        %2626 = vmatprep.subr.mxu0 0.0
        %2627 = vmatpush1.msra.mxu0 %v2601
        %2628 = vmatprep.subr.mxu0 0.0
        %2629 = vmatpush1.msra.mxu0 %v2602
        %2630 = vmatprep.subr.mxu0 0.0
        %2631 = vmatpush1.msra.mxu0 %v2603
        %2632 = vmatprep.subr.mxu0 0.0
        %2633 = vmatpush1.msra.mxu0 %v2604
        %2634 = vmatprep.subr.mxu0 0.0
        %2635 = vmatpush1.msra.mxu0 %v2605
        %2636 = vmatprep.subr.mxu0 0.0
        %2637 = vmatpush1.msra.mxu0 0.0
        %2638 = vmatprep.subr.mxu0 0.0
        %2639 = vmatpush1.msra.mxu0 0.0
        %2640 = vmatprep.subr.mxu0 0.0
        %2641 = vmatpush1.msra.mxu0 0.0
        %2642 = vmatprep.subr.mxu0 0.0
        %2643 = vmatpush1.msra.mxu0 0.0
        %2644 = vmatprep.subr.mxu0 0.0
        %2645 = vmatpush1.msra.mxu0 0.0
        %2646 = vmatprep.subr.mxu0 0.0
        %2647 = vmatpush1.msra.mxu0 0.0
        %2648 = vmatprep.subr.mxu0 0.0
        %2649 = vmatpush1.msra.mxu0 0.0
        %2650 = vmatprep.subr.mxu0 0.0
        %2651 = vmatpush1.msra.mxu0 0.0
        %2652 = vmatprep.subr.mxu0 0.0
        %2653 = vmatpush1.msra.mxu0 0.0
        %2654 = vmatprep.subr.mxu0 0.0
        %2655 = vmatpush1.msra.mxu0 0.0
        %2656 = vmatprep.subr.mxu0 0.0
        %2657 = vmatpush1.msra.mxu0 0.0
        %2658 = vmatprep.subr.mxu0 0.0
        %2659 = vmatpush1.msra.mxu0 0.0
        %2660 = vmatprep.subr.mxu0 0.0
        %2661 = vmatpush1.msra.mxu0 0.0
        %2662 = vmatprep.subr.mxu0 0.0
        %2663 = vmatpush1.msra.mxu0 0.0
        %2664 = vmatprep.subr.mxu0 0.0
        %2665 = vmatpush1.msra.mxu0 0.0
        %2666 = vmatprep.subr.mxu0 0.0
        %2667 = vmatpush1.msra.mxu0 0.0
        %2668 = vmatprep.subr.mxu0 0.0
        %2669 = vmatpush1.msra.mxu0 0.0
        %2670 = vmatprep.subr.mxu0 0.0
        %2671 = vmatpush1.msra.mxu0 0.0
        %2672 = vmatprep.subr.mxu0 0.0
        %2673 = vmatpush1.msra.mxu0 0.0
        %2674 = vmatprep.subr.mxu0 0.0
        %2675 = vmatpush1.msra.mxu0 0.0
        %2676 = vmatprep.subr.mxu0 0.0
        %2677 = vmatpush1.msra.mxu0 0.0
        %2678 = vmatprep.subr.mxu0 0.0
        %2679 = vmatpush1.msra.mxu0 0.0
        %2680 = vmatprep.subr.mxu0 0.0
        %2681 = vmatpush1.msra.mxu0 0.0
        %2682 = vmatprep.subr.mxu0 0.0
        %2683 = vmatpush1.msra.mxu0 0.0
        %2684 = vmatprep.mubr.f32.mxu0 0.0
        %2685 = vmatmul.mubr.f32.gmra.mrb[0].mxu0 %v2615
        %v2686 = vpop.f32.mrb[0].mxu0
        %v2687 = vadd.f32 %v2611, %v2686
        %v2688 = vpop.f32.mrb[0].mxu0
        %2689 = vmatprep.mubr.f32.mxu0 0.0
        %2690 = vmatmul.mubr.f32.gmra.mrb[0].mxu0 %v2618
        %v2691 = vpop.f32.mrb[0].mxu0
        %v2692 = vadd.f32 %v2611, %v2691
        %v2693 = vpop.f32.mrb[0].mxu0
        %2694 = vdwg.mxu0
        %v2695 = vmul.f32 %v2687, 0.5
        %v2696 = vmul.f32 %v2692, 0.5
        %v2697 = vmul.f32 %v2687, %v2687
        %v2698 = vmul.f32 %v2692, %v2692
        %v2699 = vmul.f32 %v2697, %v2687
        %v2700 = vmul.f32 %v2698, %v2692
        %v2701 = vmul.f32 %v2699, 0.044715
        %v2702 = vmul.f32 %v2700, 0.044715
        %v2703 = vadd.f32 %v2687, %v2701
        %v2704 = vadd.f32 %v2692, %v2702
        %v2705 = vmul.f32 %v2703, 0.7978846
        %v2706 = vmul.f32 %v2704, 0.7978846
        %v2707 = vtanh.pop %v2705
        %v2708 = vtanh.pop %v2706
        %v2709 = vadd.f32 %v2707, 1.0
        %v2710 = vadd.f32 %v2708, 1.0
        %v2711 = vmul.f32 %v2695, %v2709
        %v2712 = vmul.f32 %v2696, %v2710
        %v2713 = vld [vmem:[#allocation4] sm:$0xff]
        %v2714 = vld [vmem:[#allocation4 + $0x8] sm:$0xff]
        %v2715 = vld [vmem:[%s659] sm:$0xff]
        %v2716 = vld [vmem:[%s659 + $0x8] sm:$0xff]
        %v2717 = vld [vmem:[%s659 + $0x10] sm:$0xff]
        %v2718 = vld [vmem:[%s659 + $0x18] sm:$0xff]
        %v2719 = vld [vmem:[%s659 + $0x20] sm:$0xff]
        %v2720 = vld [vmem:[%s659 + $0x28] sm:$0xff]
        %v2721 = vld [vmem:[%s659 + $0x30] sm:$0xff]
        %v2722 = vld [vmem:[%s659 + $0x38] sm:$0xff]
        %v2723 = vld [vmem:[%s659 + $0x40] sm:$0xff]
        %v2724 = vld [vmem:[%s659 + $0x48] sm:$0xff]
        %v2725 = vld [vmem:[%s659 + $0x50] sm:$0xff]
        %v2726 = vld [vmem:[%s659 + $0x58] sm:$0xff]
        %v2727 = vld [vmem:[%s659 + $0x60] sm:$0xff]
        %v2728 = vld [vmem:[%s659 + $0x68] sm:$0xff]
        %v2729 = vld [vmem:[%s659 + $0x70] sm:$0xff]
        %v2730 = vld [vmem:[%s659 + $0x78] sm:$0xff]
        %2731 = vmatprep.subr.mxu0 0.0
        %2732 = vmatpush1.msra.mxu0 %v2715
        %2733 = vmatprep.subr.mxu0 0.0
        %2734 = vmatpush1.msra.mxu0 %v2716
        %2735 = vmatprep.subr.mxu0 0.0
        %2736 = vmatpush1.msra.mxu0 %v2717
        %2737 = vmatprep.subr.mxu0 0.0
        %2738 = vmatpush1.msra.mxu0 %v2718
        %2739 = vmatprep.subr.mxu0 0.0
        %2740 = vmatpush1.msra.mxu0 %v2719
        %2741 = vmatprep.subr.mxu0 0.0
        %2742 = vmatpush1.msra.mxu0 %v2720
        %2743 = vmatprep.subr.mxu0 0.0
        %2744 = vmatpush1.msra.mxu0 %v2721
        %2745 = vmatprep.subr.mxu0 0.0
        %2746 = vmatpush1.msra.mxu0 %v2722
        %2747 = vmatprep.subr.mxu0 0.0
        %2748 = vmatpush1.msra.mxu0 %v2723
        %2749 = vmatprep.subr.mxu0 0.0
        %2750 = vmatpush1.msra.mxu0 %v2724
        %2751 = vmatprep.subr.mxu0 0.0
        %2752 = vmatpush1.msra.mxu0 %v2725
        %2753 = vmatprep.subr.mxu0 0.0
        %2754 = vmatpush1.msra.mxu0 %v2726
        %2755 = vmatprep.subr.mxu0 0.0
        %2756 = vmatpush1.msra.mxu0 %v2727
        %2757 = vmatprep.subr.mxu0 0.0
        %2758 = vmatpush1.msra.mxu0 %v2728
        %2759 = vmatprep.subr.mxu0 0.0
        %2760 = vmatpush1.msra.mxu0 %v2729
        %2761 = vmatprep.subr.mxu0 0.0
        %2762 = vmatpush1.msra.mxu0 %v2730
        %2763 = vmatprep.subr.mxu0 0.0
        %2764 = vmatpush1.msra.mxu0 0.0
        %2765 = vmatprep.subr.mxu0 0.0
        %2766 = vmatpush1.msra.mxu0 0.0
        %2767 = vmatprep.subr.mxu0 0.0
        %2768 = vmatpush1.msra.mxu0 0.0
        %2769 = vmatprep.subr.mxu0 0.0
        %2770 = vmatpush1.msra.mxu0 0.0
        %2771 = vmatprep.subr.mxu0 0.0
        %2772 = vmatpush1.msra.mxu0 0.0
        %2773 = vmatprep.subr.mxu0 0.0
        %2774 = vmatpush1.msra.mxu0 0.0
        %2775 = vmatprep.subr.mxu0 0.0
        %2776 = vmatpush1.msra.mxu0 0.0
        %2777 = vmatprep.subr.mxu0 0.0
        %2778 = vmatpush1.msra.mxu0 0.0
        %2779 = vmatprep.subr.mxu0 0.0
        %2780 = vmatpush1.msra.mxu0 0.0
        %2781 = vmatprep.subr.mxu0 0.0
        %2782 = vmatpush1.msra.mxu0 0.0
        %2783 = vmatprep.subr.mxu0 0.0
        %2784 = vmatpush1.msra.mxu0 0.0
        %2785 = vmatprep.subr.mxu0 0.0
        %2786 = vmatpush1.msra.mxu0 0.0
        %2787 = vmatprep.subr.mxu0 0.0
        %2788 = vmatpush1.msra.mxu0 0.0
        %2789 = vmatprep.subr.mxu0 0.0
        %2790 = vmatpush1.msra.mxu0 0.0
        %2791 = vmatprep.subr.mxu0 0.0
        %2792 = vmatpush1.msra.mxu0 0.0
        %2793 = vmatprep.subr.mxu0 0.0
        %2794 = vmatpush1.msra.mxu0 0.0
        %2795 = vmatprep.mubr.f32.mxu0 0.0
        %2796 = vmatmul.mubr.f32.gmra.mrb[0].mxu0 %v2711
        %v2797 = vpop.f32.mrb[0].mxu0
        %v2798 = vadd.f32 0.0, %v2797
        %v2799 = vpop.f32.mrb[0].mxu0
        %2800 = vmatprep.mubr.f32.mxu0 0.0
        %2801 = vmatmul.mubr.f32.gmra.mrb[0].mxu0 %v2712
        %v2802 = vpop.f32.mrb[0].mxu0
        %v2803 = vadd.f32 0.0, %v2802
        %v2804 = vpop.f32.mrb[0].mxu0
        %2805 = vdwg.mxu0
        %v2806 = vadd.f32 %v2713, %v2798
        %v2807 = vadd.f32 %v2714, %v2803
        %2808 = vst.msk [vmem:[#allocation4] sm:$0xff] %vm2613, %v2806
        %2809 = vst.msk [vmem:[#allocation4 + $0x8] sm:$0xff] %vm2613, %v2807
        %p2810 = scmp.eq.s32.totalorder %s31, 1
        // Predicated region
        $region139: #{tpu_custom_call.1} parent=121 // pred_check
          %p2811 = pneg %p2810
        $region140: #{tpu_custom_call.1} parent=121 // pred_check_branch
          %2813 = sbr.rel (%p2811) target = $region142
        $region141: #{tpu_custom_call.1} parent=121 // pred_region
          %v2814 = vld [vmem:[#allocation2] sm:$0xff]
          %v2815 = vld [vmem:[#allocation2 + $0x8] sm:$0xff]
          %v2816 = vld [vmem:[#allocation4] sm:$0xff]
          %v2817 = vld [vmem:[#allocation4 + $0x8] sm:$0xff]
          %v2818 = vadd.f32 %v2814, %v2816
          %v2819 = vadd.f32 %v2815, %v2817
          %v2820 = vld [vmem:[%s16] sm:$0x1]
          %v2822 = vlaneseq
          %v2823 = vshrl.u32 %v2822, 7
          %v2824 = vsub.s32 0, %v2823
          %v2825 = vrot.slane %v2820, %v2824
          %v2827 = vadd.f32 %v2818, %v2825
          %v2828 = vadd.f32 %v2819, %v2825
          %2829 = vst.msk [vmem:[#allocation15] sm:$0xff] %vm2613, %v2827
          %2830 = vst.msk [vmem:[#allocation15 + $0x8] sm:$0xff] %vm2613, %v2828
        $region142: #{tpu_custom_call.1} parent=121 // pred_fallthru
          _
        // Predicated region
        $region143: #{tpu_custom_call.1} parent=121 // pred_check
          %p2831 = pneg %p416
        $region144: #{tpu_custom_call.1} parent=121 // pred_check_branch
          %2833 = sbr.rel (%p2831) target = $region146
        $region145: #{tpu_custom_call.1} parent=121 // pred_region
          %s2835 = ssub.s32 256, 256
          %2836 = vsyncadd [#allocation11], %s2835
          %s2837 = sshll.u32 [#allocation15], 4
          %s2838 = int_to_ptr.vmem [resolvable:$true] %s2837
          %2843 = dma.vmem_to_hbm [thread:$0]  %s2838, 256, %s17, [#allocation11], 128, 128, 8
        $region146: #{tpu_custom_call.1} parent=121 // pred_fallthru
          _
        // Predicated region
        $region147: #{tpu_custom_call.1} parent=121 // pred_check
          %p2844 = pneg %p416
        $region148: #{tpu_custom_call.1} parent=121 // pred_check_branch
          %2846 = sbr.rel (%p2844) target = $region150
        $region149: #{tpu_custom_call.1} parent=121 // pred_region
          %2847 = dma.done [#allocation11], 256
        $region150: #{tpu_custom_call.1} parent=121 // pred_fallthru
          _
      $region122: #{tpu_custom_call.1} parent=5 // pred_fallthru
        _
      %p2848 = scmp.le.s32.totalorder 2, %s26
      // Predicated region
      $region151: #{tpu_custom_call.1} parent=5 // pred_check
        %p2849 = pneg %p2848
      $region152: #{tpu_custom_call.1} parent=5 // pred_check_branch
        %2851 = sbr.rel (%p2849) target = $region154
      $region153: #{tpu_custom_call.1} parent=5 // pred_region
        %s2852 = ssub.s32 %s26, 2
      $region154: #{tpu_custom_call.1} parent=5 // pred_fallthru
        _
    $region6: #{tpu_custom_call.1} parent=1 // loop_footer
      %s30 = sadd.s32 1, %s26
    $region7: #{tpu_custom_call.1} parent=1 // loop_footer_branch
      %25 = sbr.rel target = $region3
    $region8: #{tpu_custom_call.1} parent=1 // loop_exit
      _
    %2853 = vsyncpa [#allocation10], 1
    %s2854 = scalar_lea.sflag [#allocation10], 1
    %2855 = vsyncpa %s2854, 1
    %2856 = vsyncpa [#allocation13], 1
    %2857 = vsyncpa [#allocation11], 1
    %s2858 = scalar_lea.sflag [#allocation11], 1
    %2859 = vsyncpa %s2858, 1

</llo_original>
